<compile_context>
chip_gen: v7x
topology: tpu7x:2x2x1
jax: 0.10.0
libtpu: 0.0.40
codegen_flags: <defaults>
</compile_context>

<pallas_src>
import functools
import math

import numpy as np
import jax
import jax.numpy as jnp
from jax.experimental import pallas as pl
from jax.experimental.pallas import tpu as pltpu


# ----------------------------------------------------------------------------
# Chip-aware tiling / VMEM policy
# ----------------------------------------------------------------------------
def _chip_caps():
    """(parallel_cores, vmem_budget_bytes, vmem_limit_bytes) for the local chip."""
    kind = ""
    try:
        kind = jax.devices()[0].device_kind.lower()
    except Exception:
        pass
    if ("v7" in kind) or ("tpu7" in kind):
        # v7x: 64 MiB VMEM per TC, 2 TCs share the grid.
        return 2, 20 * 1024 * 1024, 32 * 1024 * 1024
    if any(t in kind for t in ("v4", "v5p")):
        # megacore chips, 128 MiB VMEM.
        return 2, 48 * 1024 * 1024, 96 * 1024 * 1024
    if any(t in kind for t in ("v5", "v6")):
        # v5e / v6e: single TC, 128 MiB VMEM -> one maximal tile per GEMM.
        return 1, 48 * 1024 * 1024, 96 * 1024 * 1024
    # unknown / older chips: conservative defaults.
    return 1, 12 * 1024 * 1024, 32 * 1024 * 1024


_CORES, _VMEM_BUDGET, _VMEM_LIMIT = _chip_caps()


def _apply_act(y, act):
    if act == "leaky_relu":
        return jnp.where(y > 0, y, 0.01 * y)   # nn.LeakyReLU default slope
    if act == "sigmoid":
        return jax.nn.sigmoid(y)
    return y


def _pad_last(x, mult):
    n = x.shape[-1]
    n_pad = -(-n // mult) * mult
    if n_pad == n:
        return x
    pads = [(0, 0)] * (x.ndim - 1) + [(0, n_pad - n)]
    return jnp.pad(x, pads)


def _divisors_desc(n, step):
    return [d for d in range(n, step - 1, -step) if n % d == 0]


def _choose_tiles(m_pad, K, N, x_bytes, w_bytes, o_bytes):
    """(tm, tn): tm multiple of 8 dividing m_pad, tn multiple of 128 dividing N.
    Double-buffered blocks + in-kernel f32 temporaries must fit the per-chip
    VMEM budget; on multi-TC chips keep >= _CORES parallel grid tiles when
    possible (dropped on single-TC chips -> one maximal tile)."""
    def footprint(tm, tn):
        return (2 * tm * K * x_bytes       # x block (double-buffered)
                + 2 * K * tn * w_bytes     # weight block
                + 2 * tn * 4               # bias block
                + 2 * tm * tn * o_bytes    # output block
                + 2 * tm * tn * 4)         # in-kernel f32 accumulator / act temp
    tn_cands = _divisors_desc(N, 128) if N % 128 == 0 else [N]
    tm_cands = _divisors_desc(m_pad, 8)
    for relax_cores in (False, True):
        for tn in tn_cands:
            for tm in tm_cands:
                if footprint(tm, tn) > _VMEM_BUDGET:
                    continue
                if (not relax_cores and _CORES > 1
                        and (m_pad // tm) * (N // tn) < _CORES):
                    continue
                return tm, tn
    return tm_cands[-1], tn_cands[-1]


# ----------------------------------------------------------------------------
# Pallas kernel: fused 2-layer LSTM stack + dense layer (one call, no grid).
# PyTorch gate order [i, f, g, o]; recurrence unrolled over static T.
# ----------------------------------------------------------------------------
def _lstm_cell(gates, c_prev):
    H = c_prev.shape[-1]
    sg = jax.nn.sigmoid(gates)          # one EUP launch over the full (B,4H)
    tg = jnp.tanh(gates)                # one EUP launch over the full (B,4H)
    i_g = sg[:, 0:H]
    f_g = sg[:, H:2 * H]
    g_g = tg[:, 2 * H:3 * H]
    o_g = sg[:, 3 * H:4 * H]
    c_new = f_g * c_prev + i_g * g_g
    h_new = o_g * jnp.tanh(c_new)
    return h_new, c_new


def _lstm_dense_kernel(x2_ref, wih1_ref, whh1_ref, b1_ref, w2_ref, b2_ref,
                       dw_ref, db_ref, o_ref, *, T, B):
    S = whh1_ref.shape[0]
    S2 = 2 * S

    # Hoisted layer-1 input projection: one parallel (T*B, Din) MXU GEMM.
    gx1 = (jnp.dot(x2_ref[...], wih1_ref[...],
                   preferred_element_type=jnp.float32) + b1_ref[...])

    whh1 = whh1_ref[...]
    w2 = w2_ref[...]          # stacked [wih2; whh2] : (3S, 8S)
    b2 = b2_ref[...]

    h1 = jnp.zeros((B, S), jnp.float32)
    c1 = jnp.zeros((B, S), jnp.float32)
    h2 = jnp.zeros((B, S2), jnp.float32)
    c2 = jnp.zeros((B, S2), jnp.float32)

    hs = []
    # T is a static trace-time constant -> full unroll of the serial chain;
    # only two small recurrent matmuls per step sit on the critical path.
    for t in range(T):
        g1 = gx1[t * B:(t + 1) * B, :] + jnp.dot(
            h1, whh1, preferred_element_type=jnp.float32)
        h1, c1 = _lstm_cell(g1, c1)
        g2 = jnp.dot(jnp.concatenate([h1, h2], axis=-1), w2,
                     preferred_element_type=jnp.float32) + b2
        h2, c2 = _lstm_cell(g2, c2)
        hs.append(h2)

    # (T*B, 2S), rows in time-major (t, b) order.  Row order is irrelevant to
    # the row-wise GEMM chain; the (t,b)->(b,t) swap is folded into the single
    # final XLA transpose of the forward pass.
    hseq = jnp.concatenate(hs, axis=0)

    # Fused dense layer: one (T*B, 2S) @ (2S, 8*8*4F) GEMM + bias + leaky_relu,
    # stored as one lane-dense block.
    y = jnp.dot(hseq.astype(dw_ref.dtype), dw_ref[...],
                preferred_element_type=jnp.float32) + db_ref[...]
    o_ref[...] = _apply_act(y, "leaky_relu").astype(o_ref.dtype)


def lstm_dense(x_tbd, lstm1, lstm2, dense_w, dense_b, out_dtype):
    """x_tbd: (T, B, Din) time-major -> (T*B, 8*8*4F) with rows in (t, b) order."""
    T, B, Din = x_tbd.shape
    wih1, whh1, b1 = lstm1
    w2, b2 = lstm2
    Nd = dense_w.shape[1]
    x2 = x_tbd.reshape(T * B, Din)
    vmem = pl.BlockSpec(memory_space=pltpu.MemorySpace.VMEM)
    return pl.pallas_call(
        functools.partial(_lstm_dense_kernel, T=T, B=B),
        out_shape=jax.ShapeDtypeStruct((T * B, Nd), out_dtype),
        in_specs=[vmem] * 8,
        out_specs=vmem,
        compiler_params=pltpu.CompilerParams(vmem_limit_bytes=_VMEM_LIMIT),
    )(x2, wih1, whh1, b1.reshape(1, -1), w2, b2.reshape(1, -1),
      dense_w, dense_b.reshape(1, -1))


# ----------------------------------------------------------------------------
# Pallas kernel: GEMM + bias + activation (used for every deconv layer).
# Grid = (M tiles, N tiles); both "parallel".  bf16 operands, f32 accumulate.
# ----------------------------------------------------------------------------
def _gemm_bias_act_kernel(x_ref, w_ref, b_ref, o_ref, *, act):
    y = jnp.dot(x_ref[...], w_ref[...],
                preferred_element_type=jnp.float32) + b_ref[...]
    o_ref[...] = _apply_act(y, act).astype(o_ref.dtype)


def matmul_bias_act(x, w, b, act, out_dtype=jnp.float32):
    """x:(M,K) @ w:(K,N) + b -> act.  M is a multiple of 8 and N a multiple of
    128 (callers pad once up front), so every store is unmasked / lane-dense."""
    M, K = x.shape
    N = w.shape[1]
    tm, tn = _choose_tiles(M, K, N,
                           np.dtype(x.dtype).itemsize,
                           np.dtype(w.dtype).itemsize,
                           np.dtype(out_dtype).itemsize)
    return pl.pallas_call(
        functools.partial(_gemm_bias_act_kernel, act=act),
        out_shape=jax.ShapeDtypeStruct((M, N), out_dtype),
        grid_spec=pltpu.PrefetchScalarGridSpec(
            num_scalar_prefetch=0,
            grid=(M // tm, N // tn),
            in_specs=[pl.BlockSpec((tm, K), lambda i, j: (i, 0)),
                      pl.BlockSpec((K, tn), lambda i, j: (0, j)),
                      pl.BlockSpec((1, tn), lambda i, j: (0, j))],
            out_specs=pl.BlockSpec((tm, tn), lambda i, j: (i, j)),
        ),
        compiler_params=pltpu.CompilerParams(
            dimension_semantics=("parallel", "parallel"),
            vmem_limit_bytes=_VMEM_LIMIT),
    )(x, w, b.reshape(1, N))


# ----------------------------------------------------------------------------
# ConvTranspose2d unrolled at init into one dense NHWC->NHWC matrix.
# ----------------------------------------------------------------------------
def _deconv_as_matrix(w, b, Hin, Win, stride, pad, OH, OW):
    """PyTorch ConvTranspose2d weight (Cin, Cout, KH, KW) -> dense matrix
    M[(h*Win+w)*Cin+ci, (oh*OW+ow)*Cout+co] = w[ci,co,kh,kw] with
    kh = oh - (h*sh - ph), kw = ow - (w*sw - pw) when in range, else 0.
    Maps the un-dilated NHWC input directly to the NHWC output (no stride-zero
    MACs, no padded-input copy)."""
    Cin, Cout, KH, KW = w.shape
    sh, sw = stride
    ph, pw = pad
    wt = w.transpose(2, 3, 0, 1)                                   # (KH,KW,Cin,Cout)
    kh = jnp.arange(OH)[None, :] - (jnp.arange(Hin)[:, None] * sh - ph)   # (Hin,OH)
    kw = jnp.arange(OW)[None, :] - (jnp.arange(Win)[:, None] * sw - pw)   # (Win,OW)
    vh = (kh >= 0) & (kh < KH)
    vw = (kw >= 0) & (kw < KW)
    m = wt[jnp.clip(kh, 0, KH - 1)][:, :, jnp.clip(kw, 0, KW - 1)]  # (Hin,OH,Win,OW,Cin,Cout)
    mask = (vh[:, :, None, None] & vw[None, None, :, :])[..., None, None]
    m = jnp.where(mask, m, 0.0)
    m = m.transpose(0, 2, 4, 1, 3, 5).reshape(Hin * Win * Cin, OH * OW * Cout)
    return m, jnp.tile(b, OH * OW)        # bias columns ordered (oh, ow, co)


# ----------------------------------------------------------------------------
# VideoDCG setup + forward
# ----------------------------------------------------------------------------
def computing_padding(h_out, h_in, k_size, stride):
    p1 = ((h_in[0] - 1) * stride[0] - h_out[0] + k_size[0]) / 2
    p2 = ((h_in[1] - 1) * stride[1] - h_out[1] + k_size[1]) / 2
    return [int(abs(math.ceil(p1))), int(abs(math.ceil(p2)))]


def _nrm(key, shape, scale=0.1):
    return scale * jax.random.normal(key, shape, dtype=jnp.float32)


def init_params(key, cfg):
    ks = jax.random.split(key, 16)
    S, F, C = cfg["state_size"], cfg["filter_size"], cfg["nchannel"]
    xh, xw = cfg["x_h"], cfg["x_w"]
    d_in1 = cfg["z_dim"] + cfg["y_dim"]
    F4 = F * 4
    params = {}

    # LSTM weights stored transposed ((Din,4H),(H,4H)); single combined bias
    # b = b_ih + b_hh.  Layer-2 input/recurrent weights are stacked so each
    # step's layer-2 gates come from a single (B,3S)@(3S,8S) matmul.
    params["lstm1"] = (_nrm(ks[0], (d_in1, 4 * S)), _nrm(ks[1], (S, 4 * S)),
                       _nrm(ks[2], (4 * S,)))
    wih2 = _nrm(ks[3], (S, 8 * S))
    whh2 = _nrm(ks[4], (2 * S, 8 * S))
    params["lstm2"] = (jnp.concatenate([wih2, whh2], axis=0), _nrm(ks[5], (8 * S,)))

    # Dense layer: PyTorch output column order is (c, h, w); permute columns
    # once so the GEMM emits (h, w, c) (NHWC) directly.  bf16 MXU operand.
    dense_w = _nrm(ks[6], (2 * S, 8 * 8 * F4))
    dense_b = _nrm(ks[7], (8 * 8 * F4,))
    params["dense_w"] = (dense_w.reshape(2 * S, F4, 8, 8)
                         .transpose(0, 2, 3, 1)
                         .reshape(2 * S, 8 * 8 * F4)).astype(jnp.bfloat16)
    params["dense_b"] = dense_b.reshape(F4, 8, 8).transpose(1, 2, 0).reshape(-1)

    # TODO(synk): only the square (x_h == x_w) geometry branch is implemented.
    assert xh == xw, "non-square geometry branch not implemented"
    s4, k4 = [2, 2], [6, 6]
    h4_in, h4_out = [xh // 2, xw // 2], [xh, xw]
    p4 = computing_padding(h4_out, h4_in, k4, s4)
    s3, k3 = [2, 2], [6, 6]
    h3_in = [xh // 4, xw // 4]
    p3 = computing_padding(h4_in, h3_in, k3, s3)
    s2, k2 = [2, 2], [4, 4]
    h2_in = [xh // 8, xw // 8]
    p2 = computing_padding(h3_in, h2_in, k2, s2)
    s1, k1 = [2, 2], [2, 2]
    h_in = [8, 8]
    p1 = computing_padding(h2_in, h_in, k1, s1)

    layer_defs = [
        (ks[8],  ks[9],  F4,    F4,    k1, s1, p1, h_in,  "leaky_relu"),
        (ks[10], ks[11], F4,    2 * F, k2, s2, p2, h2_in, "leaky_relu"),
        (ks[12], ks[13], 2 * F, F,     k3, s3, p3, h3_in, "leaky_relu"),
        (ks[14], ks[15], F,     C,     k4, s4, p4, h4_in, "sigmoid"),
    ]
    deconv = []
    k_pad_prev = 8 * 8 * F4            # (padded) width of the previous output
    for (kw_key, kb_key, cin, cout, ksz, std, pad, hw_in, act) in layer_defs:
        hin, win = hw_in
        oh = (hin - 1) * std[0] - 2 * pad[0] + ksz[0]
        ow = (win - 1) * std[1] - 2 * pad[1] + ksz[1]
        w = _nrm(kw_key, (cin, cout, ksz[0], ksz[1]))  # PyTorch ConvTranspose2d layout
        b = _nrm(kb_key, (cout,))
        m, bias = _deconv_as_matrix(w, b, hin, win, std, pad, oh, ow)
        n_true = m.shape[1]
        # Zero-pad rows up to the previous layer's padded width (padded input
        # columns then contribute exactly 0) and columns up to a multiple of
        # 128 so every output block is lane-dense / unmasked.
        if k_pad_prev != m.shape[0]:
            m = jnp.pad(m, ((0, k_pad_prev - m.shape[0]), (0, 0)))
        m = _pad_last(m, 128)
        bias = _pad_last(bias, 128)
        deconv.append(dict(w=m.astype(jnp.bfloat16), b=bias,
                           n_true=n_true, oh=oh, ow=ow, cout=cout, act=act))
        k_pad_prev = m.shape[1]
    params["deconv"] = deconv
    return params


def video_dcg_forward(params, cfg, z, y):
    B = z.shape[0]
    T = cfg["time_steps"]

    z = z.reshape(B, T, cfg["z_dim"])
    y = jnp.broadcast_to(y[:, None, :], (B, T, cfg["y_dim"]))
    x = jnp.concatenate([z, y], axis=-1).transpose(1, 0, 2)        # (T, B, Din)

    # Fused LSTM stack + dense layer; rows in time-major (t, b) order, bf16.
    x = lstm_dense(x, params["lstm1"], params["lstm2"],
                   params["dense_w"], params["dense_b"], jnp.bfloat16)

    # Pad the row count to a multiple of 8 once and carry it through all
    # deconv layers (sliced back only at the final reshape).
    M = x.shape[0]
    m_pad = -(-M // 8) * 8
    if m_pad != M:
        x = jnp.pad(x, ((0, m_pad - M), (0, 0)))

    layers = params["deconv"]
    for li, layer in enumerate(layers):
        last = li == len(layers) - 1
        x = matmul_bias_act(x, layer["w"], layer["b"], layer["act"],
                            out_dtype=jnp.float32 if last else jnp.bfloat16)

    x = x[:M, :layers[-1]["n_true"]]
    # single layout change at the very end: (t, b, h, w, c) -> (B, T, C, H, W)
    x = x.reshape(T, B, cfg["x_h"], cfg["x_w"], cfg["nchannel"])
    return x.transpose(1, 0, 4, 2, 3)


if __name__ == "__main__":
    # Small config consistent with the module: 8x8 latent grid -> x_h pyramid.
    cfg = dict(time_steps=8, x_h=16, x_w=16, filter_size=8, state_size=16,
               nchannel=1, z_dim=8, y_dim=8)
    B = 2
    key = jax.random.PRNGKey(0)
    kp, kz, ky = jax.random.split(key, 3)
    params = init_params(kp, cfg)
    z = jax.random.normal(kz, (B, cfg["time_steps"] * cfg["z_dim"]), dtype=jnp.float32)
    y = jax.random.normal(ky, (B, cfg["y_dim"]), dtype=jnp.float32)

    fwd = jax.jit(lambda z_, y_: video_dcg_forward(params, cfg, z_, y_))
    out = jax.block_until_ready(fwd(z, y))
    assert out.shape == (B, cfg["time_steps"], cfg["nchannel"],
                         cfg["x_h"], cfg["x_w"]), out.shape
    assert bool(jnp.all(jnp.isfinite(out)))
    print("KERNEL_OK")
</pallas_src>

<mosaic_0001>
module attributes {stable_mosaic.version = 11 : i64} {
  func.func @_gemm_bias_act_kernel(%arg0: i32, %arg1: i32, %arg2: memref<16x2048xbf16, #tpu.memory_space<vmem>>, %arg3: memref<2048x128xbf16, #tpu.memory_space<vmem>>, %arg4: memref<1x128xf32, #tpu.memory_space<vmem>>, %arg5: memref<16x128xbf16, #tpu.memory_space<vmem>>) attributes {dimension_semantics = [#tpu.dimension_semantics<parallel>, #tpu.dimension_semantics<parallel>], iteration_bounds = array<i64: 1, 1>, scalar_prefetch = 0 : i64, scratch_operands = 0 : i64, tpu.core_type = #tpu.core_type<tc>, window_params = [{transform_indices = @transform_0, window_bounds = array<i64: 16, 2048>}, {transform_indices = @transform_1, window_bounds = array<i64: 2048, 128>}, {transform_indices = @transform_2, window_bounds = array<i64: 1, 128>}, {transform_indices = @transform_3, window_bounds = array<i64: 16, 128>}]} {
    %c0 = arith.constant 0 : index
    %c0_0 = arith.constant 0 : index
    %0 = vector.load %arg2[%c0, %c0_0] : memref<16x2048xbf16, #tpu.memory_space<vmem>>, vector<16x2048xbf16>
    %c0_1 = arith.constant 0 : index
    %c0_2 = arith.constant 0 : index
    %1 = vector.load %arg3[%c0_1, %c0_2] : memref<2048x128xbf16, #tpu.memory_space<vmem>>, vector<2048x128xbf16>
    %cst = arith.constant dense<0.000000e+00> : vector<16x128xf32>
    %2 = tpu.matmul %0, %1, %cst {dimension_numbers = #tpu.dot_dimension_numbers<[1], [0], [0], [1], [0, 0, 1, 1], [], []>} : vector<16x2048xbf16>, vector<2048x128xbf16>, vector<16x128xf32> -> vector<16x128xf32>
    %c0_3 = arith.constant 0 : index
    %c0_4 = arith.constant 0 : index
    %3 = vector.load %arg4[%c0_3, %c0_4] : memref<1x128xf32, #tpu.memory_space<vmem>>, vector<1x128xf32>
    %4 = vector.broadcast %3 : vector<1x128xf32> to vector<16x128xf32>
    %5 = arith.addf %2, %4 : vector<16x128xf32>
    %cst_5 = arith.constant 0.000000e+00 : f32
    %6 = vector.broadcast %cst_5 : f32 to vector<16x128xf32>
    %7 = arith.cmpf ogt, %5, %6 : vector<16x128xf32>
    %cst_6 = arith.constant 0.00999999977 : f32
    %8 = vector.broadcast %cst_6 : f32 to vector<16x128xf32>
    %9 = arith.mulf %8, %5 : vector<16x128xf32>
    %10 = arith.select %7, %5, %9 : vector<16x128xi1>, vector<16x128xf32>
    %11 = arith.truncf %10 : vector<16x128xf32> to vector<16x128xbf16>
    %c0_7 = arith.constant 0 : index
    %c0_8 = arith.constant 0 : index
    %12 = vector.load %arg5[%c0_7, %c0_8] : memref<16x128xbf16, #tpu.memory_space<vmem>>, vector<16x128xbf16>
    tpu.vector_store %arg5[%c0_7, %c0_8], %11 {strides = array<i32>} : memref<16x128xbf16, #tpu.memory_space<vmem>>, vector<16x128xbf16>,
    return
  }
  func.func @transform_0(%arg0: i32, %arg1: i32) -> (i32, i32) {
    %c0_i32 = arith.constant 0 : i32
    %c0_i32_0 = arith.constant 0 : i32
    return %arg0, %c0_i32 : i32, i32
  }
  func.func @transform_1(%arg0: i32, %arg1: i32) -> (i32, i32) {
    %c0_i32 = arith.constant 0 : i32
    %c0_i32_0 = arith.constant 0 : i32
    return %c0_i32, %arg1 : i32, i32
  }
  func.func @transform_2(%arg0: i32, %arg1: i32) -> (i32, i32) {
    %c0_i32 = arith.constant 0 : i32
    %c0_i32_0 = arith.constant 0 : i32
    return %c0_i32, %arg1 : i32, i32
  }
  func.func @transform_3(%arg0: i32, %arg1: i32) -> (i32, i32) {
    %c0_i32 = arith.constant 0 : i32
    return %arg0, %arg1 : i32, i32
  }
}

module attributes {stable_mosaic.version = 11 : i64} {
  func.func @_lstm_dense_kernel(%arg0: memref<16x16xf32, #tpu.memory_space<vmem>>, %arg1: memref<16x64xf32, #tpu.memory_space<vmem>>, %arg2: memref<16x64xf32, #tpu.memory_space<vmem>>, %arg3: memref<1x64xf32, #tpu.memory_space<vmem>>, %arg4: memref<48x128xf32, #tpu.memory_space<vmem>>, %arg5: memref<1x128xf32, #tpu.memory_space<vmem>>, %arg6: memref<32x2048xbf16, #tpu.memory_space<vmem>>, %arg7: memref<1x2048xf32, #tpu.memory_space<vmem>>, %arg8: memref<16x2048xbf16, #tpu.memory_space<vmem>>) attributes {dimension_semantics = [], scalar_prefetch = 0 : i64, scratch_operands = 0 : i64, tpu.core_type = #tpu.core_type<tc>} {
    %c0 = arith.constant 0 : index
    %c0_0 = arith.constant 0 : index
    %0 = vector.load %arg0[%c0, %c0_0] : memref<16x16xf32, #tpu.memory_space<vmem>>, vector<16x16xf32>
    %c0_1 = arith.constant 0 : index
    %c0_2 = arith.constant 0 : index
    %1 = vector.load %arg1[%c0_1, %c0_2] : memref<16x64xf32, #tpu.memory_space<vmem>>, vector<16x64xf32>
    %cst = arith.constant dense<0.000000e+00> : vector<16x64xf32>
    %2 = tpu.matmul %0, %1, %cst {dimension_numbers = #tpu.dot_dimension_numbers<[1], [0], [0], [1], [0, 0, 1, 1], [], []>} : vector<16x16xf32>, vector<16x64xf32>, vector<16x64xf32> -> vector<16x64xf32>
    %c0_3 = arith.constant 0 : index
    %c0_4 = arith.constant 0 : index
    %3 = vector.load %arg3[%c0_3, %c0_4] : memref<1x64xf32, #tpu.memory_space<vmem>>, vector<1x64xf32>
    %4 = vector.broadcast %3 : vector<1x64xf32> to vector<16x64xf32>
    %5 = arith.addf %2, %4 : vector<16x64xf32>
    %c0_5 = arith.constant 0 : index
    %c0_6 = arith.constant 0 : index
    %6 = vector.load %arg2[%c0_5, %c0_6] : memref<16x64xf32, #tpu.memory_space<vmem>>, vector<16x64xf32>
    %c0_7 = arith.constant 0 : index
    %c0_8 = arith.constant 0 : index
    %7 = vector.load %arg4[%c0_7, %c0_8] : memref<48x128xf32, #tpu.memory_space<vmem>>, vector<48x128xf32>
    %c0_9 = arith.constant 0 : index
    %c0_10 = arith.constant 0 : index
    %8 = vector.load %arg5[%c0_9, %c0_10] : memref<1x128xf32, #tpu.memory_space<vmem>>, vector<1x128xf32>
    %cst_11 = arith.constant 0.000000e+00 : f32
    %9 = vector.broadcast %cst_11 : f32 to vector<2x16xf32>
    %cst_12 = arith.constant 0.000000e+00 : f32
    %10 = vector.broadcast %cst_12 : f32 to vector<2x16xf32>
    %cst_13 = arith.constant 0.000000e+00 : f32
    %11 = vector.broadcast %cst_13 : f32 to vector<2x32xf32>
    %cst_14 = arith.constant 0.000000e+00 : f32
    %12 = vector.broadcast %cst_14 : f32 to vector<2x32xf32>
    %13 = vector.extract_strided_slice %5 {offsets = [0, 0], sizes = [2, 64], strides = [1, 1]} : vector<16x64xf32> to vector<2x64xf32>
    %cst_15 = arith.constant dense<0.000000e+00> : vector<2x64xf32>
    %14 = tpu.matmul %9, %6, %cst_15 {dimension_numbers = #tpu.dot_dimension_numbers<[1], [0], [0], [1], [0, 0, 1, 1], [], []>} : vector<2x16xf32>, vector<16x64xf32>, vector<2x64xf32> -> vector<2x64xf32>
    %15 = arith.addf %13, %14 : vector<2x64xf32>
    %16 = arith.negf %15 : vector<2x64xf32>
    %17 = math.exp %16 : vector<2x64xf32>
    %cst_16 = arith.constant 1.000000e+00 : f32
    %18 = vector.broadcast %cst_16 : f32 to vector<2x64xf32>
    %19 = arith.addf %18, %17 : vector<2x64xf32>
    %20 = arith.divf %18, %19 : vector<2x64xf32>
    %21 = math.tanh %15 : vector<2x64xf32>
    %22 = vector.extract_strided_slice %20 {offsets = [0, 0], sizes = [2, 16], strides = [1, 1]} : vector<2x64xf32> to vector<2x16xf32>
    %23 = vector.extract_strided_slice %20 {offsets = [0, 16], sizes = [2, 16], strides = [1, 1]} : vector<2x64xf32> to vector<2x16xf32>
    %24 = vector.extract_strided_slice %21 {offsets = [0, 32], sizes = [2, 16], strides = [1, 1]} : vector<2x64xf32> to vector<2x16xf32>
    %25 = vector.extract_strided_slice %20 {offsets = [0, 48], sizes = [2, 16], strides = [1, 1]} : vector<2x64xf32> to vector<2x16xf32>
    %26 = arith.mulf %23, %10 : vector<2x16xf32>
    %27 = arith.mulf %22, %24 : vector<2x16xf32>
    %28 = arith.addf %26, %27 : vector<2x16xf32>
    %29 = math.tanh %28 : vector<2x16xf32>
    %30 = arith.mulf %25, %29 : vector<2x16xf32>
    %31 = tpu.concatenate %30, %11 in 1 : vector<2x16xf32>, vector<2x32xf32> -> vector<2x48xf32>
    %cst_17 = arith.constant dense<0.000000e+00> : vector<2x128xf32>
    %32 = tpu.matmul %31, %7, %cst_17 {dimension_numbers = #tpu.dot_dimension_numbers<[1], [0], [0], [1], [0, 0, 1, 1], [], []>} : vector<2x48xf32>, vector<48x128xf32>, vector<2x128xf32> -> vector<2x128xf32>
    %33 = vector.broadcast %8 : vector<1x128xf32> to vector<2x128xf32>
    %34 = arith.addf %32, %33 : vector<2x128xf32>
    %35 = arith.negf %34 : vector<2x128xf32>
    %36 = math.exp %35 : vector<2x128xf32>
    %cst_18 = arith.constant 1.000000e+00 : f32
    %37 = vector.broadcast %cst_18 : f32 to vector<2x128xf32>
    %38 = arith.addf %37, %36 : vector<2x128xf32>
    %39 = arith.divf %37, %38 : vector<2x128xf32>
    %40 = math.tanh %34 : vector<2x128xf32>
    %41 = vector.extract_strided_slice %39 {offsets = [0, 0], sizes = [2, 32], strides = [1, 1]} : vector<2x128xf32> to vector<2x32xf32>
    %42 = vector.extract_strided_slice %39 {offsets = [0, 32], sizes = [2, 32], strides = [1, 1]} : vector<2x128xf32> to vector<2x32xf32>
    %43 = vector.extract_strided_slice %40 {offsets = [0, 64], sizes = [2, 32], strides = [1, 1]} : vector<2x128xf32> to vector<2x32xf32>
    %44 = vector.extract_strided_slice %39 {offsets = [0, 96], sizes = [2, 32], strides = [1, 1]} : vector<2x128xf32> to vector<2x32xf32>
    %45 = arith.mulf %42, %12 : vector<2x32xf32>
    %46 = arith.mulf %41, %43 : vector<2x32xf32>
    %47 = arith.addf %45, %46 : vector<2x32xf32>
    %48 = math.tanh %47 : vector<2x32xf32>
    %49 = arith.mulf %44, %48 : vector<2x32xf32>
    %50 = vector.extract_strided_slice %5 {offsets = [2, 0], sizes = [2, 64], strides = [1, 1]} : vector<16x64xf32> to vector<2x64xf32>
    %cst_19 = arith.constant dense<0.000000e+00> : vector<2x64xf32>
    %51 = tpu.matmul %30, %6, %cst_19 {dimension_numbers = #tpu.dot_dimension_numbers<[1], [0], [0], [1], [0, 0, 1, 1], [], []>} : vector<2x16xf32>, vector<16x64xf32>, vector<2x64xf32> -> vector<2x64xf32>
    %52 = arith.addf %50, %51 : vector<2x64xf32>
    %53 = arith.negf %52 : vector<2x64xf32>
    %54 = math.exp %53 : vector<2x64xf32>
    %cst_20 = arith.constant 1.000000e+00 : f32
    %55 = vector.broadcast %cst_20 : f32 to vector<2x64xf32>
    %56 = arith.addf %55, %54 : vector<2x64xf32>
    %57 = arith.divf %55, %56 : vector<2x64xf32>
    %58 = math.tanh %52 : vector<2x64xf32>
    %59 = vector.extract_strided_slice %57 {offsets = [0, 0], sizes = [2, 16], strides = [1, 1]} : vector<2x64xf32> to vector<2x16xf32>
    %60 = vector.extract_strided_slice %57 {offsets = [0, 16], sizes = [2, 16], strides = [1, 1]} : vector<2x64xf32> to vector<2x16xf32>
    %61 = vector.extract_strided_slice %58 {offsets = [0, 32], sizes = [2, 16], strides = [1, 1]} : vector<2x64xf32> to vector<2x16xf32>
    %62 = vector.extract_strided_slice %57 {offsets = [0, 48], sizes = [2, 16], strides = [1, 1]} : vector<2x64xf32> to vector<2x16xf32>
    %63 = arith.mulf %60, %28 : vector<2x16xf32>
    %64 = arith.mulf %59, %61 : vector<2x16xf32>
    %65 = arith.addf %63, %64 : vector<2x16xf32>
    %66 = math.tanh %65 : vector<2x16xf32>
    %67 = arith.mulf %62, %66 : vector<2x16xf32>
    %68 = tpu.concatenate %67, %49 in 1 : vector<2x16xf32>, vector<2x32xf32> -> vector<2x48xf32>
    %cst_21 = arith.constant dense<0.000000e+00> : vector<2x128xf32>
    %69 = tpu.matmul %68, %7, %cst_21 {dimension_numbers = #tpu.dot_dimension_numbers<[1], [0], [0], [1], [0, 0, 1, 1], [], []>} : vector<2x48xf32>, vector<48x128xf32>, vector<2x128xf32> -> vector<2x128xf32>
    %70 = vector.broadcast %8 : vector<1x128xf32> to vector<2x128xf32>
    %71 = arith.addf %69, %70 : vector<2x128xf32>
    %72 = arith.negf %71 : vector<2x128xf32>
    %73 = math.exp %72 : vector<2x128xf32>
    %cst_22 = arith.constant 1.000000e+00 : f32
    %74 = vector.broadcast %cst_22 : f32 to vector<2x128xf32>
    %75 = arith.addf %74, %73 : vector<2x128xf32>
    %76 = arith.divf %74, %75 : vector<2x128xf32>
    %77 = math.tanh %71 : vector<2x128xf32>
    %78 = vector.extract_strided_slice %76 {offsets = [0, 0], sizes = [2, 32], strides = [1, 1]} : vector<2x128xf32> to vector<2x32xf32>
    %79 = vector.extract_strided_slice %76 {offsets = [0, 32], sizes = [2, 32], strides = [1, 1]} : vector<2x128xf32> to vector<2x32xf32>
    %80 = vector.extract_strided_slice %77 {offsets = [0, 64], sizes = [2, 32], strides = [1, 1]} : vector<2x128xf32> to vector<2x32xf32>
    %81 = vector.extract_strided_slice %76 {offsets = [0, 96], sizes = [2, 32], strides = [1, 1]} : vector<2x128xf32> to vector<2x32xf32>
    %82 = arith.mulf %79, %47 : vector<2x32xf32>
    %83 = arith.mulf %78, %80 : vector<2x32xf32>
    %84 = arith.addf %82, %83 : vector<2x32xf32>
    %85 = math.tanh %84 : vector<2x32xf32>
    %86 = arith.mulf %81, %85 : vector<2x32xf32>
    %87 = vector.extract_strided_slice %5 {offsets = [4, 0], sizes = [2, 64], strides = [1, 1]} : vector<16x64xf32> to vector<2x64xf32>
    %cst_23 = arith.constant dense<0.000000e+00> : vector<2x64xf32>
    %88 = tpu.matmul %67, %6, %cst_23 {dimension_numbers = #tpu.dot_dimension_numbers<[1], [0], [0], [1], [0, 0, 1, 1], [], []>} : vector<2x16xf32>, vector<16x64xf32>, vector<2x64xf32> -> vector<2x64xf32>
    %89 = arith.addf %87, %88 : vector<2x64xf32>
    %90 = arith.negf %89 : vector<2x64xf32>
    %91 = math.exp %90 : vector<2x64xf32>
    %cst_24 = arith.constant 1.000000e+00 : f32
    %92 = vector.broadcast %cst_24 : f32 to vector<2x64xf32>
    %93 = arith.addf %92, %91 : vector<2x64xf32>
    %94 = arith.divf %92, %93 : vector<2x64xf32>
    %95 = math.tanh %89 : vector<2x64xf32>
    %96 = vector.extract_strided_slice %94 {offsets = [0, 0], sizes = [2, 16], strides = [1, 1]} : vector<2x64xf32> to vector<2x16xf32>
    %97 = vector.extract_strided_slice %94 {offsets = [0, 16], sizes = [2, 16], strides = [1, 1]} : vector<2x64xf32> to vector<2x16xf32>
    %98 = vector.extract_strided_slice %95 {offsets = [0, 32], sizes = [2, 16], strides = [1, 1]} : vector<2x64xf32> to vector<2x16xf32>
    %99 = vector.extract_strided_slice %94 {offsets = [0, 48], sizes = [2, 16], strides = [1, 1]} : vector<2x64xf32> to vector<2x16xf32>
    %100 = arith.mulf %97, %65 : vector<2x16xf32>
    %101 = arith.mulf %96, %98 : vector<2x16xf32>
    %102 = arith.addf %100, %101 : vector<2x16xf32>
    %103 = math.tanh %102 : vector<2x16xf32>
    %104 = arith.mulf %99, %103 : vector<2x16xf32>
    %105 = tpu.concatenate %104, %86 in 1 : vector<2x16xf32>, vector<2x32xf32> -> vector<2x48xf32>
    %cst_25 = arith.constant dense<0.000000e+00> : vector<2x128xf32>
    %106 = tpu.matmul %105, %7, %cst_25 {dimension_numbers = #tpu.dot_dimension_numbers<[1], [0], [0], [1], [0, 0, 1, 1], [], []>} : vector<2x48xf32>, vector<48x128xf32>, vector<2x128xf32> -> vector<2x128xf32>
    %107 = vector.broadcast %8 : vector<1x128xf32> to vector<2x128xf32>
    %108 = arith.addf %106, %107 : vector<2x128xf32>
    %109 = arith.negf %108 : vector<2x128xf32>
    %110 = math.exp %109 : vector<2x128xf32>
    %cst_26 = arith.constant 1.000000e+00 : f32
    %111 = vector.broadcast %cst_26 : f32 to vector<2x128xf32>
    %112 = arith.addf %111, %110 : vector<2x128xf32>
    %113 = arith.divf %111, %112 : vector<2x128xf32>
    %114 = math.tanh %108 : vector<2x128xf32>
    %115 = vector.extract_strided_slice %113 {offsets = [0, 0], sizes = [2, 32], strides = [1, 1]} : vector<2x128xf32> to vector<2x32xf32>
    %116 = vector.extract_strided_slice %113 {offsets = [0, 32], sizes = [2, 32], strides = [1, 1]} : vector<2x128xf32> to vector<2x32xf32>
    %117 = vector.extract_strided_slice %114 {offsets = [0, 64], sizes = [2, 32], strides = [1, 1]} : vector<2x128xf32> to vector<2x32xf32>
    %118 = vector.extract_strided_slice %113 {offsets = [0, 96], sizes = [2, 32], strides = [1, 1]} : vector<2x128xf32> to vector<2x32xf32>
    %119 = arith.mulf %116, %84 : vector<2x32xf32>
    %120 = arith.mulf %115, %117 : vector<2x32xf32>
    %121 = arith.addf %119, %120 : vector<2x32xf32>
    %122 = math.tanh %121 : vector<2x32xf32>
    %123 = arith.mulf %118, %122 : vector<2x32xf32>
    %124 = vector.extract_strided_slice %5 {offsets = [6, 0], sizes = [2, 64], strides = [1, 1]} : vector<16x64xf32> to vector<2x64xf32>
    %cst_27 = arith.constant dense<0.000000e+00> : vector<2x64xf32>
    %125 = tpu.matmul %104, %6, %cst_27 {dimension_numbers = #tpu.dot_dimension_numbers<[1], [0], [0], [1], [0, 0, 1, 1], [], []>} : vector<2x16xf32>, vector<16x64xf32>, vector<2x64xf32> -> vector<2x64xf32>
    %126 = arith.addf %124, %125 : vector<2x64xf32>
    %127 = arith.negf %126 : vector<2x64xf32>
    %128 = math.exp %127 : vector<2x64xf32>
    %cst_28 = arith.constant 1.000000e+00 : f32
    %129 = vector.broadcast %cst_28 : f32 to vector<2x64xf32>
    %130 = arith.addf %129, %128 : vector<2x64xf32>
    %131 = arith.divf %129, %130 : vector<2x64xf32>
    %132 = math.tanh %126 : vector<2x64xf32>
    %133 = vector.extract_strided_slice %131 {offsets = [0, 0], sizes = [2, 16], strides = [1, 1]} : vector<2x64xf32> to vector<2x16xf32>
    %134 = vector.extract_strided_slice %131 {offsets = [0, 16], sizes = [2, 16], strides = [1, 1]} : vector<2x64xf32> to vector<2x16xf32>
    %135 = vector.extract_strided_slice %132 {offsets = [0, 32], sizes = [2, 16], strides = [1, 1]} : vector<2x64xf32> to vector<2x16xf32>
    %136 = vector.extract_strided_slice %131 {offsets = [0, 48], sizes = [2, 16], strides = [1, 1]} : vector<2x64xf32> to vector<2x16xf32>
    %137 = arith.mulf %134, %102 : vector<2x16xf32>
    %138 = arith.mulf %133, %135 : vector<2x16xf32>
    %139 = arith.addf %137, %138 : vector<2x16xf32>
    %140 = math.tanh %139 : vector<2x16xf32>
    %141 = arith.mulf %136, %140 : vector<2x16xf32>
    %142 = tpu.concatenate %141, %123 in 1 : vector<2x16xf32>, vector<2x32xf32> -> vector<2x48xf32>
    %cst_29 = arith.constant dense<0.000000e+00> : vector<2x128xf32>
    %143 = tpu.matmul %142, %7, %cst_29 {dimension_numbers = #tpu.dot_dimension_numbers<[1], [0], [0], [1], [0, 0, 1, 1], [], []>} : vector<2x48xf32>, vector<48x128xf32>, vector<2x128xf32> -> vector<2x128xf32>
    %144 = vector.broadcast %8 : vector<1x128xf32> to vector<2x128xf32>
    %145 = arith.addf %143, %144 : vector<2x128xf32>
    %146 = arith.negf %145 : vector<2x128xf32>
    %147 = math.exp %146 : vector<2x128xf32>
    %cst_30 = arith.constant 1.000000e+00 : f32
    %148 = vector.broadcast %cst_30 : f32 to vector<2x128xf32>
    %149 = arith.addf %148, %147 : vector<2x128xf32>
    %150 = arith.divf %148, %149 : vector<2x128xf32>
    %151 = math.tanh %145 : vector<2x128xf32>
    %152 = vector.extract_strided_slice %150 {offsets = [0, 0], sizes = [2, 32], strides = [1, 1]} : vector<2x128xf32> to vector<2x32xf32>
    %153 = vector.extract_strided_slice %150 {offsets = [0, 32], sizes = [2, 32], strides = [1, 1]} : vector<2x128xf32> to vector<2x32xf32>
    %154 = vector.extract_strided_slice %151 {offsets = [0, 64], sizes = [2, 32], strides = [1, 1]} : vector<2x128xf32> to vector<2x32xf32>
    %155 = vector.extract_strided_slice %150 {offsets = [0, 96], sizes = [2, 32], strides = [1, 1]} : vector<2x128xf32> to vector<2x32xf32>
    %156 = arith.mulf %153, %121 : vector<2x32xf32>
    %157 = arith.mulf %152, %154 : vector<2x32xf32>
    %158 = arith.addf %156, %157 : vector<2x32xf32>
    %159 = math.tanh %158 : vector<2x32xf32>
    %160 = arith.mulf %155, %159 : vector<2x32xf32>
    %161 = vector.extract_strided_slice %5 {offsets = [8, 0], sizes = [2, 64], strides = [1, 1]} : vector<16x64xf32> to vector<2x64xf32>
    %cst_31 = arith.constant dense<0.000000e+00> : vector<2x64xf32>
    %162 = tpu.matmul %141, %6, %cst_31 {dimension_numbers = #tpu.dot_dimension_numbers<[1], [0], [0], [1], [0, 0, 1, 1], [], []>} : vector<2x16xf32>, vector<16x64xf32>, vector<2x64xf32> -> vector<2x64xf32>
    %163 = arith.addf %161, %162 : vector<2x64xf32>
    %164 = arith.negf %163 : vector<2x64xf32>
    %165 = math.exp %164 : vector<2x64xf32>
    %cst_32 = arith.constant 1.000000e+00 : f32
    %166 = vector.broadcast %cst_32 : f32 to vector<2x64xf32>
    %167 = arith.addf %166, %165 : vector<2x64xf32>
    %168 = arith.divf %166, %167 : vector<2x64xf32>
    %169 = math.tanh %163 : vector<2x64xf32>
    %170 = vector.extract_strided_slice %168 {offsets = [0, 0], sizes = [2, 16], strides = [1, 1]} : vector<2x64xf32> to vector<2x16xf32>
    %171 = vector.extract_strided_slice %168 {offsets = [0, 16], sizes = [2, 16], strides = [1, 1]} : vector<2x64xf32> to vector<2x16xf32>
    %172 = vector.extract_strided_slice %169 {offsets = [0, 32], sizes = [2, 16], strides = [1, 1]} : vector<2x64xf32> to vector<2x16xf32>
    %173 = vector.extract_strided_slice %168 {offsets = [0, 48], sizes = [2, 16], strides = [1, 1]} : vector<2x64xf32> to vector<2x16xf32>
    %174 = arith.mulf %171, %139 : vector<2x16xf32>
    %175 = arith.mulf %170, %172 : vector<2x16xf32>
    %176 = arith.addf %174, %175 : vector<2x16xf32>
    %177 = math.tanh %176 : vector<2x16xf32>
    %178 = arith.mulf %173, %177 : vector<2x16xf32>
    %179 = tpu.concatenate %178, %160 in 1 : vector<2x16xf32>, vector<2x32xf32> -> vector<2x48xf32>
    %cst_33 = arith.constant dense<0.000000e+00> : vector<2x128xf32>
    %180 = tpu.matmul %179, %7, %cst_33 {dimension_numbers = #tpu.dot_dimension_numbers<[1], [0], [0], [1], [0, 0, 1, 1], [], []>} : vector<2x48xf32>, vector<48x128xf32>, vector<2x128xf32> -> vector<2x128xf32>
    %181 = vector.broadcast %8 : vector<1x128xf32> to vector<2x128xf32>
    %182 = arith.addf %180, %181 : vector<2x128xf32>
    %183 = arith.negf %182 : vector<2x128xf32>
    %184 = math.exp %183 : vector<2x128xf32>
    %cst_34 = arith.constant 1.000000e+00 : f32
    %185 = vector.broadcast %cst_34 : f32 to vector<2x128xf32>
    %186 = arith.addf %185, %184 : vector<2x128xf32>
    %187 = arith.divf %185, %186 : vector<2x128xf32>
    %188 = math.tanh %182 : vector<2x128xf32>
    %189 = vector.extract_strided_slice %187 {offsets = [0, 0], sizes = [2, 32], strides = [1, 1]} : vector<2x128xf32> to vector<2x32xf32>
    %190 = vector.extract_strided_slice %187 {offsets = [0, 32], sizes = [2, 32], strides = [1, 1]} : vector<2x128xf32> to vector<2x32xf32>
    %191 = vector.extract_strided_slice %188 {offsets = [0, 64], sizes = [2, 32], strides = [1, 1]} : vector<2x128xf32> to vector<2x32xf32>
    %192 = vector.extract_strided_slice %187 {offsets = [0, 96], sizes = [2, 32], strides = [1, 1]} : vector<2x128xf32> to vector<2x32xf32>
    %193 = arith.mulf %190, %158 : vector<2x32xf32>
    %194 = arith.mulf %189, %191 : vector<2x32xf32>
    %195 = arith.addf %193, %194 : vector<2x32xf32>
    %196 = math.tanh %195 : vector<2x32xf32>
    %197 = arith.mulf %192, %196 : vector<2x32xf32>
    %198 = vector.extract_strided_slice %5 {offsets = [10, 0], sizes = [2, 64], strides = [1, 1]} : vector<16x64xf32> to vector<2x64xf32>
    %cst_35 = arith.constant dense<0.000000e+00> : vector<2x64xf32>
    %199 = tpu.matmul %178, %6, %cst_35 {dimension_numbers = #tpu.dot_dimension_numbers<[1], [0], [0], [1], [0, 0, 1, 1], [], []>} : vector<2x16xf32>, vector<16x64xf32>, vector<2x64xf32> -> vector<2x64xf32>
    %200 = arith.addf %198, %199 : vector<2x64xf32>
    %201 = arith.negf %200 : vector<2x64xf32>
    %202 = math.exp %201 : vector<2x64xf32>
    %cst_36 = arith.constant 1.000000e+00 : f32
    %203 = vector.broadcast %cst_36 : f32 to vector<2x64xf32>
    %204 = arith.addf %203, %202 : vector<2x64xf32>
    %205 = arith.divf %203, %204 : vector<2x64xf32>
    %206 = math.tanh %200 : vector<2x64xf32>
    %207 = vector.extract_strided_slice %205 {offsets = [0, 0], sizes = [2, 16], strides = [1, 1]} : vector<2x64xf32> to vector<2x16xf32>
    %208 = vector.extract_strided_slice %205 {offsets = [0, 16], sizes = [2, 16], strides = [1, 1]} : vector<2x64xf32> to vector<2x16xf32>
    %209 = vector.extract_strided_slice %206 {offsets = [0, 32], sizes = [2, 16], strides = [1, 1]} : vector<2x64xf32> to vector<2x16xf32>
    %210 = vector.extract_strided_slice %205 {offsets = [0, 48], sizes = [2, 16], strides = [1, 1]} : vector<2x64xf32> to vector<2x16xf32>
    %211 = arith.mulf %208, %176 : vector<2x16xf32>
    %212 = arith.mulf %207, %209 : vector<2x16xf32>
    %213 = arith.addf %211, %212 : vector<2x16xf32>
    %214 = math.tanh %213 : vector<2x16xf32>
    %215 = arith.mulf %210, %214 : vector<2x16xf32>
    %216 = tpu.concatenate %215, %197 in 1 : vector<2x16xf32>, vector<2x32xf32> -> vector<2x48xf32>
    %cst_37 = arith.constant dense<0.000000e+00> : vector<2x128xf32>
    %217 = tpu.matmul %216, %7, %cst_37 {dimension_numbers = #tpu.dot_dimension_numbers<[1], [0], [0], [1], [0, 0, 1, 1], [], []>} : vector<2x48xf32>, vector<48x128xf32>, vector<2x128xf32> -> vector<2x128xf32>
    %218 = vector.broadcast %8 : vector<1x128xf32> to vector<2x128xf32>
    %219 = arith.addf %217, %218 : vector<2x128xf32>
    %220 = arith.negf %219 : vector<2x128xf32>
    %221 = math.exp %220 : vector<2x128xf32>
    %cst_38 = arith.constant 1.000000e+00 : f32
    %222 = vector.broadcast %cst_38 : f32 to vector<2x128xf32>
    %223 = arith.addf %222, %221 : vector<2x128xf32>
    %224 = arith.divf %222, %223 : vector<2x128xf32>
    %225 = math.tanh %219 : vector<2x128xf32>
    %226 = vector.extract_strided_slice %224 {offsets = [0, 0], sizes = [2, 32], strides = [1, 1]} : vector<2x128xf32> to vector<2x32xf32>
    %227 = vector.extract_strided_slice %224 {offsets = [0, 32], sizes = [2, 32], strides = [1, 1]} : vector<2x128xf32> to vector<2x32xf32>
    %228 = vector.extract_strided_slice %225 {offsets = [0, 64], sizes = [2, 32], strides = [1, 1]} : vector<2x128xf32> to vector<2x32xf32>
    %229 = vector.extract_strided_slice %224 {offsets = [0, 96], sizes = [2, 32], strides = [1, 1]} : vector<2x128xf32> to vector<2x32xf32>
    %230 = arith.mulf %227, %195 : vector<2x32xf32>
    %231 = arith.mulf %226, %228 : vector<2x32xf32>
    %232 = arith.addf %230, %231 : vector<2x32xf32>
    %233 = math.tanh %232 : vector<2x32xf32>
    %234 = arith.mulf %229, %233 : vector<2x32xf32>
    %235 = vector.extract_strided_slice %5 {offsets = [12, 0], sizes = [2, 64], strides = [1, 1]} : vector<16x64xf32> to vector<2x64xf32>
    %cst_39 = arith.constant dense<0.000000e+00> : vector<2x64xf32>
    %236 = tpu.matmul %215, %6, %cst_39 {dimension_numbers = #tpu.dot_dimension_numbers<[1], [0], [0], [1], [0, 0, 1, 1], [], []>} : vector<2x16xf32>, vector<16x64xf32>, vector<2x64xf32> -> vector<2x64xf32>
    %237 = arith.addf %235, %236 : vector<2x64xf32>
    %238 = arith.negf %237 : vector<2x64xf32>
    %239 = math.exp %238 : vector<2x64xf32>
    %cst_40 = arith.constant 1.000000e+00 : f32
    %240 = vector.broadcast %cst_40 : f32 to vector<2x64xf32>
    %241 = arith.addf %240, %239 : vector<2x64xf32>
    %242 = arith.divf %240, %241 : vector<2x64xf32>
    %243 = math.tanh %237 : vector<2x64xf32>
    %244 = vector.extract_strided_slice %242 {offsets = [0, 0], sizes = [2, 16], strides = [1, 1]} : vector<2x64xf32> to vector<2x16xf32>
    %245 = vector.extract_strided_slice %242 {offsets = [0, 16], sizes = [2, 16], strides = [1, 1]} : vector<2x64xf32> to vector<2x16xf32>
    %246 = vector.extract_strided_slice %243 {offsets = [0, 32], sizes = [2, 16], strides = [1, 1]} : vector<2x64xf32> to vector<2x16xf32>
    %247 = vector.extract_strided_slice %242 {offsets = [0, 48], sizes = [2, 16], strides = [1, 1]} : vector<2x64xf32> to vector<2x16xf32>
    %248 = arith.mulf %245, %213 : vector<2x16xf32>
    %249 = arith.mulf %244, %246 : vector<2x16xf32>
    %250 = arith.addf %248, %249 : vector<2x16xf32>
    %251 = math.tanh %250 : vector<2x16xf32>
    %252 = arith.mulf %247, %251 : vector<2x16xf32>
    %253 = tpu.concatenate %252, %234 in 1 : vector<2x16xf32>, vector<2x32xf32> -> vector<2x48xf32>
    %cst_41 = arith.constant dense<0.000000e+00> : vector<2x128xf32>
    %254 = tpu.matmul %253, %7, %cst_41 {dimension_numbers = #tpu.dot_dimension_numbers<[1], [0], [0], [1], [0, 0, 1, 1], [], []>} : vector<2x48xf32>, vector<48x128xf32>, vector<2x128xf32> -> vector<2x128xf32>
    %255 = vector.broadcast %8 : vector<1x128xf32> to vector<2x128xf32>
    %256 = arith.addf %254, %255 : vector<2x128xf32>
    %257 = arith.negf %256 : vector<2x128xf32>
    %258 = math.exp %257 : vector<2x128xf32>
    %cst_42 = arith.constant 1.000000e+00 : f32
    %259 = vector.broadcast %cst_42 : f32 to vector<2x128xf32>
    %260 = arith.addf %259, %258 : vector<2x128xf32>
    %261 = arith.divf %259, %260 : vector<2x128xf32>
    %262 = math.tanh %256 : vector<2x128xf32>
    %263 = vector.extract_strided_slice %261 {offsets = [0, 0], sizes = [2, 32], strides = [1, 1]} : vector<2x128xf32> to vector<2x32xf32>
    %264 = vector.extract_strided_slice %261 {offsets = [0, 32], sizes = [2, 32], strides = [1, 1]} : vector<2x128xf32> to vector<2x32xf32>
    %265 = vector.extract_strided_slice %262 {offsets = [0, 64], sizes = [2, 32], strides = [1, 1]} : vector<2x128xf32> to vector<2x32xf32>
    %266 = vector.extract_strided_slice %261 {offsets = [0, 96], sizes = [2, 32], strides = [1, 1]} : vector<2x128xf32> to vector<2x32xf32>
    %267 = arith.mulf %264, %232 : vector<2x32xf32>
    %268 = arith.mulf %263, %265 : vector<2x32xf32>
    %269 = arith.addf %267, %268 : vector<2x32xf32>
    %270 = math.tanh %269 : vector<2x32xf32>
    %271 = arith.mulf %266, %270 : vector<2x32xf32>
    %272 = vector.extract_strided_slice %5 {offsets = [14, 0], sizes = [2, 64], strides = [1, 1]} : vector<16x64xf32> to vector<2x64xf32>
    %cst_43 = arith.constant dense<0.000000e+00> : vector<2x64xf32>
    %273 = tpu.matmul %252, %6, %cst_43 {dimension_numbers = #tpu.dot_dimension_numbers<[1], [0], [0], [1], [0, 0, 1, 1], [], []>} : vector<2x16xf32>, vector<16x64xf32>, vector<2x64xf32> -> vector<2x64xf32>
    %274 = arith.addf %272, %273 : vector<2x64xf32>
    %275 = arith.negf %274 : vector<2x64xf32>
    %276 = math.exp %275 : vector<2x64xf32>
    %cst_44 = arith.constant 1.000000e+00 : f32
    %277 = vector.broadcast %cst_44 : f32 to vector<2x64xf32>
    %278 = arith.addf %277, %276 : vector<2x64xf32>
    %279 = arith.divf %277, %278 : vector<2x64xf32>
    %280 = math.tanh %274 : vector<2x64xf32>
    %281 = vector.extract_strided_slice %279 {offsets = [0, 0], sizes = [2, 16], strides = [1, 1]} : vector<2x64xf32> to vector<2x16xf32>
    %282 = vector.extract_strided_slice %279 {offsets = [0, 16], sizes = [2, 16], strides = [1, 1]} : vector<2x64xf32> to vector<2x16xf32>
    %283 = vector.extract_strided_slice %280 {offsets = [0, 32], sizes = [2, 16], strides = [1, 1]} : vector<2x64xf32> to vector<2x16xf32>
    %284 = vector.extract_strided_slice %279 {offsets = [0, 48], sizes = [2, 16], strides = [1, 1]} : vector<2x64xf32> to vector<2x16xf32>
    %285 = arith.mulf %282, %250 : vector<2x16xf32>
    %286 = arith.mulf %281, %283 : vector<2x16xf32>
    %287 = arith.addf %285, %286 : vector<2x16xf32>
    %288 = math.tanh %287 : vector<2x16xf32>
    %289 = arith.mulf %284, %288 : vector<2x16xf32>
    %290 = tpu.concatenate %289, %271 in 1 : vector<2x16xf32>, vector<2x32xf32> -> vector<2x48xf32>
    %cst_45 = arith.constant dense<0.000000e+00> : vector<2x128xf32>
    %291 = tpu.matmul %290, %7, %cst_45 {dimension_numbers = #tpu.dot_dimension_numbers<[1], [0], [0], [1], [0, 0, 1, 1], [], []>} : vector<2x48xf32>, vector<48x128xf32>, vector<2x128xf32> -> vector<2x128xf32>
    %292 = vector.broadcast %8 : vector<1x128xf32> to vector<2x128xf32>
    %293 = arith.addf %291, %292 : vector<2x128xf32>
    %294 = arith.negf %293 : vector<2x128xf32>
    %295 = math.exp %294 : vector<2x128xf32>
    %cst_46 = arith.constant 1.000000e+00 : f32
    %296 = vector.broadcast %cst_46 : f32 to vector<2x128xf32>
    %297 = arith.addf %296, %295 : vector<2x128xf32>
    %298 = arith.divf %296, %297 : vector<2x128xf32>
    %299 = math.tanh %293 : vector<2x128xf32>
    %300 = vector.extract_strided_slice %298 {offsets = [0, 0], sizes = [2, 32], strides = [1, 1]} : vector<2x128xf32> to vector<2x32xf32>
    %301 = vector.extract_strided_slice %298 {offsets = [0, 32], sizes = [2, 32], strides = [1, 1]} : vector<2x128xf32> to vector<2x32xf32>
    %302 = vector.extract_strided_slice %299 {offsets = [0, 64], sizes = [2, 32], strides = [1, 1]} : vector<2x128xf32> to vector<2x32xf32>
    %303 = vector.extract_strided_slice %298 {offsets = [0, 96], sizes = [2, 32], strides = [1, 1]} : vector<2x128xf32> to vector<2x32xf32>
    %304 = arith.mulf %301, %269 : vector<2x32xf32>
    %305 = arith.mulf %300, %302 : vector<2x32xf32>
    %306 = arith.addf %304, %305 : vector<2x32xf32>
    %307 = math.tanh %306 : vector<2x32xf32>
    %308 = arith.mulf %303, %307 : vector<2x32xf32>
    %309 = tpu.concatenate %49, %86, %123, %160, %197, %234, %271, %308 in 0 : vector<2x32xf32>, vector<2x32xf32>, vector<2x32xf32>, vector<2x32xf32>, vector<2x32xf32>, vector<2x32xf32>, vector<2x32xf32>, vector<2x32xf32> -> vector<16x32xf32>
    %310 = arith.truncf %309 : vector<16x32xf32> to vector<16x32xbf16>
    %c0_47 = arith.constant 0 : index
    %c0_48 = arith.constant 0 : index
    %311 = vector.load %arg6[%c0_47, %c0_48] : memref<32x2048xbf16, #tpu.memory_space<vmem>>, vector<32x2048xbf16>
    %cst_49 = arith.constant dense<0.000000e+00> : vector<16x2048xf32>
    %312 = tpu.matmul %310, %311, %cst_49 {dimension_numbers = #tpu.dot_dimension_numbers<[1], [0], [0], [1], [0, 0, 1, 1], [], []>} : vector<16x32xbf16>, vector<32x2048xbf16>, vector<16x2048xf32> -> vector<16x2048xf32>
    %c0_50 = arith.constant 0 : index
    %c0_51 = arith.constant 0 : index
    %313 = vector.load %arg7[%c0_50, %c0_51] : memref<1x2048xf32, #tpu.memory_space<vmem>>, vector<1x2048xf32>
    %314 = vector.broadcast %313 : vector<1x2048xf32> to vector<16x2048xf32>
    %315 = arith.addf %312, %314 : vector<16x2048xf32>
    %cst_52 = arith.constant 0.000000e+00 : f32
    %316 = vector.broadcast %cst_52 : f32 to vector<16x2048xf32>
    %317 = arith.cmpf ogt, %315, %316 : vector<16x2048xf32>
    %cst_53 = arith.constant 0.00999999977 : f32
    %318 = vector.broadcast %cst_53 : f32 to vector<16x2048xf32>
    %319 = arith.mulf %318, %315 : vector<16x2048xf32>
    %320 = arith.select %317, %315, %319 : vector<16x2048xi1>, vector<16x2048xf32>
    %321 = arith.truncf %320 : vector<16x2048xf32> to vector<16x2048xbf16>
    %c0_54 = arith.constant 0 : index
    %c0_55 = arith.constant 0 : index
    %322 = vector.load %arg8[%c0_54, %c0_55] : memref<16x2048xbf16, #tpu.memory_space<vmem>>, vector<16x2048xbf16>
    tpu.vector_store %arg8[%c0_54, %c0_55], %321 {strides = array<i32>} : memref<16x2048xbf16, #tpu.memory_space<vmem>>, vector<16x2048xbf16>,
    return
  }
}

module attributes {stable_mosaic.version = 11 : i64} {
  func.func @_gemm_bias_act_kernel(%arg0: i32, %arg1: i32, %arg2: memref<16x128xbf16, #tpu.memory_space<vmem>>, %arg3: memref<128x256xbf16, #tpu.memory_space<vmem>>, %arg4: memref<1x256xf32, #tpu.memory_space<vmem>>, %arg5: memref<16x256xbf16, #tpu.memory_space<vmem>>) attributes {dimension_semantics = [#tpu.dimension_semantics<parallel>, #tpu.dimension_semantics<parallel>], iteration_bounds = array<i64: 1, 1>, scalar_prefetch = 0 : i64, scratch_operands = 0 : i64, tpu.core_type = #tpu.core_type<tc>, window_params = [{transform_indices = @transform_0, window_bounds = array<i64: 16, 128>}, {transform_indices = @transform_1, window_bounds = array<i64: 128, 256>}, {transform_indices = @transform_2, window_bounds = array<i64: 1, 256>}, {transform_indices = @transform_3, window_bounds = array<i64: 16, 256>}]} {
    %c0 = arith.constant 0 : index
    %c0_0 = arith.constant 0 : index
    %0 = vector.load %arg2[%c0, %c0_0] : memref<16x128xbf16, #tpu.memory_space<vmem>>, vector<16x128xbf16>
    %c0_1 = arith.constant 0 : index
    %c0_2 = arith.constant 0 : index
    %1 = vector.load %arg3[%c0_1, %c0_2] : memref<128x256xbf16, #tpu.memory_space<vmem>>, vector<128x256xbf16>
    %cst = arith.constant dense<0.000000e+00> : vector<16x256xf32>
    %2 = tpu.matmul %0, %1, %cst {dimension_numbers = #tpu.dot_dimension_numbers<[1], [0], [0], [1], [0, 0, 1, 1], [], []>} : vector<16x128xbf16>, vector<128x256xbf16>, vector<16x256xf32> -> vector<16x256xf32>
    %c0_3 = arith.constant 0 : index
    %c0_4 = arith.constant 0 : index
    %3 = vector.load %arg4[%c0_3, %c0_4] : memref<1x256xf32, #tpu.memory_space<vmem>>, vector<1x256xf32>
    %4 = vector.broadcast %3 : vector<1x256xf32> to vector<16x256xf32>
    %5 = arith.addf %2, %4 : vector<16x256xf32>
    %cst_5 = arith.constant 0.000000e+00 : f32
    %6 = vector.broadcast %cst_5 : f32 to vector<16x256xf32>
    %7 = arith.cmpf ogt, %5, %6 : vector<16x256xf32>
    %cst_6 = arith.constant 0.00999999977 : f32
    %8 = vector.broadcast %cst_6 : f32 to vector<16x256xf32>
    %9 = arith.mulf %8, %5 : vector<16x256xf32>
    %10 = arith.select %7, %5, %9 : vector<16x256xi1>, vector<16x256xf32>
    %11 = arith.truncf %10 : vector<16x256xf32> to vector<16x256xbf16>
    %c0_7 = arith.constant 0 : index
    %c0_8 = arith.constant 0 : index
    %12 = vector.load %arg5[%c0_7, %c0_8] : memref<16x256xbf16, #tpu.memory_space<vmem>>, vector<16x256xbf16>
    tpu.vector_store %arg5[%c0_7, %c0_8], %11 {strides = array<i32>} : memref<16x256xbf16, #tpu.memory_space<vmem>>, vector<16x256xbf16>,
    return
  }
  func.func @transform_0(%arg0: i32, %arg1: i32) -> (i32, i32) {
    %c0_i32 = arith.constant 0 : i32
    %c0_i32_0 = arith.constant 0 : i32
    return %arg0, %c0_i32 : i32, i32
  }
  func.func @transform_1(%arg0: i32, %arg1: i32) -> (i32, i32) {
    %c0_i32 = arith.constant 0 : i32
    %c0_i32_0 = arith.constant 0 : i32
    return %c0_i32, %arg1 : i32, i32
  }
  func.func @transform_2(%arg0: i32, %arg1: i32) -> (i32, i32) {
    %c0_i32 = arith.constant 0 : i32
    %c0_i32_0 = arith.constant 0 : i32
    return %c0_i32, %arg1 : i32, i32
  }
  func.func @transform_3(%arg0: i32, %arg1: i32) -> (i32, i32) {
    %c0_i32 = arith.constant 0 : i32
    return %arg0, %arg1 : i32, i32
  }
}

module attributes {stable_mosaic.version = 11 : i64} {
  func.func @_gemm_bias_act_kernel(%arg0: i32, %arg1: i32, %arg2: memref<16x256xbf16, #tpu.memory_space<vmem>>, %arg3: memref<256x512xbf16, #tpu.memory_space<vmem>>, %arg4: memref<1x512xf32, #tpu.memory_space<vmem>>, %arg5: memref<16x512xbf16, #tpu.memory_space<vmem>>) attributes {dimension_semantics = [#tpu.dimension_semantics<parallel>, #tpu.dimension_semantics<parallel>], iteration_bounds = array<i64: 1, 1>, scalar_prefetch = 0 : i64, scratch_operands = 0 : i64, tpu.core_type = #tpu.core_type<tc>, window_params = [{transform_indices = @transform_0, window_bounds = array<i64: 16, 256>}, {transform_indices = @transform_1, window_bounds = array<i64: 256, 512>}, {transform_indices = @transform_2, window_bounds = array<i64: 1, 512>}, {transform_indices = @transform_3, window_bounds = array<i64: 16, 512>}]} {
    %c0 = arith.constant 0 : index
    %c0_0 = arith.constant 0 : index
    %0 = vector.load %arg2[%c0, %c0_0] : memref<16x256xbf16, #tpu.memory_space<vmem>>, vector<16x256xbf16>
    %c0_1 = arith.constant 0 : index
    %c0_2 = arith.constant 0 : index
    %1 = vector.load %arg3[%c0_1, %c0_2] : memref<256x512xbf16, #tpu.memory_space<vmem>>, vector<256x512xbf16>
    %cst = arith.constant dense<0.000000e+00> : vector<16x512xf32>
    %2 = tpu.matmul %0, %1, %cst {dimension_numbers = #tpu.dot_dimension_numbers<[1], [0], [0], [1], [0, 0, 1, 1], [], []>} : vector<16x256xbf16>, vector<256x512xbf16>, vector<16x512xf32> -> vector<16x512xf32>
    %c0_3 = arith.constant 0 : index
    %c0_4 = arith.constant 0 : index
    %3 = vector.load %arg4[%c0_3, %c0_4] : memref<1x512xf32, #tpu.memory_space<vmem>>, vector<1x512xf32>
    %4 = vector.broadcast %3 : vector<1x512xf32> to vector<16x512xf32>
    %5 = arith.addf %2, %4 : vector<16x512xf32>
    %cst_5 = arith.constant 0.000000e+00 : f32
    %6 = vector.broadcast %cst_5 : f32 to vector<16x512xf32>
    %7 = arith.cmpf ogt, %5, %6 : vector<16x512xf32>
    %cst_6 = arith.constant 0.00999999977 : f32
    %8 = vector.broadcast %cst_6 : f32 to vector<16x512xf32>
    %9 = arith.mulf %8, %5 : vector<16x512xf32>
    %10 = arith.select %7, %5, %9 : vector<16x512xi1>, vector<16x512xf32>
    %11 = arith.truncf %10 : vector<16x512xf32> to vector<16x512xbf16>
    %c0_7 = arith.constant 0 : index
    %c0_8 = arith.constant 0 : index
    %12 = vector.load %arg5[%c0_7, %c0_8] : memref<16x512xbf16, #tpu.memory_space<vmem>>, vector<16x512xbf16>
    tpu.vector_store %arg5[%c0_7, %c0_8], %11 {strides = array<i32>} : memref<16x512xbf16, #tpu.memory_space<vmem>>, vector<16x512xbf16>,
    return
  }
  func.func @transform_0(%arg0: i32, %arg1: i32) -> (i32, i32) {
    %c0_i32 = arith.constant 0 : i32
    %c0_i32_0 = arith.constant 0 : i32
    return %arg0, %c0_i32 : i32, i32
  }
  func.func @transform_1(%arg0: i32, %arg1: i32) -> (i32, i32) {
    %c0_i32 = arith.constant 0 : i32
    %c0_i32_0 = arith.constant 0 : i32
    return %c0_i32, %arg1 : i32, i32
  }
  func.func @transform_2(%arg0: i32, %arg1: i32) -> (i32, i32) {
    %c0_i32 = arith.constant 0 : i32
    %c0_i32_0 = arith.constant 0 : i32
    return %c0_i32, %arg1 : i32, i32
  }
  func.func @transform_3(%arg0: i32, %arg1: i32) -> (i32, i32) {
    %c0_i32 = arith.constant 0 : i32
    return %arg0, %arg1 : i32, i32
  }
}

module attributes {stable_mosaic.version = 11 : i64} {
  func.func @_gemm_bias_act_kernel(%arg0: i32, %arg1: i32, %arg2: memref<16x512xbf16, #tpu.memory_space<vmem>>, %arg3: memref<512x256xbf16, #tpu.memory_space<vmem>>, %arg4: memref<1x256xf32, #tpu.memory_space<vmem>>, %arg5: memref<16x256xf32, #tpu.memory_space<vmem>>) attributes {dimension_semantics = [#tpu.dimension_semantics<parallel>, #tpu.dimension_semantics<parallel>], iteration_bounds = array<i64: 1, 1>, scalar_prefetch = 0 : i64, scratch_operands = 0 : i64, tpu.core_type = #tpu.core_type<tc>, window_params = [{transform_indices = @transform_0, window_bounds = array<i64: 16, 512>}, {transform_indices = @transform_1, window_bounds = array<i64: 512, 256>}, {transform_indices = @transform_2, window_bounds = array<i64: 1, 256>}, {transform_indices = @transform_3, window_bounds = array<i64: 16, 256>}]} {
    %c0 = arith.constant 0 : index
    %c0_0 = arith.constant 0 : index
    %0 = vector.load %arg2[%c0, %c0_0] : memref<16x512xbf16, #tpu.memory_space<vmem>>, vector<16x512xbf16>
    %c0_1 = arith.constant 0 : index
    %c0_2 = arith.constant 0 : index
    %1 = vector.load %arg3[%c0_1, %c0_2] : memref<512x256xbf16, #tpu.memory_space<vmem>>, vector<512x256xbf16>
    %cst = arith.constant dense<0.000000e+00> : vector<16x256xf32>
    %2 = tpu.matmul %0, %1, %cst {dimension_numbers = #tpu.dot_dimension_numbers<[1], [0], [0], [1], [0, 0, 1, 1], [], []>} : vector<16x512xbf16>, vector<512x256xbf16>, vector<16x256xf32> -> vector<16x256xf32>
    %c0_3 = arith.constant 0 : index
    %c0_4 = arith.constant 0 : index
    %3 = vector.load %arg4[%c0_3, %c0_4] : memref<1x256xf32, #tpu.memory_space<vmem>>, vector<1x256xf32>
    %4 = vector.broadcast %3 : vector<1x256xf32> to vector<16x256xf32>
    %5 = arith.addf %2, %4 : vector<16x256xf32>
    %6 = arith.negf %5 : vector<16x256xf32>
    %7 = math.exp %6 : vector<16x256xf32>
    %cst_5 = arith.constant 1.000000e+00 : f32
    %8 = vector.broadcast %cst_5 : f32 to vector<16x256xf32>
    %9 = arith.addf %8, %7 : vector<16x256xf32>
    %10 = arith.divf %8, %9 : vector<16x256xf32>
    %c0_6 = arith.constant 0 : index
    %c0_7 = arith.constant 0 : index
    %11 = vector.load %arg5[%c0_6, %c0_7] : memref<16x256xf32, #tpu.memory_space<vmem>>, vector<16x256xf32>
    tpu.vector_store %arg5[%c0_6, %c0_7], %10 {strides = array<i32>} : memref<16x256xf32, #tpu.memory_space<vmem>>, vector<16x256xf32>,
    return
  }
  func.func @transform_0(%arg0: i32, %arg1: i32) -> (i32, i32) {
    %c0_i32 = arith.constant 0 : i32
    %c0_i32_0 = arith.constant 0 : i32
    return %arg0, %c0_i32 : i32, i32
  }
  func.func @transform_1(%arg0: i32, %arg1: i32) -> (i32, i32) {
    %c0_i32 = arith.constant 0 : i32
    %c0_i32_0 = arith.constant 0 : i32
    return %c0_i32, %arg1 : i32, i32
  }
  func.func @transform_2(%arg0: i32, %arg1: i32) -> (i32, i32) {
    %c0_i32 = arith.constant 0 : i32
    %c0_i32_0 = arith.constant 0 : i32
    return %c0_i32, %arg1 : i32, i32
  }
  func.func @transform_3(%arg0: i32, %arg1: i32) -> (i32, i32) {
    %c0_i32 = arith.constant 0 : i32
    return %arg0, %arg1 : i32, i32
  }
}

</mosaic_0001>

<llo_original>
// kernel: _lambda_.7
$region0: #{_lambda_.7}
  #allocation0 [shape = 'u32[]', space=smem, size = 0x4, offset = 0x4, fixed_abs, tag = 'smem constant byte address 0x4 - core index']
  #allocation1 [shape = 'u32[144,128]{1,0:T(1,128)}', space=vmem, size = 0x12000, scoped, tag = 'internal scratch']
  %s0 = inlined_call_operand.vmem [shape: bf16[16,128], index: 0, kind: input, shape index: {}]
  %s1 = inlined_call_operand.vmem [shape: bf16[128,256], index: 1, kind: input, shape index: {}]
  %s2 = inlined_call_operand.vmem [shape: f32[1,256], index: 2, kind: input, shape index: {}]
  %s3 = inlined_call_operand.vmem [shape: bf16[16,256], index: 3, kind: output, shape index: {}]
  %s4 = sld [smem:[#allocation0]]
  $region22: #{_lambda_.7} parent=0
    _
  %s6 = ssub.s32 1, %s4
  %s7 = scalar_select 0, %s6, %s4
  // Predicated region
  $region2: #{_lambda_.7} parent=0 // pred_check
    _
  $region3: #{_lambda_.7} parent=0 // pred_check_branch
    %9 = sbr.rel (0) target = $region5
  $region4: #{_lambda_.7} parent=0 // pred_region
    _
  $region5: #{_lambda_.7} parent=0 // pred_fallthru
    _
  // Predicated region
  $region6: #{_lambda_.7} parent=0 // pred_check
    _
  $region7: #{_lambda_.7} parent=0 // pred_check_branch
    %11 = sbr.rel (0) target = $region9
  $region8: #{_lambda_.7} parent=0 // pred_region
    _
  $region9: #{_lambda_.7} parent=0 // pred_fallthru
    _
  // Predicated region
  $region10: #{_lambda_.7} parent=0 // pred_check
    _
  $region11: #{_lambda_.7} parent=0 // pred_check_branch
    %13 = sbr.rel (0) target = $region13
  $region12: #{_lambda_.7} parent=0 // pred_region
    _
  $region13: #{_lambda_.7} parent=0 // pred_fallthru
    _
  %v15 = vld [vmem:[%s0] sm:$0xf]
  %v16 = vld [vmem:[%s0 + $0x4] sm:$0xf]
  %v17 = vld [vmem:[%s1] sm:$0xff]
  %v18 = vld [vmem:[%s1 + $0x8] sm:$0xff]
  %v19 = vld [vmem:[%s1 + $0x10] sm:$0xff]
  %v20 = vld [vmem:[%s1 + $0x18] sm:$0xff]
  %v21 = vld [vmem:[%s1 + $0x20] sm:$0xff]
  %v22 = vld [vmem:[%s1 + $0x28] sm:$0xff]
  %v23 = vld [vmem:[%s1 + $0x30] sm:$0xff]
  %v24 = vld [vmem:[%s1 + $0x38] sm:$0xff]
  %v25 = vld [vmem:[%s1 + $0x40] sm:$0xff]
  %v26 = vld [vmem:[%s1 + $0x48] sm:$0xff]
  %v27 = vld [vmem:[%s1 + $0x50] sm:$0xff]
  %v28 = vld [vmem:[%s1 + $0x58] sm:$0xff]
  %v29 = vld [vmem:[%s1 + $0x60] sm:$0xff]
  %v30 = vld [vmem:[%s1 + $0x68] sm:$0xff]
  %v31 = vld [vmem:[%s1 + $0x70] sm:$0xff]
  %v32 = vld [vmem:[%s1 + $0x78] sm:$0xff]
  %v33 = vld [vmem:[%s2] sm:$0x3]
  %v35 = vlaneseq
  %v36 = vshrl.u32 %v35, 7
  %v37 = vsub.s32 0, %v36
  %v38 = vrot.slane %v33, %v37
  %v39 = vlaneseq
  %v40 = vshrl.u32 %v39, 7
  %v41 = vsub.s32 1, %v40
  %v42 = vrot.slane %v33, %v41
  %v47 = vunpack.c.l.b16 %v15
  %v48 = vunpack.c.l.b16 %v16
  %v49 = vpack.c.b16 %v48, %v47
  %v67 = vunpack.c.l.b16 %v17
  %v68 = vunpack.c.h.b16 %v17
  %v69 = vunpack.c.l.b16 %v18
  %v70 = vunpack.c.h.b16 %v18
  %v71 = vunpack.c.l.b16 %v19
  %v72 = vunpack.c.h.b16 %v19
  %v73 = vunpack.c.l.b16 %v20
  %v74 = vunpack.c.h.b16 %v20
  %v75 = vunpack.c.l.b16 %v21
  %v76 = vunpack.c.h.b16 %v21
  %v77 = vunpack.c.l.b16 %v22
  %v78 = vunpack.c.h.b16 %v22
  %v79 = vunpack.c.l.b16 %v23
  %v80 = vunpack.c.h.b16 %v23
  %v81 = vunpack.c.l.b16 %v24
  %v82 = vunpack.c.h.b16 %v24
  %v83 = vunpack.c.l.b16 %v25
  %v84 = vunpack.c.h.b16 %v25
  %v85 = vunpack.c.l.b16 %v26
  %v86 = vunpack.c.h.b16 %v26
  %v87 = vunpack.c.l.b16 %v27
  %v88 = vunpack.c.h.b16 %v27
  %v89 = vunpack.c.l.b16 %v28
  %v90 = vunpack.c.h.b16 %v28
  %v91 = vunpack.c.l.b16 %v29
  %v92 = vunpack.c.h.b16 %v29
  %v93 = vunpack.c.l.b16 %v30
  %v94 = vunpack.c.h.b16 %v30
  %v95 = vunpack.c.l.b16 %v31
  %v96 = vunpack.c.h.b16 %v31
  %v97 = vunpack.c.l.b16 %v32
  %v98 = vunpack.c.h.b16 %v32
  %v99 = vpack.c.b16 %v69, %v67
  %v100 = vpack.c.b16 %v70, %v68
  %v101 = vpack.c.b16 %v73, %v71
  %v102 = vpack.c.b16 %v74, %v72
  %v103 = vpack.c.b16 %v77, %v75
  %v104 = vpack.c.b16 %v78, %v76
  %v105 = vpack.c.b16 %v81, %v79
  %v106 = vpack.c.b16 %v82, %v80
  %v107 = vpack.c.b16 %v85, %v83
  %v108 = vpack.c.b16 %v86, %v84
  %v109 = vpack.c.b16 %v89, %v87
  %v110 = vpack.c.b16 %v90, %v88
  %v111 = vpack.c.b16 %v93, %v91
  %v112 = vpack.c.b16 %v94, %v92
  %v113 = vpack.c.b16 %v97, %v95
  %v114 = vpack.c.b16 %v98, %v96
  %131 = vmatprep.subr.bf16.mxu0 %v100
  %132 = vmatpush1.bf16.msra.mxu0 %v99
  %133 = vmatprep.subr.bf16.mxu0 %v102
  %134 = vmatpush1.bf16.msra.mxu0 %v101
  %135 = vmatprep.subr.bf16.mxu0 %v104
  %136 = vmatpush1.bf16.msra.mxu0 %v103
  %137 = vmatprep.subr.bf16.mxu0 %v106
  %138 = vmatpush1.bf16.msra.mxu0 %v105
  %139 = vmatprep.subr.bf16.mxu0 %v108
  %140 = vmatpush1.bf16.msra.mxu0 %v107
  %141 = vmatprep.subr.bf16.mxu0 %v110
  %142 = vmatpush1.bf16.msra.mxu0 %v109
  %143 = vmatprep.subr.bf16.mxu0 %v112
  %144 = vmatpush1.bf16.msra.mxu0 %v111
  %145 = vmatprep.subr.bf16.mxu0 %v114
  %146 = vmatpush1.bf16.msra.mxu0 %v113
  %147 = vmatprep.subr.bf16.mxu0 0
  %148 = vmatpush1.bf16.msra.mxu0 0
  %149 = vmatprep.subr.bf16.mxu0 0
  %150 = vmatpush1.bf16.msra.mxu0 0
  %151 = vmatprep.subr.bf16.mxu0 0
  %152 = vmatpush1.bf16.msra.mxu0 0
  %153 = vmatprep.subr.bf16.mxu0 0
  %154 = vmatpush1.bf16.msra.mxu0 0
  %155 = vmatprep.subr.bf16.mxu0 0
  %156 = vmatpush1.bf16.msra.mxu0 0
  %157 = vmatprep.subr.bf16.mxu0 0
  %158 = vmatpush1.bf16.msra.mxu0 0
  %159 = vmatprep.subr.bf16.mxu0 0
  %160 = vmatpush1.bf16.msra.mxu0 0
  %161 = vmatprep.subr.bf16.mxu0 0
  %162 = vmatpush1.bf16.msra.mxu0 0
  %163 = vmatprep.mubr.bf16.mxu0 0
  %164 = vmatmul.mubr.bf16.gmra.mrb[0].mxu0 %v49
  %v165 = vpop.f32.mrb[0].mxu0
  %v166 = vadd.f32 %v38, %v165
  %v167 = vpop.f32.mrb[0].mxu0
  %v168 = vadd.f32 %v42, %v167
  %v169 = vpop.f32.mrb[0].mxu0
  %v170 = vadd.f32 %v38, %v169
  %v171 = vpop.f32.mrb[0].mxu0
  %v172 = vadd.f32 %v42, %v171
  %173 = vdwg.mxu0
  %vm174 = vcmp.gt.f32.partialorder %v166, 0.0
  %vm175 = vcmp.gt.f32.partialorder %v168, 0.0
  %vm176 = vcmp.gt.f32.partialorder %v170, 0.0
  %vm177 = vcmp.gt.f32.partialorder %v172, 0.0
  %v178 = vmul.f32 %v166, 0.01
  %v179 = vmul.f32 %v168, 0.01
  %v180 = vmul.f32 %v170, 0.01
  %v181 = vmul.f32 %v172, 0.01
  %v182 = vsel %vm174, %v166, %v178
  %v183 = vsel %vm175, %v168, %v179
  %v184 = vsel %vm176, %v170, %v180
  %v185 = vsel %vm177, %v172, %v181
  %v186 = vpack.c.bf16 %v184, %v182
  %v187 = vpack.c.bf16 %v185, %v183
  %v190 = vunpack.c.l.b16 %v186
  %v191 = vunpack.c.l.b16 %v187
  %v192 = vunpack.c.h.b16 %v186
  %v193 = vunpack.c.h.b16 %v187
  %v194 = vpack.c.b16 %v191, %v190
  %v195 = vpack.c.b16 %v193, %v192
  %198 = vst [vmem:[%s3] sm:$0xff] %v194
  %199 = vst [vmem:[%s3 + $0x8] sm:$0xff] %v195
  // Predicated region
  $region14: #{_lambda_.7} parent=0 // pred_check
    _
  $region15: #{_lambda_.7} parent=0 // pred_check_branch
    %201 = sbr.rel (0) target = $region17
  $region16: #{_lambda_.7} parent=0 // pred_region
    _
  $region17: #{_lambda_.7} parent=0 // pred_fallthru
    _
  // Predicated region
  $region18: #{_lambda_.7} parent=0 // pred_check
    _
  $region19: #{_lambda_.7} parent=0 // pred_check_branch
    %203 = sbr.rel (0) target = $region21
  $region20: #{_lambda_.7} parent=0 // pred_region
    _
  $region21: #{_lambda_.7} parent=0 // pred_fallthru
    _

// kernel: _lambda_.8
$region0: #{_lambda_.8}
  #allocation0 [shape = 'u32[]', space=smem, size = 0x4, offset = 0x4, fixed_abs, tag = 'smem constant byte address 0x4 - core index']
  #allocation1 [shape = 'u32[144,128]{1,0:T(1,128)}', space=vmem, size = 0x12000, scoped, tag = 'internal scratch']
  %s0 = inlined_call_operand.vmem [shape: bf16[16,256], index: 0, kind: input, shape index: {}]
  %s1 = inlined_call_operand.vmem [shape: bf16[256,512], index: 1, kind: input, shape index: {}]
  %s2 = inlined_call_operand.vmem [shape: f32[1,512], index: 2, kind: input, shape index: {}]
  %s3 = inlined_call_operand.vmem [shape: bf16[16,512], index: 3, kind: output, shape index: {}]
  %s4 = sld [smem:[#allocation0]]
  $region22: #{_lambda_.8} parent=0
    _
  %s6 = ssub.s32 1, %s4
  %s7 = scalar_select 0, %s6, %s4
  // Predicated region
  $region2: #{_lambda_.8} parent=0 // pred_check
    _
  $region3: #{_lambda_.8} parent=0 // pred_check_branch
    %9 = sbr.rel (0) target = $region5
  $region4: #{_lambda_.8} parent=0 // pred_region
    _
  $region5: #{_lambda_.8} parent=0 // pred_fallthru
    _
  // Predicated region
  $region6: #{_lambda_.8} parent=0 // pred_check
    _
  $region7: #{_lambda_.8} parent=0 // pred_check_branch
    %11 = sbr.rel (0) target = $region9
  $region8: #{_lambda_.8} parent=0 // pred_region
    _
  $region9: #{_lambda_.8} parent=0 // pred_fallthru
    _
  // Predicated region
  $region10: #{_lambda_.8} parent=0 // pred_check
    _
  $region11: #{_lambda_.8} parent=0 // pred_check_branch
    %13 = sbr.rel (0) target = $region13
  $region12: #{_lambda_.8} parent=0 // pred_region
    _
  $region13: #{_lambda_.8} parent=0 // pred_fallthru
    _
  %v14 = vld [vmem:[%s0] sm:$0xff]
  %v15 = vld [vmem:[%s0 + $0x8] sm:$0xff]
  %v16 = vld [vmem:[%s1] sm:$0xff]
  %v17 = vld [vmem:[%s1 + $0x8] sm:$0xff]
  %v18 = vld [vmem:[%s1 + $0x10] sm:$0xff]
  %v19 = vld [vmem:[%s1 + $0x18] sm:$0xff]
  %v20 = vld [vmem:[%s1 + $0x20] sm:$0xff]
  %v21 = vld [vmem:[%s1 + $0x28] sm:$0xff]
  %v22 = vld [vmem:[%s1 + $0x30] sm:$0xff]
  %v23 = vld [vmem:[%s1 + $0x38] sm:$0xff]
  %v24 = vld [vmem:[%s1 + $0x40] sm:$0xff]
  %v25 = vld [vmem:[%s1 + $0x48] sm:$0xff]
  %v26 = vld [vmem:[%s1 + $0x50] sm:$0xff]
  %v27 = vld [vmem:[%s1 + $0x58] sm:$0xff]
  %v28 = vld [vmem:[%s1 + $0x60] sm:$0xff]
  %v29 = vld [vmem:[%s1 + $0x68] sm:$0xff]
  %v30 = vld [vmem:[%s1 + $0x70] sm:$0xff]
  %v31 = vld [vmem:[%s1 + $0x78] sm:$0xff]
  %v32 = vld [vmem:[%s1 + $0x80] sm:$0xff]
  %v33 = vld [vmem:[%s1 + $0x88] sm:$0xff]
  %v34 = vld [vmem:[%s1 + $0x90] sm:$0xff]
  %v35 = vld [vmem:[%s1 + $0x98] sm:$0xff]
  %v36 = vld [vmem:[%s1 + $0xa0] sm:$0xff]
  %v37 = vld [vmem:[%s1 + $0xa8] sm:$0xff]
  %v38 = vld [vmem:[%s1 + $0xb0] sm:$0xff]
  %v39 = vld [vmem:[%s1 + $0xb8] sm:$0xff]
  %v40 = vld [vmem:[%s1 + $0xc0] sm:$0xff]
  %v41 = vld [vmem:[%s1 + $0xc8] sm:$0xff]
  %v42 = vld [vmem:[%s1 + $0xd0] sm:$0xff]
  %v43 = vld [vmem:[%s1 + $0xd8] sm:$0xff]
  %v44 = vld [vmem:[%s1 + $0xe0] sm:$0xff]
  %v45 = vld [vmem:[%s1 + $0xe8] sm:$0xff]
  %v46 = vld [vmem:[%s1 + $0xf0] sm:$0xff]
  %v47 = vld [vmem:[%s1 + $0xf8] sm:$0xff]
  %v48 = vld [vmem:[%s1 + $0x100] sm:$0xff]
  %v49 = vld [vmem:[%s1 + $0x108] sm:$0xff]
  %v50 = vld [vmem:[%s1 + $0x110] sm:$0xff]
  %v51 = vld [vmem:[%s1 + $0x118] sm:$0xff]
  %v52 = vld [vmem:[%s1 + $0x120] sm:$0xff]
  %v53 = vld [vmem:[%s1 + $0x128] sm:$0xff]
  %v54 = vld [vmem:[%s1 + $0x130] sm:$0xff]
  %v55 = vld [vmem:[%s1 + $0x138] sm:$0xff]
  %v56 = vld [vmem:[%s1 + $0x140] sm:$0xff]
  %v57 = vld [vmem:[%s1 + $0x148] sm:$0xff]
  %v58 = vld [vmem:[%s1 + $0x150] sm:$0xff]
  %v59 = vld [vmem:[%s1 + $0x158] sm:$0xff]
  %v60 = vld [vmem:[%s1 + $0x160] sm:$0xff]
  %v61 = vld [vmem:[%s1 + $0x168] sm:$0xff]
  %v62 = vld [vmem:[%s1 + $0x170] sm:$0xff]
  %v63 = vld [vmem:[%s1 + $0x178] sm:$0xff]
  %v64 = vld [vmem:[%s1 + $0x180] sm:$0xff]
  %v65 = vld [vmem:[%s1 + $0x188] sm:$0xff]
  %v66 = vld [vmem:[%s1 + $0x190] sm:$0xff]
  %v67 = vld [vmem:[%s1 + $0x198] sm:$0xff]
  %v68 = vld [vmem:[%s1 + $0x1a0] sm:$0xff]
  %v69 = vld [vmem:[%s1 + $0x1a8] sm:$0xff]
  %v70 = vld [vmem:[%s1 + $0x1b0] sm:$0xff]
  %v71 = vld [vmem:[%s1 + $0x1b8] sm:$0xff]
  %v72 = vld [vmem:[%s1 + $0x1c0] sm:$0xff]
  %v73 = vld [vmem:[%s1 + $0x1c8] sm:$0xff]
  %v74 = vld [vmem:[%s1 + $0x1d0] sm:$0xff]
  %v75 = vld [vmem:[%s1 + $0x1d8] sm:$0xff]
  %v76 = vld [vmem:[%s1 + $0x1e0] sm:$0xff]
  %v77 = vld [vmem:[%s1 + $0x1e8] sm:$0xff]
  %v78 = vld [vmem:[%s1 + $0x1f0] sm:$0xff]
  %v79 = vld [vmem:[%s1 + $0x1f8] sm:$0xff]
  %v80 = vld [vmem:[%s2] sm:$0xf]
  %v82 = vlaneseq
  %v83 = vshrl.u32 %v82, 7
  %v84 = vsub.s32 0, %v83
  %v85 = vrot.slane %v80, %v84
  %v86 = vlaneseq
  %v87 = vshrl.u32 %v86, 7
  %v88 = vsub.s32 1, %v87
  %v89 = vrot.slane %v80, %v88
  %v90 = vlaneseq
  %v91 = vshrl.u32 %v90, 7
  %v92 = vsub.s32 2, %v91
  %v93 = vrot.slane %v80, %v92
  %v94 = vlaneseq
  %v95 = vshrl.u32 %v94, 7
  %v96 = vsub.s32 3, %v95
  %v97 = vrot.slane %v80, %v96
  %v104 = vunpack.c.l.b16 %v14
  %v105 = vunpack.c.h.b16 %v14
  %v106 = vunpack.c.l.b16 %v15
  %v107 = vunpack.c.h.b16 %v15
  %v108 = vpack.c.b16 %v106, %v104
  %v109 = vpack.c.b16 %v107, %v105
  %v176 = vunpack.c.l.b16 %v16
  %v177 = vunpack.c.h.b16 %v16
  %v178 = vunpack.c.l.b16 %v17
  %v179 = vunpack.c.h.b16 %v17
  %v180 = vunpack.c.l.b16 %v18
  %v181 = vunpack.c.h.b16 %v18
  %v182 = vunpack.c.l.b16 %v19
  %v183 = vunpack.c.h.b16 %v19
  %v184 = vunpack.c.l.b16 %v20
  %v185 = vunpack.c.h.b16 %v20
  %v186 = vunpack.c.l.b16 %v21
  %v187 = vunpack.c.h.b16 %v21
  %v188 = vunpack.c.l.b16 %v22
  %v189 = vunpack.c.h.b16 %v22
  %v190 = vunpack.c.l.b16 %v23
  %v191 = vunpack.c.h.b16 %v23
  %v192 = vunpack.c.l.b16 %v24
  %v193 = vunpack.c.h.b16 %v24
  %v194 = vunpack.c.l.b16 %v25
  %v195 = vunpack.c.h.b16 %v25
  %v196 = vunpack.c.l.b16 %v26
  %v197 = vunpack.c.h.b16 %v26
  %v198 = vunpack.c.l.b16 %v27
  %v199 = vunpack.c.h.b16 %v27
  %v200 = vunpack.c.l.b16 %v28
  %v201 = vunpack.c.h.b16 %v28
  %v202 = vunpack.c.l.b16 %v29
  %v203 = vunpack.c.h.b16 %v29
  %v204 = vunpack.c.l.b16 %v30
  %v205 = vunpack.c.h.b16 %v30
  %v206 = vunpack.c.l.b16 %v31
  %v207 = vunpack.c.h.b16 %v31
  %v208 = vunpack.c.l.b16 %v32
  %v209 = vunpack.c.h.b16 %v32
  %v210 = vunpack.c.l.b16 %v33
  %v211 = vunpack.c.h.b16 %v33
  %v212 = vunpack.c.l.b16 %v34
  %v213 = vunpack.c.h.b16 %v34
  %v214 = vunpack.c.l.b16 %v35
  %v215 = vunpack.c.h.b16 %v35
  %v216 = vunpack.c.l.b16 %v36
  %v217 = vunpack.c.h.b16 %v36
  %v218 = vunpack.c.l.b16 %v37
  %v219 = vunpack.c.h.b16 %v37
  %v220 = vunpack.c.l.b16 %v38
  %v221 = vunpack.c.h.b16 %v38
  %v222 = vunpack.c.l.b16 %v39
  %v223 = vunpack.c.h.b16 %v39
  %v224 = vunpack.c.l.b16 %v40
  %v225 = vunpack.c.h.b16 %v40
  %v226 = vunpack.c.l.b16 %v41
  %v227 = vunpack.c.h.b16 %v41
  %v228 = vunpack.c.l.b16 %v42
  %v229 = vunpack.c.h.b16 %v42
  %v230 = vunpack.c.l.b16 %v43
  %v231 = vunpack.c.h.b16 %v43
  %v232 = vunpack.c.l.b16 %v44
  %v233 = vunpack.c.h.b16 %v44
  %v234 = vunpack.c.l.b16 %v45
  %v235 = vunpack.c.h.b16 %v45
  %v236 = vunpack.c.l.b16 %v46
  %v237 = vunpack.c.h.b16 %v46
  %v238 = vunpack.c.l.b16 %v47
  %v239 = vunpack.c.h.b16 %v47
  %v240 = vunpack.c.l.b16 %v48
  %v241 = vunpack.c.h.b16 %v48
  %v242 = vunpack.c.l.b16 %v49
  %v243 = vunpack.c.h.b16 %v49
  %v244 = vunpack.c.l.b16 %v50
  %v245 = vunpack.c.h.b16 %v50
  %v246 = vunpack.c.l.b16 %v51
  %v247 = vunpack.c.h.b16 %v51
  %v248 = vunpack.c.l.b16 %v52
  %v249 = vunpack.c.h.b16 %v52
  %v250 = vunpack.c.l.b16 %v53
  %v251 = vunpack.c.h.b16 %v53
  %v252 = vunpack.c.l.b16 %v54
  %v253 = vunpack.c.h.b16 %v54
  %v254 = vunpack.c.l.b16 %v55
  %v255 = vunpack.c.h.b16 %v55
  %v256 = vunpack.c.l.b16 %v56
  %v257 = vunpack.c.h.b16 %v56
  %v258 = vunpack.c.l.b16 %v57
  %v259 = vunpack.c.h.b16 %v57
  %v260 = vunpack.c.l.b16 %v58
  %v261 = vunpack.c.h.b16 %v58
  %v262 = vunpack.c.l.b16 %v59
  %v263 = vunpack.c.h.b16 %v59
  %v264 = vunpack.c.l.b16 %v60
  %v265 = vunpack.c.h.b16 %v60
  %v266 = vunpack.c.l.b16 %v61
  %v267 = vunpack.c.h.b16 %v61
  %v268 = vunpack.c.l.b16 %v62
  %v269 = vunpack.c.h.b16 %v62
  %v270 = vunpack.c.l.b16 %v63
  %v271 = vunpack.c.h.b16 %v63
  %v272 = vunpack.c.l.b16 %v64
  %v273 = vunpack.c.h.b16 %v64
  %v274 = vunpack.c.l.b16 %v65
  %v275 = vunpack.c.h.b16 %v65
  %v276 = vunpack.c.l.b16 %v66
  %v277 = vunpack.c.h.b16 %v66
  %v278 = vunpack.c.l.b16 %v67
  %v279 = vunpack.c.h.b16 %v67
  %v280 = vunpack.c.l.b16 %v68
  %v281 = vunpack.c.h.b16 %v68
  %v282 = vunpack.c.l.b16 %v69
  %v283 = vunpack.c.h.b16 %v69
  %v284 = vunpack.c.l.b16 %v70
  %v285 = vunpack.c.h.b16 %v70
  %v286 = vunpack.c.l.b16 %v71
  %v287 = vunpack.c.h.b16 %v71
  %v288 = vunpack.c.l.b16 %v72
  %v289 = vunpack.c.h.b16 %v72
  %v290 = vunpack.c.l.b16 %v73
  %v291 = vunpack.c.h.b16 %v73
  %v292 = vunpack.c.l.b16 %v74
  %v293 = vunpack.c.h.b16 %v74
  %v294 = vunpack.c.l.b16 %v75
  %v295 = vunpack.c.h.b16 %v75
  %v296 = vunpack.c.l.b16 %v76
  %v297 = vunpack.c.h.b16 %v76
  %v298 = vunpack.c.l.b16 %v77
  %v299 = vunpack.c.h.b16 %v77
  %v300 = vunpack.c.l.b16 %v78
  %v301 = vunpack.c.h.b16 %v78
  %v302 = vunpack.c.l.b16 %v79
  %v303 = vunpack.c.h.b16 %v79
  %v304 = vpack.c.b16 %v180, %v176
  %v305 = vpack.c.b16 %v181, %v177
  %v306 = vpack.c.b16 %v182, %v178
  %v307 = vpack.c.b16 %v183, %v179
  %v308 = vpack.c.b16 %v188, %v184
  %v309 = vpack.c.b16 %v189, %v185
  %v310 = vpack.c.b16 %v190, %v186
  %v311 = vpack.c.b16 %v191, %v187
  %v312 = vpack.c.b16 %v196, %v192
  %v313 = vpack.c.b16 %v197, %v193
  %v314 = vpack.c.b16 %v198, %v194
  %v315 = vpack.c.b16 %v199, %v195
  %v316 = vpack.c.b16 %v204, %v200
  %v317 = vpack.c.b16 %v205, %v201
  %v318 = vpack.c.b16 %v206, %v202
  %v319 = vpack.c.b16 %v207, %v203
  %v320 = vpack.c.b16 %v212, %v208
  %v321 = vpack.c.b16 %v213, %v209
  %v322 = vpack.c.b16 %v214, %v210
  %v323 = vpack.c.b16 %v215, %v211
  %v324 = vpack.c.b16 %v220, %v216
  %v325 = vpack.c.b16 %v221, %v217
  %v326 = vpack.c.b16 %v222, %v218
  %v327 = vpack.c.b16 %v223, %v219
  %v328 = vpack.c.b16 %v228, %v224
  %v329 = vpack.c.b16 %v229, %v225
  %v330 = vpack.c.b16 %v230, %v226
  %v331 = vpack.c.b16 %v231, %v227
  %v332 = vpack.c.b16 %v236, %v232
  %v333 = vpack.c.b16 %v237, %v233
  %v334 = vpack.c.b16 %v238, %v234
  %v335 = vpack.c.b16 %v239, %v235
  %v336 = vpack.c.b16 %v244, %v240
  %v337 = vpack.c.b16 %v245, %v241
  %v338 = vpack.c.b16 %v246, %v242
  %v339 = vpack.c.b16 %v247, %v243
  %v340 = vpack.c.b16 %v252, %v248
  %v341 = vpack.c.b16 %v253, %v249
  %v342 = vpack.c.b16 %v254, %v250
  %v343 = vpack.c.b16 %v255, %v251
  %v344 = vpack.c.b16 %v260, %v256
  %v345 = vpack.c.b16 %v261, %v257
  %v346 = vpack.c.b16 %v262, %v258
  %v347 = vpack.c.b16 %v263, %v259
  %v348 = vpack.c.b16 %v268, %v264
  %v349 = vpack.c.b16 %v269, %v265
  %v350 = vpack.c.b16 %v270, %v266
  %v351 = vpack.c.b16 %v271, %v267
  %v352 = vpack.c.b16 %v276, %v272
  %v353 = vpack.c.b16 %v277, %v273
  %v354 = vpack.c.b16 %v278, %v274
  %v355 = vpack.c.b16 %v279, %v275
  %v356 = vpack.c.b16 %v284, %v280
  %v357 = vpack.c.b16 %v285, %v281
  %v358 = vpack.c.b16 %v286, %v282
  %v359 = vpack.c.b16 %v287, %v283
  %v360 = vpack.c.b16 %v292, %v288
  %v361 = vpack.c.b16 %v293, %v289
  %v362 = vpack.c.b16 %v294, %v290
  %v363 = vpack.c.b16 %v295, %v291
  %v364 = vpack.c.b16 %v300, %v296
  %v365 = vpack.c.b16 %v301, %v297
  %v366 = vpack.c.b16 %v302, %v298
  %v367 = vpack.c.b16 %v303, %v299
  %432 = vmatprep.subr.bf16.mxu0 %v305
  %433 = vmatpush1.bf16.msra.mxu0 %v304
  %434 = vmatprep.subr.bf16.mxu0 %v309
  %435 = vmatpush1.bf16.msra.mxu0 %v308
  %436 = vmatprep.subr.bf16.mxu0 %v313
  %437 = vmatpush1.bf16.msra.mxu0 %v312
  %438 = vmatprep.subr.bf16.mxu0 %v317
  %439 = vmatpush1.bf16.msra.mxu0 %v316
  %440 = vmatprep.subr.bf16.mxu0 %v321
  %441 = vmatpush1.bf16.msra.mxu0 %v320
  %442 = vmatprep.subr.bf16.mxu0 %v325
  %443 = vmatpush1.bf16.msra.mxu0 %v324
  %444 = vmatprep.subr.bf16.mxu0 %v329
  %445 = vmatpush1.bf16.msra.mxu0 %v328
  %446 = vmatprep.subr.bf16.mxu0 %v333
  %447 = vmatpush1.bf16.msra.mxu0 %v332
  %448 = vmatprep.subr.bf16.mxu0 %v337
  %449 = vmatpush1.bf16.msra.mxu0 %v336
  %450 = vmatprep.subr.bf16.mxu0 %v341
  %451 = vmatpush1.bf16.msra.mxu0 %v340
  %452 = vmatprep.subr.bf16.mxu0 %v345
  %453 = vmatpush1.bf16.msra.mxu0 %v344
  %454 = vmatprep.subr.bf16.mxu0 %v349
  %455 = vmatpush1.bf16.msra.mxu0 %v348
  %456 = vmatprep.subr.bf16.mxu0 %v353
  %457 = vmatpush1.bf16.msra.mxu0 %v352
  %458 = vmatprep.subr.bf16.mxu0 %v357
  %459 = vmatpush1.bf16.msra.mxu0 %v356
  %460 = vmatprep.subr.bf16.mxu0 %v361
  %461 = vmatpush1.bf16.msra.mxu0 %v360
  %462 = vmatprep.subr.bf16.mxu0 %v365
  %463 = vmatpush1.bf16.msra.mxu0 %v364
  %464 = vmatprep.mubr.bf16.mxu0 %v109
  %465 = vmatmul.mubr.bf16.gmra.mrb[0].mxu0 %v108
  %v466 = vpop.f32.mrb[0].mxu0
  %v467 = vadd.f32 %v85, %v466
  %v468 = vpop.f32.mrb[0].mxu0
  %v469 = vadd.f32 %v89, %v468
  %v470 = vpop.f32.mrb[0].mxu0
  %v471 = vadd.f32 %v85, %v470
  %v472 = vpop.f32.mrb[0].mxu0
  %v473 = vadd.f32 %v89, %v472
  %474 = vdwg.mxu0
  %475 = vmatprep.subr.bf16.mxu0 %v307
  %476 = vmatpush1.bf16.msra.mxu0 %v306
  %477 = vmatprep.subr.bf16.mxu0 %v311
  %478 = vmatpush1.bf16.msra.mxu0 %v310
  %479 = vmatprep.subr.bf16.mxu0 %v315
  %480 = vmatpush1.bf16.msra.mxu0 %v314
  %481 = vmatprep.subr.bf16.mxu0 %v319
  %482 = vmatpush1.bf16.msra.mxu0 %v318
  %483 = vmatprep.subr.bf16.mxu0 %v323
  %484 = vmatpush1.bf16.msra.mxu0 %v322
  %485 = vmatprep.subr.bf16.mxu0 %v327
  %486 = vmatpush1.bf16.msra.mxu0 %v326
  %487 = vmatprep.subr.bf16.mxu0 %v331
  %488 = vmatpush1.bf16.msra.mxu0 %v330
  %489 = vmatprep.subr.bf16.mxu0 %v335
  %490 = vmatpush1.bf16.msra.mxu0 %v334
  %491 = vmatprep.subr.bf16.mxu0 %v339
  %492 = vmatpush1.bf16.msra.mxu0 %v338
  %493 = vmatprep.subr.bf16.mxu0 %v343
  %494 = vmatpush1.bf16.msra.mxu0 %v342
  %495 = vmatprep.subr.bf16.mxu0 %v347
  %496 = vmatpush1.bf16.msra.mxu0 %v346
  %497 = vmatprep.subr.bf16.mxu0 %v351
  %498 = vmatpush1.bf16.msra.mxu0 %v350
  %499 = vmatprep.subr.bf16.mxu0 %v355
  %500 = vmatpush1.bf16.msra.mxu0 %v354
  %501 = vmatprep.subr.bf16.mxu0 %v359
  %502 = vmatpush1.bf16.msra.mxu0 %v358
  %503 = vmatprep.subr.bf16.mxu0 %v363
  %504 = vmatpush1.bf16.msra.mxu0 %v362
  %505 = vmatprep.subr.bf16.mxu0 %v367
  %506 = vmatpush1.bf16.msra.mxu0 %v366
  %507 = vmatprep.mubr.bf16.mxu0 %v109
  %508 = vmatmul.mubr.bf16.gmra.mrb[0].mxu0 %v108
  %v509 = vpop.f32.mrb[0].mxu0
  %v510 = vadd.f32 %v93, %v509
  %v511 = vpop.f32.mrb[0].mxu0
  %v512 = vadd.f32 %v97, %v511
  %v513 = vpop.f32.mrb[0].mxu0
  %v514 = vadd.f32 %v93, %v513
  %v515 = vpop.f32.mrb[0].mxu0
  %v516 = vadd.f32 %v97, %v515
  %517 = vdwg.mxu0
  %vm518 = vcmp.gt.f32.partialorder %v467, 0.0
  %vm519 = vcmp.gt.f32.partialorder %v469, 0.0
  %vm520 = vcmp.gt.f32.partialorder %v510, 0.0
  %vm521 = vcmp.gt.f32.partialorder %v512, 0.0
  %vm522 = vcmp.gt.f32.partialorder %v471, 0.0
  %vm523 = vcmp.gt.f32.partialorder %v473, 0.0
  %vm524 = vcmp.gt.f32.partialorder %v514, 0.0
  %vm525 = vcmp.gt.f32.partialorder %v516, 0.0
  %v526 = vmul.f32 %v467, 0.01
  %v527 = vmul.f32 %v469, 0.01
  %v528 = vmul.f32 %v510, 0.01
  %v529 = vmul.f32 %v512, 0.01
  %v530 = vmul.f32 %v471, 0.01
  %v531 = vmul.f32 %v473, 0.01
  %v532 = vmul.f32 %v514, 0.01
  %v533 = vmul.f32 %v516, 0.01
  %v534 = vsel %vm518, %v467, %v526
  %v535 = vsel %vm519, %v469, %v527
  %v536 = vsel %vm520, %v510, %v528
  %v537 = vsel %vm521, %v512, %v529
  %v538 = vsel %vm522, %v471, %v530
  %v539 = vsel %vm523, %v473, %v531
  %v540 = vsel %vm524, %v514, %v532
  %v541 = vsel %vm525, %v516, %v533
  %v542 = vpack.c.bf16 %v538, %v534
  %v543 = vpack.c.bf16 %v539, %v535
  %v544 = vpack.c.bf16 %v540, %v536
  %v545 = vpack.c.bf16 %v541, %v537
  %v550 = vunpack.c.l.b16 %v542
  %v551 = vunpack.c.l.b16 %v543
  %v552 = vunpack.c.l.b16 %v544
  %v553 = vunpack.c.l.b16 %v545
  %v554 = vunpack.c.h.b16 %v542
  %v555 = vunpack.c.h.b16 %v543
  %v556 = vunpack.c.h.b16 %v544
  %v557 = vunpack.c.h.b16 %v545
  %v558 = vpack.c.b16 %v551, %v550
  %v559 = vpack.c.b16 %v553, %v552
  %v560 = vpack.c.b16 %v555, %v554
  %v561 = vpack.c.b16 %v557, %v556
  %566 = vst [vmem:[%s3] sm:$0xff] %v558
  %567 = vst [vmem:[%s3 + $0x8] sm:$0xff] %v559
  %568 = vst [vmem:[%s3 + $0x10] sm:$0xff] %v560
  %569 = vst [vmem:[%s3 + $0x18] sm:$0xff] %v561
  // Predicated region
  $region14: #{_lambda_.8} parent=0 // pred_check
    _
  $region15: #{_lambda_.8} parent=0 // pred_check_branch
    %571 = sbr.rel (0) target = $region17
  $region16: #{_lambda_.8} parent=0 // pred_region
    _
  $region17: #{_lambda_.8} parent=0 // pred_fallthru
    _
  // Predicated region
  $region18: #{_lambda_.8} parent=0 // pred_check
    _
  $region19: #{_lambda_.8} parent=0 // pred_check_branch
    %573 = sbr.rel (0) target = $region21
  $region20: #{_lambda_.8} parent=0 // pred_region
    _
  $region21: #{_lambda_.8} parent=0 // pred_fallthru
    _

// kernel: _lambda_.5
$region0: #{_lambda_.5}
  #allocation0 [shape = 'u32[]', space=smem, size = 0x4, offset = 0x4, fixed_abs, tag = 'smem constant byte address 0x4 - core index']
  #allocation1 [shape = 'u32[144,128]{1,0:T(1,128)}', space=vmem, size = 0x12000, scoped, tag = 'internal scratch']
  %s0 = inlined_call_operand.vmem [shape: f32[16,16], index: 0, kind: input, shape index: {}]
  %s1 = inlined_call_operand.hbm [shape: f32[16,64], index: 1, kind: input, shape index: {}]
  %s2 = inlined_call_operand.hbm [shape: f32[16,64], index: 2, kind: input, shape index: {}]
  %s3 = inlined_call_operand.hbm [shape: f32[1,64], index: 3, kind: input, shape index: {}]
  %s4 = inlined_call_operand.hbm [shape: f32[48,128], index: 4, kind: input, shape index: {}]
  %s5 = inlined_call_operand.hbm [shape: f32[1,128], index: 5, kind: input, shape index: {}]
  %s6 = inlined_call_operand.vmem [shape: bf16[32,2048], index: 6, kind: input, shape index: {}]
  %s7 = inlined_call_operand.hbm [shape: f32[1,2048], index: 7, kind: input, shape index: {}]
  %s8 = inlined_call_operand.vmem [shape: bf16[16,2048], index: 8, kind: output, shape index: {}]
  %s9 = sld [smem:[#allocation0]]
  $region66: #{_lambda_.5} parent=0
    _
  %s11 = ssub.s32 1, %s9
  %s12 = scalar_select 0, %s11, %s9
  $region1: #{_lambda_.5} parent=0
    #allocation2 [shape = 'u8[8192]{0}', space=vmem, size = 0x2000, scoped, tag = 'input window, operand 1, single buffered']
    #allocation3 [shape = 's32[1]{0}', space=sflag, size = 0x4, scoped, tag = 'scoped memory for _lambda_.5']
    #allocation4 [shape = 'u8[8192]{0}', space=vmem, size = 0x2000, scoped, tag = 'input window, operand 2, single buffered']
    #allocation5 [shape = 's32[1]{0}', space=sflag, size = 0x4, scoped, tag = 'scoped memory for _lambda_.5']
    #allocation6 [shape = 'u8[512]{0}', space=vmem, size = 0x400, scoped, tag = 'input window, operand 3, single buffered']
    #allocation7 [shape = 'u8[24576]{0}', space=vmem, size = 0x6000, scoped, tag = 'input window, operand 4, single buffered']
    #allocation8 [shape = 's32[1]{0}', space=sflag, size = 0x4, scoped, tag = 'scoped memory for _lambda_.5']
    #allocation9 [shape = 'u8[512]{0}', space=vmem, size = 0x400, scoped, tag = 'input window, operand 5, single buffered']
    #allocation10 [shape = 'u8[8192]{0}', space=vmem, size = 0x2000, scoped, tag = 'input window, operand 7, single buffered']
    #allocation11 [shape = 's32[1]{0}', space=sflag, size = 0x4, scoped, tag = 'scoped memory for _lambda_.5']
    %13 = vsyncpa [#allocation3], 0
    %14 = vsyncpa [#allocation5], 0
    %15 = vsyncpa [#allocation8], 0
    %16 = vsyncpa [#allocation11], 0
    // Predicated region
    $region2: #{_lambda_.5} parent=1 // pred_check
      _
    $region3: #{_lambda_.5} parent=1 // pred_check_branch
      %18 = sbr.rel (0) target = $region5
    $region4: #{_lambda_.5} parent=1 // pred_region
      _
    $region5: #{_lambda_.5} parent=1 // pred_fallthru
      _
    // Predicated region
    $region6: #{_lambda_.5} parent=1 // pred_check
      _
    $region7: #{_lambda_.5} parent=1 // pred_check_branch
      %20 = sbr.rel (0) target = $region9
    $region8: #{_lambda_.5} parent=1 // pred_region
      %s22 = ssub.s32 256, 256
      %23 = vsyncadd [#allocation3], %s22
      %s24 = sshll.u32 [#allocation2], 4
      %s25 = int_to_ptr.vmem [resolvable:$true] %s24
      %30 = dma.hbm_to_vmem [thread:$0]  %s1, 256, %s25, [#allocation3], 128, 128, 8
    $region9: #{_lambda_.5} parent=1 // pred_fallthru
      _
    // Predicated region
    $region10: #{_lambda_.5} parent=1 // pred_check
      _
    $region11: #{_lambda_.5} parent=1 // pred_check_branch
      %32 = sbr.rel (0) target = $region13
    $region12: #{_lambda_.5} parent=1 // pred_region
      %s34 = ssub.s32 256, 256
      %35 = vsyncadd [#allocation5], %s34
      %s36 = sshll.u32 [#allocation4], 4
      %s37 = int_to_ptr.vmem [resolvable:$true] %s36
      %42 = dma.hbm_to_vmem [thread:$0]  %s2, 256, %s37, [#allocation5], 128, 128, 8
    $region13: #{_lambda_.5} parent=1 // pred_fallthru
      _
    // Predicated region
    $region14: #{_lambda_.5} parent=1 // pred_check
      _
    $region15: #{_lambda_.5} parent=1 // pred_check_branch
      %44 = sbr.rel (0) target = $region17
    $region16: #{_lambda_.5} parent=1 // pred_region
      %s46 = ssub.s32 16, 16
      %47 = vsyncadd [#allocation5], %s46
      %s49 = sshll.u32 [#allocation6], 4
      %s50 = int_to_ptr.vmem [resolvable:$true] %s49
      %52 = dma.hbm_to_vmem [thread:$0]  %s3, 16, %s50, [#allocation5]
    $region17: #{_lambda_.5} parent=1 // pred_fallthru
      _
    // Predicated region
    $region18: #{_lambda_.5} parent=1 // pred_check
      _
    $region19: #{_lambda_.5} parent=1 // pred_check_branch
      %54 = sbr.rel (0) target = $region21
    $region20: #{_lambda_.5} parent=1 // pred_region
      %s56 = ssub.s32 768, 768
      %57 = vsyncadd [#allocation8], %s56
      %s58 = sshll.u32 [#allocation7], 4
      %s59 = int_to_ptr.vmem [resolvable:$true] %s58
      %64 = dma.hbm_to_vmem [thread:$0]  %s4, 768, %s59, [#allocation8], 128, 128, 8
    $region21: #{_lambda_.5} parent=1 // pred_fallthru
      _
    // Predicated region
    $region22: #{_lambda_.5} parent=1 // pred_check
      _
    $region23: #{_lambda_.5} parent=1 // pred_check_branch
      %66 = sbr.rel (0) target = $region25
    $region24: #{_lambda_.5} parent=1 // pred_region
      %s68 = ssub.s32 16, 16
      %69 = vsyncadd [#allocation8], %s68
      %s71 = sshll.u32 [#allocation9], 4
      %s72 = int_to_ptr.vmem [resolvable:$true] %s71
      %74 = dma.hbm_to_vmem [thread:$0]  %s5, 16, %s72, [#allocation8]
    $region25: #{_lambda_.5} parent=1 // pred_fallthru
      _
    // Predicated region
    $region26: #{_lambda_.5} parent=1 // pred_check
      _
    $region27: #{_lambda_.5} parent=1 // pred_check_branch
      %76 = sbr.rel (0) target = $region29
    $region28: #{_lambda_.5} parent=1 // pred_region
      _
    $region29: #{_lambda_.5} parent=1 // pred_fallthru
      _
    // Predicated region
    $region30: #{_lambda_.5} parent=1 // pred_check
      _
    $region31: #{_lambda_.5} parent=1 // pred_check_branch
      %78 = sbr.rel (0) target = $region33
    $region32: #{_lambda_.5} parent=1 // pred_region
      %s80 = ssub.s32 256, 256
      %81 = vsyncadd [#allocation11], %s80
      %s83 = sshll.u32 [#allocation10], 4
      %s84 = int_to_ptr.vmem [resolvable:$true] %s83
      %86 = dma.hbm_to_vmem [thread:$0]  %s7, 256, %s84, [#allocation11]
    $region33: #{_lambda_.5} parent=1 // pred_fallthru
      _
    // Predicated region
    $region34: #{_lambda_.5} parent=1 // pred_check
      _
    $region35: #{_lambda_.5} parent=1 // pred_check_branch
      %88 = sbr.rel (0) target = $region37
    $region36: #{_lambda_.5} parent=1 // pred_region
      %89 = dma.done [#allocation3], 256
    $region37: #{_lambda_.5} parent=1 // pred_fallthru
      _
    // Predicated region
    $region38: #{_lambda_.5} parent=1 // pred_check
      _
    $region39: #{_lambda_.5} parent=1 // pred_check_branch
      %91 = sbr.rel (0) target = $region41
    $region40: #{_lambda_.5} parent=1 // pred_region
      %92 = dma.done [#allocation5], 256
    $region41: #{_lambda_.5} parent=1 // pred_fallthru
      _
    // Predicated region
    $region42: #{_lambda_.5} parent=1 // pred_check
      _
    $region43: #{_lambda_.5} parent=1 // pred_check_branch
      %94 = sbr.rel (0) target = $region45
    $region44: #{_lambda_.5} parent=1 // pred_region
      %95 = dma.done [#allocation5], 16
    $region45: #{_lambda_.5} parent=1 // pred_fallthru
      _
    // Predicated region
    $region46: #{_lambda_.5} parent=1 // pred_check
      _
    $region47: #{_lambda_.5} parent=1 // pred_check_branch
      %97 = sbr.rel (0) target = $region49
    $region48: #{_lambda_.5} parent=1 // pred_region
      %98 = dma.done [#allocation8], 768
    $region49: #{_lambda_.5} parent=1 // pred_fallthru
      _
    // Predicated region
    $region50: #{_lambda_.5} parent=1 // pred_check
      _
    $region51: #{_lambda_.5} parent=1 // pred_check_branch
      %100 = sbr.rel (0) target = $region53
    $region52: #{_lambda_.5} parent=1 // pred_region
      %101 = dma.done [#allocation8], 16
    $region53: #{_lambda_.5} parent=1 // pred_fallthru
      _
    // Predicated region
    $region54: #{_lambda_.5} parent=1 // pred_check
      _
    $region55: #{_lambda_.5} parent=1 // pred_check_branch
      %103 = sbr.rel (0) target = $region57
    $region56: #{_lambda_.5} parent=1 // pred_region
      %104 = dma.done [#allocation11], 256
    $region57: #{_lambda_.5} parent=1 // pred_fallthru
      _
    %v106 = vld [vmem:[%s0] sm:$0xff]
    %v107 = vld [vmem:[%s0 + $0x8] sm:$0xff]
    %v108 = vld [vmem:[#allocation2] sm:$0xff]
    %v109 = vld [vmem:[#allocation2 + $0x8] sm:$0xff]
    %v110 = vld [vmem:[#allocation6] sm:$0x1]
    %v112 = vlaneseq
    %v113 = vshrl.u32 %v112, 7
    %v114 = vsub.s32 0, %v113
    %v115 = vrot.slane %v110, %v114
    %vm117 = vcmask 130048
    %v119 = vsel %vm117, %v106, 0
    %v122 = vsel %vm117, %v107, 0
    %124 = vmatprep.subr.mxu0 0.0
    %125 = vmatpush1.msra.mxu0 %v108
    %126 = vmatprep.subr.mxu0 0.0
    %127 = vmatpush1.msra.mxu0 %v109
    %128 = vmatprep.subr.mxu0 0.0
    %129 = vmatpush1.msra.mxu0 0.0
    %130 = vmatprep.subr.mxu0 0.0
    %131 = vmatpush1.msra.mxu0 0.0
    %132 = vmatprep.subr.mxu0 0.0
    %133 = vmatpush1.msra.mxu0 0.0
    %134 = vmatprep.subr.mxu0 0.0
    %135 = vmatpush1.msra.mxu0 0.0
    %136 = vmatprep.subr.mxu0 0.0
    %137 = vmatpush1.msra.mxu0 0.0
    %138 = vmatprep.subr.mxu0 0.0
    %139 = vmatpush1.msra.mxu0 0.0
    %140 = vmatprep.subr.mxu0 0.0
    %141 = vmatpush1.msra.mxu0 0.0
    %142 = vmatprep.subr.mxu0 0.0
    %143 = vmatpush1.msra.mxu0 0.0
    %144 = vmatprep.subr.mxu0 0.0
    %145 = vmatpush1.msra.mxu0 0.0
    %146 = vmatprep.subr.mxu0 0.0
    %147 = vmatpush1.msra.mxu0 0.0
    %148 = vmatprep.subr.mxu0 0.0
    %149 = vmatpush1.msra.mxu0 0.0
    %150 = vmatprep.subr.mxu0 0.0
    %151 = vmatpush1.msra.mxu0 0.0
    %152 = vmatprep.subr.mxu0 0.0
    %153 = vmatpush1.msra.mxu0 0.0
    %154 = vmatprep.subr.mxu0 0.0
    %155 = vmatpush1.msra.mxu0 0.0
    %156 = vmatprep.subr.mxu0 0.0
    %157 = vmatpush1.msra.mxu0 0.0
    %158 = vmatprep.subr.mxu0 0.0
    %159 = vmatpush1.msra.mxu0 0.0
    %160 = vmatprep.subr.mxu0 0.0
    %161 = vmatpush1.msra.mxu0 0.0
    %162 = vmatprep.subr.mxu0 0.0
    %163 = vmatpush1.msra.mxu0 0.0
    %164 = vmatprep.subr.mxu0 0.0
    %165 = vmatpush1.msra.mxu0 0.0
    %166 = vmatprep.subr.mxu0 0.0
    %167 = vmatpush1.msra.mxu0 0.0
    %168 = vmatprep.subr.mxu0 0.0
    %169 = vmatpush1.msra.mxu0 0.0
    %170 = vmatprep.subr.mxu0 0.0
    %171 = vmatpush1.msra.mxu0 0.0
    %172 = vmatprep.subr.mxu0 0.0
    %173 = vmatpush1.msra.mxu0 0.0
    %174 = vmatprep.subr.mxu0 0.0
    %175 = vmatpush1.msra.mxu0 0.0
    %176 = vmatprep.subr.mxu0 0.0
    %177 = vmatpush1.msra.mxu0 0.0
    %178 = vmatprep.subr.mxu0 0.0
    %179 = vmatpush1.msra.mxu0 0.0
    %180 = vmatprep.subr.mxu0 0.0
    %181 = vmatpush1.msra.mxu0 0.0
    %182 = vmatprep.subr.mxu0 0.0
    %183 = vmatpush1.msra.mxu0 0.0
    %184 = vmatprep.subr.mxu0 0.0
    %185 = vmatpush1.msra.mxu0 0.0
    %186 = vmatprep.subr.mxu0 0.0
    %187 = vmatpush1.msra.mxu0 0.0
    %188 = vmatprep.mubr.f32.mxu0 0.0
    %189 = vmatmul.mubr.f32.gmra.mrb[0].mxu0 %v119
    %v190 = vpop.f32.mrb[0].mxu0
    %v191 = vadd.f32 %v115, %v190
    %v192 = vpop.f32.mrb[0].mxu0
    %193 = vmatprep.mubr.f32.mxu0 0.0
    %194 = vmatmul.mubr.f32.gmra.mrb[0].mxu0 %v122
    %v195 = vpop.f32.mrb[0].mxu0
    %v196 = vadd.f32 %v115, %v195
    %v197 = vpop.f32.mrb[0].mxu0
    %198 = vdwg.mxu0
    %v199 = vld [vmem:[#allocation4] sm:$0xff]
    %v200 = vld [vmem:[#allocation4 + $0x8] sm:$0xff]
    %v201 = vld [vmem:[#allocation7] sm:$0xff]
    %v202 = vld [vmem:[#allocation7 + $0x8] sm:$0xff]
    %v203 = vld [vmem:[#allocation7 + $0x10] sm:$0xff]
    %v204 = vld [vmem:[#allocation7 + $0x18] sm:$0xff]
    %v205 = vld [vmem:[#allocation7 + $0x20] sm:$0xff]
    %v206 = vld [vmem:[#allocation7 + $0x28] sm:$0xff]
    %v207 = vld [vmem:[#allocation9] sm:$0x1]
    %v209 = vsel %vm117, 0.0, 0
    %211 = vmatprep.subr.mxu0 0.0
    %212 = vmatpush1.msra.mxu0 %v199
    %213 = vmatprep.subr.mxu0 0.0
    %214 = vmatpush1.msra.mxu0 %v200
    %215 = vmatprep.subr.mxu0 0.0
    %216 = vmatpush1.msra.mxu0 0.0
    %217 = vmatprep.subr.mxu0 0.0
    %218 = vmatpush1.msra.mxu0 0.0
    %219 = vmatprep.subr.mxu0 0.0
    %220 = vmatpush1.msra.mxu0 0.0
    %221 = vmatprep.subr.mxu0 0.0
    %222 = vmatpush1.msra.mxu0 0.0
    %223 = vmatprep.subr.mxu0 0.0
    %224 = vmatpush1.msra.mxu0 0.0
    %225 = vmatprep.subr.mxu0 0.0
    %226 = vmatpush1.msra.mxu0 0.0
    %227 = vmatprep.subr.mxu0 0.0
    %228 = vmatpush1.msra.mxu0 0.0
    %229 = vmatprep.subr.mxu0 0.0
    %230 = vmatpush1.msra.mxu0 0.0
    %231 = vmatprep.subr.mxu0 0.0
    %232 = vmatpush1.msra.mxu0 0.0
    %233 = vmatprep.subr.mxu0 0.0
    %234 = vmatpush1.msra.mxu0 0.0
    %235 = vmatprep.subr.mxu0 0.0
    %236 = vmatpush1.msra.mxu0 0.0
    %237 = vmatprep.subr.mxu0 0.0
    %238 = vmatpush1.msra.mxu0 0.0
    %239 = vmatprep.subr.mxu0 0.0
    %240 = vmatpush1.msra.mxu0 0.0
    %241 = vmatprep.subr.mxu0 0.0
    %242 = vmatpush1.msra.mxu0 0.0
    %243 = vmatprep.subr.mxu0 0.0
    %244 = vmatpush1.msra.mxu0 0.0
    %245 = vmatprep.subr.mxu0 0.0
    %246 = vmatpush1.msra.mxu0 0.0
    %247 = vmatprep.subr.mxu0 0.0
    %248 = vmatpush1.msra.mxu0 0.0
    %249 = vmatprep.subr.mxu0 0.0
    %250 = vmatpush1.msra.mxu0 0.0
    %251 = vmatprep.subr.mxu0 0.0
    %252 = vmatpush1.msra.mxu0 0.0
    %253 = vmatprep.subr.mxu0 0.0
    %254 = vmatpush1.msra.mxu0 0.0
    %255 = vmatprep.subr.mxu0 0.0
    %256 = vmatpush1.msra.mxu0 0.0
    %257 = vmatprep.subr.mxu0 0.0
    %258 = vmatpush1.msra.mxu0 0.0
    %259 = vmatprep.subr.mxu0 0.0
    %260 = vmatpush1.msra.mxu0 0.0
    %261 = vmatprep.subr.mxu0 0.0
    %262 = vmatpush1.msra.mxu0 0.0
    %263 = vmatprep.subr.mxu0 0.0
    %264 = vmatpush1.msra.mxu0 0.0
    %265 = vmatprep.subr.mxu0 0.0
    %266 = vmatpush1.msra.mxu0 0.0
    %267 = vmatprep.subr.mxu0 0.0
    %268 = vmatpush1.msra.mxu0 0.0
    %269 = vmatprep.subr.mxu0 0.0
    %270 = vmatpush1.msra.mxu0 0.0
    %271 = vmatprep.subr.mxu0 0.0
    %272 = vmatpush1.msra.mxu0 0.0
    %273 = vmatprep.subr.mxu0 0.0
    %274 = vmatpush1.msra.mxu0 0.0
    %275 = vmatprep.mubr.f32.mxu0 0.0
    %276 = vmatmul.mubr.f32.gmra.mrb[0].mxu0 %v209
    %v277 = vpop.f32.mrb[0].mxu0
    %v278 = vadd.f32 0.0, %v277
    %v279 = vpop.f32.mrb[0].mxu0
    %280 = vdwg.mxu0
    %v281 = vadd.f32 %v191, %v278
    %v282 = vxor.u32 %v281, 2147483648
    %v283 = vmul.f32 %v282, 1.442695
    %v284 = vpow.pop %v283
    %v285 = vadd.f32 %v284, 1.0
    %v286 = vrcp.pop %v285
    %v287 = vmul.f32 1.0, %v286
    %v288 = vtanh.pop %v281
    %v289 = vmul.f32 %v287, 0.0
    %291 = vrot.lane.b32.xlu0 %v288, 96
    %v292 = vpop.permute.xlu0 %291
    %v294 = vmul.f32 %v287, %v292
    %296 = vrot.lane.b32.xlu0 %v294, 16
    %v297 = vpop.permute.xlu0 %296
    %v299 = vadd.f32 %v289, %v297
    %v300 = vtanh.pop %v299
    %302 = vrot.lane.b32.xlu0 %v300, 32
    %v303 = vpop.permute.xlu0 %302
    %v305 = vmul.f32 %v287, %v303
    %307 = vrot.lane.b32.xlu0 %v305, 80
    %v308 = vpop.permute.xlu0 %307
    %v310 = vsel %vm117, %v308, 0.0
    %v312 = vlaneseq
    %v313 = vshrl.u32 %v312, 7
    %v314 = vsub.s32 0, %v313
    %v315 = vrot.slane %v207, %v314
    %vm317 = vcmask 392192
    %v319 = vsel %vm317, %v310, 0
    %321 = vmatprep.subr.mxu0 0.0
    %322 = vmatpush1.msra.mxu0 %v201
    %323 = vmatprep.subr.mxu0 0.0
    %324 = vmatpush1.msra.mxu0 %v202
    %325 = vmatprep.subr.mxu0 0.0
    %326 = vmatpush1.msra.mxu0 %v203
    %327 = vmatprep.subr.mxu0 0.0
    %328 = vmatpush1.msra.mxu0 %v204
    %329 = vmatprep.subr.mxu0 0.0
    %330 = vmatpush1.msra.mxu0 %v205
    %331 = vmatprep.subr.mxu0 0.0
    %332 = vmatpush1.msra.mxu0 %v206
    %333 = vmatprep.subr.mxu0 0.0
    %334 = vmatpush1.msra.mxu0 0.0
    %335 = vmatprep.subr.mxu0 0.0
    %336 = vmatpush1.msra.mxu0 0.0
    %337 = vmatprep.subr.mxu0 0.0
    %338 = vmatpush1.msra.mxu0 0.0
    %339 = vmatprep.subr.mxu0 0.0
    %340 = vmatpush1.msra.mxu0 0.0
    %341 = vmatprep.subr.mxu0 0.0
    %342 = vmatpush1.msra.mxu0 0.0
    %343 = vmatprep.subr.mxu0 0.0
    %344 = vmatpush1.msra.mxu0 0.0
    %345 = vmatprep.subr.mxu0 0.0
    %346 = vmatpush1.msra.mxu0 0.0
    %347 = vmatprep.subr.mxu0 0.0
    %348 = vmatpush1.msra.mxu0 0.0
    %349 = vmatprep.subr.mxu0 0.0
    %350 = vmatpush1.msra.mxu0 0.0
    %351 = vmatprep.subr.mxu0 0.0
    %352 = vmatpush1.msra.mxu0 0.0
    %353 = vmatprep.subr.mxu0 0.0
    %354 = vmatpush1.msra.mxu0 0.0
    %355 = vmatprep.subr.mxu0 0.0
    %356 = vmatpush1.msra.mxu0 0.0
    %357 = vmatprep.subr.mxu0 0.0
    %358 = vmatpush1.msra.mxu0 0.0
    %359 = vmatprep.subr.mxu0 0.0
    %360 = vmatpush1.msra.mxu0 0.0
    %361 = vmatprep.subr.mxu0 0.0
    %362 = vmatpush1.msra.mxu0 0.0
    %363 = vmatprep.subr.mxu0 0.0
    %364 = vmatpush1.msra.mxu0 0.0
    %365 = vmatprep.subr.mxu0 0.0
    %366 = vmatpush1.msra.mxu0 0.0
    %367 = vmatprep.subr.mxu0 0.0
    %368 = vmatpush1.msra.mxu0 0.0
    %369 = vmatprep.subr.mxu0 0.0
    %370 = vmatpush1.msra.mxu0 0.0
    %371 = vmatprep.subr.mxu0 0.0
    %372 = vmatpush1.msra.mxu0 0.0
    %373 = vmatprep.subr.mxu0 0.0
    %374 = vmatpush1.msra.mxu0 0.0
    %375 = vmatprep.subr.mxu0 0.0
    %376 = vmatpush1.msra.mxu0 0.0
    %377 = vmatprep.subr.mxu0 0.0
    %378 = vmatpush1.msra.mxu0 0.0
    %379 = vmatprep.subr.mxu0 0.0
    %380 = vmatpush1.msra.mxu0 0.0
    %381 = vmatprep.subr.mxu0 0.0
    %382 = vmatpush1.msra.mxu0 0.0
    %383 = vmatprep.subr.mxu0 0.0
    %384 = vmatpush1.msra.mxu0 0.0
    %385 = vmatprep.mubr.f32.mxu0 0.0
    %386 = vmatmul.mubr.f32.gmra.mrb[0].mxu0 %v319
    %v387 = vpop.f32.mrb[0].mxu0
    %v388 = vadd.f32 %v315, %v387
    %v389 = vpop.f32.mrb[0].mxu0
    %390 = vdwg.mxu0
    %v391 = vxor.u32 %v388, 2147483648
    %v392 = vmul.f32 %v391, 1.442695
    %v393 = vpow.pop %v392
    %v394 = vadd.f32 %v393, 1.0
    %v395 = vrcp.pop %v394
    %v396 = vmul.f32 1.0, %v395
    %v397 = vtanh.pop %v388
    %v398 = vmul.f32 %v396, 0.0
    %400 = vrot.lane.b32.xlu0 %v397, 64
    %v401 = vpop.permute.xlu0 %400
    %v403 = vmul.f32 %v396, %v401
    %405 = vrot.lane.b32.xlu0 %v403, 32
    %v406 = vpop.permute.xlu0 %405
    %v408 = vadd.f32 %v398, %v406
    %v409 = vtanh.pop %v408
    %411 = vrot.lane.b32.xlu0 %v409, 64
    %v412 = vpop.permute.xlu0 %411
    %v414 = vmul.f32 %v396, %v412
    %v415 = vsel %vm117, %v308, 0
    %417 = vmatprep.subr.mxu0 0.0
    %418 = vmatpush1.msra.mxu0 %v199
    %419 = vmatprep.subr.mxu0 0.0
    %420 = vmatpush1.msra.mxu0 %v200
    %421 = vmatprep.subr.mxu0 0.0
    %422 = vmatpush1.msra.mxu0 0.0
    %423 = vmatprep.subr.mxu0 0.0
    %424 = vmatpush1.msra.mxu0 0.0
    %425 = vmatprep.subr.mxu0 0.0
    %426 = vmatpush1.msra.mxu0 0.0
    %427 = vmatprep.subr.mxu0 0.0
    %428 = vmatpush1.msra.mxu0 0.0
    %429 = vmatprep.subr.mxu0 0.0
    %430 = vmatpush1.msra.mxu0 0.0
    %431 = vmatprep.subr.mxu0 0.0
    %432 = vmatpush1.msra.mxu0 0.0
    %433 = vmatprep.subr.mxu0 0.0
    %434 = vmatpush1.msra.mxu0 0.0
    %435 = vmatprep.subr.mxu0 0.0
    %436 = vmatpush1.msra.mxu0 0.0
    %437 = vmatprep.subr.mxu0 0.0
    %438 = vmatpush1.msra.mxu0 0.0
    %439 = vmatprep.subr.mxu0 0.0
    %440 = vmatpush1.msra.mxu0 0.0
    %441 = vmatprep.subr.mxu0 0.0
    %442 = vmatpush1.msra.mxu0 0.0
    %443 = vmatprep.subr.mxu0 0.0
    %444 = vmatpush1.msra.mxu0 0.0
    %445 = vmatprep.subr.mxu0 0.0
    %446 = vmatpush1.msra.mxu0 0.0
    %447 = vmatprep.subr.mxu0 0.0
    %448 = vmatpush1.msra.mxu0 0.0
    %449 = vmatprep.subr.mxu0 0.0
    %450 = vmatpush1.msra.mxu0 0.0
    %451 = vmatprep.subr.mxu0 0.0
    %452 = vmatpush1.msra.mxu0 0.0
    %453 = vmatprep.subr.mxu0 0.0
    %454 = vmatpush1.msra.mxu0 0.0
    %455 = vmatprep.subr.mxu0 0.0
    %456 = vmatpush1.msra.mxu0 0.0
    %457 = vmatprep.subr.mxu0 0.0
    %458 = vmatpush1.msra.mxu0 0.0
    %459 = vmatprep.subr.mxu0 0.0
    %460 = vmatpush1.msra.mxu0 0.0
    %461 = vmatprep.subr.mxu0 0.0
    %462 = vmatpush1.msra.mxu0 0.0
    %463 = vmatprep.subr.mxu0 0.0
    %464 = vmatpush1.msra.mxu0 0.0
    %465 = vmatprep.subr.mxu0 0.0
    %466 = vmatpush1.msra.mxu0 0.0
    %467 = vmatprep.subr.mxu0 0.0
    %468 = vmatpush1.msra.mxu0 0.0
    %469 = vmatprep.subr.mxu0 0.0
    %470 = vmatpush1.msra.mxu0 0.0
    %471 = vmatprep.subr.mxu0 0.0
    %472 = vmatpush1.msra.mxu0 0.0
    %473 = vmatprep.subr.mxu0 0.0
    %474 = vmatpush1.msra.mxu0 0.0
    %475 = vmatprep.subr.mxu0 0.0
    %476 = vmatpush1.msra.mxu0 0.0
    %477 = vmatprep.subr.mxu0 0.0
    %478 = vmatpush1.msra.mxu0 0.0
    %479 = vmatprep.subr.mxu0 0.0
    %480 = vmatpush1.msra.mxu0 0.0
    %481 = vmatprep.mubr.f32.mxu0 0.0
    %482 = vmatmul.mubr.f32.gmra.mrb[0].mxu0 %v415
    %v483 = vpop.f32.mrb[0].mxu0
    %v484 = vadd.f32 0.0, %v483
    %v485 = vpop.f32.mrb[0].mxu0
    %486 = vdwg.mxu0
    %v488 = vrot.slane %v484, 6
    %v490 = vadd.f32 %v191, %v488
    %v491 = vxor.u32 %v490, 2147483648
    %v492 = vmul.f32 %v491, 1.442695
    %v493 = vpow.pop %v492
    %v494 = vadd.f32 %v493, 1.0
    %v495 = vrcp.pop %v494
    %v496 = vmul.f32 1.0, %v495
    %v497 = vtanh.pop %v490
    %v499 = vrot.slane %v299, 6
    %v501 = vmul.f32 %v496, %v499
    %503 = vrot.lane.b32.xlu0 %v497, 96
    %v504 = vpop.permute.xlu0 %503
    %v506 = vmul.f32 %v496, %v504
    %508 = vrot.lane.b32.xlu0 %v506, 16
    %v509 = vpop.permute.xlu0 %508
    %v511 = vadd.f32 %v501, %v509
    %v512 = vtanh.pop %v511
    %514 = vrot.lane.b32.xlu0 %v512, 32
    %v515 = vpop.permute.xlu0 %514
    %v517 = vmul.f32 %v496, %v515
    %519 = vrot.lane.b32.xlu0 %v517, 80
    %v520 = vpop.permute.xlu0 %519
    %v523 = vrot.slane %v414, 6
    %524 = vrot.lane.b32.xlu0 %v523, 48
    %v525 = vpop.permute.xlu0 %524
    %v527 = vsel %vm117, %v520, %v525
    %v529 = vrot.slane %v527, 2
    %v530 = vsel %vm317, %v529, 0
    %532 = vmatprep.subr.mxu0 0.0
    %533 = vmatpush1.msra.mxu0 %v201
    %534 = vmatprep.subr.mxu0 0.0
    %535 = vmatpush1.msra.mxu0 %v202
    %536 = vmatprep.subr.mxu0 0.0
    %537 = vmatpush1.msra.mxu0 %v203
    %538 = vmatprep.subr.mxu0 0.0
    %539 = vmatpush1.msra.mxu0 %v204
    %540 = vmatprep.subr.mxu0 0.0
    %541 = vmatpush1.msra.mxu0 %v205
    %542 = vmatprep.subr.mxu0 0.0
    %543 = vmatpush1.msra.mxu0 %v206
    %544 = vmatprep.subr.mxu0 0.0
    %545 = vmatpush1.msra.mxu0 0.0
    %546 = vmatprep.subr.mxu0 0.0
    %547 = vmatpush1.msra.mxu0 0.0
    %548 = vmatprep.subr.mxu0 0.0
    %549 = vmatpush1.msra.mxu0 0.0
    %550 = vmatprep.subr.mxu0 0.0
    %551 = vmatpush1.msra.mxu0 0.0
    %552 = vmatprep.subr.mxu0 0.0
    %553 = vmatpush1.msra.mxu0 0.0
    %554 = vmatprep.subr.mxu0 0.0
    %555 = vmatpush1.msra.mxu0 0.0
    %556 = vmatprep.subr.mxu0 0.0
    %557 = vmatpush1.msra.mxu0 0.0
    %558 = vmatprep.subr.mxu0 0.0
    %559 = vmatpush1.msra.mxu0 0.0
    %560 = vmatprep.subr.mxu0 0.0
    %561 = vmatpush1.msra.mxu0 0.0
    %562 = vmatprep.subr.mxu0 0.0
    %563 = vmatpush1.msra.mxu0 0.0
    %564 = vmatprep.subr.mxu0 0.0
    %565 = vmatpush1.msra.mxu0 0.0
    %566 = vmatprep.subr.mxu0 0.0
    %567 = vmatpush1.msra.mxu0 0.0
    %568 = vmatprep.subr.mxu0 0.0
    %569 = vmatpush1.msra.mxu0 0.0
    %570 = vmatprep.subr.mxu0 0.0
    %571 = vmatpush1.msra.mxu0 0.0
    %572 = vmatprep.subr.mxu0 0.0
    %573 = vmatpush1.msra.mxu0 0.0
    %574 = vmatprep.subr.mxu0 0.0
    %575 = vmatpush1.msra.mxu0 0.0
    %576 = vmatprep.subr.mxu0 0.0
    %577 = vmatpush1.msra.mxu0 0.0
    %578 = vmatprep.subr.mxu0 0.0
    %579 = vmatpush1.msra.mxu0 0.0
    %580 = vmatprep.subr.mxu0 0.0
    %581 = vmatpush1.msra.mxu0 0.0
    %582 = vmatprep.subr.mxu0 0.0
    %583 = vmatpush1.msra.mxu0 0.0
    %584 = vmatprep.subr.mxu0 0.0
    %585 = vmatpush1.msra.mxu0 0.0
    %586 = vmatprep.subr.mxu0 0.0
    %587 = vmatpush1.msra.mxu0 0.0
    %588 = vmatprep.subr.mxu0 0.0
    %589 = vmatpush1.msra.mxu0 0.0
    %590 = vmatprep.subr.mxu0 0.0
    %591 = vmatpush1.msra.mxu0 0.0
    %592 = vmatprep.subr.mxu0 0.0
    %593 = vmatpush1.msra.mxu0 0.0
    %594 = vmatprep.subr.mxu0 0.0
    %595 = vmatpush1.msra.mxu0 0.0
    %596 = vmatprep.mubr.f32.mxu0 0.0
    %597 = vmatmul.mubr.f32.gmra.mrb[0].mxu0 %v530
    %v598 = vpop.f32.mrb[0].mxu0
    %v599 = vadd.f32 %v315, %v598
    %v600 = vpop.f32.mrb[0].mxu0
    %601 = vdwg.mxu0
    %v602 = vxor.u32 %v599, 2147483648
    %v603 = vmul.f32 %v602, 1.442695
    %v604 = vpow.pop %v603
    %v605 = vadd.f32 %v604, 1.0
    %v606 = vrcp.pop %v605
    %v607 = vmul.f32 1.0, %v606
    %v608 = vtanh.pop %v599
    %v609 = vmul.f32 %v607, %v408
    %611 = vrot.lane.b32.xlu0 %v608, 64
    %v612 = vpop.permute.xlu0 %611
    %v614 = vmul.f32 %v607, %v612
    %616 = vrot.lane.b32.xlu0 %v614, 32
    %v617 = vpop.permute.xlu0 %616
    %v619 = vadd.f32 %v609, %v617
    %v620 = vtanh.pop %v619
    %622 = vrot.lane.b32.xlu0 %v620, 64
    %v623 = vpop.permute.xlu0 %622
    %v625 = vmul.f32 %v607, %v623
    %v626 = vrot.slane %v517, 2
    %627 = vrot.lane.b32.xlu0 %v626, 80
    %v628 = vpop.permute.xlu0 %627
    %v629 = vsel %vm117, %v628, 0
    %631 = vmatprep.subr.mxu0 0.0
    %632 = vmatpush1.msra.mxu0 %v199
    %633 = vmatprep.subr.mxu0 0.0
    %634 = vmatpush1.msra.mxu0 %v200
    %635 = vmatprep.subr.mxu0 0.0
    %636 = vmatpush1.msra.mxu0 0.0
    %637 = vmatprep.subr.mxu0 0.0
    %638 = vmatpush1.msra.mxu0 0.0
    %639 = vmatprep.subr.mxu0 0.0
    %640 = vmatpush1.msra.mxu0 0.0
    %641 = vmatprep.subr.mxu0 0.0
    %642 = vmatpush1.msra.mxu0 0.0
    %643 = vmatprep.subr.mxu0 0.0
    %644 = vmatpush1.msra.mxu0 0.0
    %645 = vmatprep.subr.mxu0 0.0
    %646 = vmatpush1.msra.mxu0 0.0
    %647 = vmatprep.subr.mxu0 0.0
    %648 = vmatpush1.msra.mxu0 0.0
    %649 = vmatprep.subr.mxu0 0.0
    %650 = vmatpush1.msra.mxu0 0.0
    %651 = vmatprep.subr.mxu0 0.0
    %652 = vmatpush1.msra.mxu0 0.0
    %653 = vmatprep.subr.mxu0 0.0
    %654 = vmatpush1.msra.mxu0 0.0
    %655 = vmatprep.subr.mxu0 0.0
    %656 = vmatpush1.msra.mxu0 0.0
    %657 = vmatprep.subr.mxu0 0.0
    %658 = vmatpush1.msra.mxu0 0.0
    %659 = vmatprep.subr.mxu0 0.0
    %660 = vmatpush1.msra.mxu0 0.0
    %661 = vmatprep.subr.mxu0 0.0
    %662 = vmatpush1.msra.mxu0 0.0
    %663 = vmatprep.subr.mxu0 0.0
    %664 = vmatpush1.msra.mxu0 0.0
    %665 = vmatprep.subr.mxu0 0.0
    %666 = vmatpush1.msra.mxu0 0.0
    %667 = vmatprep.subr.mxu0 0.0
    %668 = vmatpush1.msra.mxu0 0.0
    %669 = vmatprep.subr.mxu0 0.0
    %670 = vmatpush1.msra.mxu0 0.0
    %671 = vmatprep.subr.mxu0 0.0
    %672 = vmatpush1.msra.mxu0 0.0
    %673 = vmatprep.subr.mxu0 0.0
    %674 = vmatpush1.msra.mxu0 0.0
    %675 = vmatprep.subr.mxu0 0.0
    %676 = vmatpush1.msra.mxu0 0.0
    %677 = vmatprep.subr.mxu0 0.0
    %678 = vmatpush1.msra.mxu0 0.0
    %679 = vmatprep.subr.mxu0 0.0
    %680 = vmatpush1.msra.mxu0 0.0
    %681 = vmatprep.subr.mxu0 0.0
    %682 = vmatpush1.msra.mxu0 0.0
    %683 = vmatprep.subr.mxu0 0.0
    %684 = vmatpush1.msra.mxu0 0.0
    %685 = vmatprep.subr.mxu0 0.0
    %686 = vmatpush1.msra.mxu0 0.0
    %687 = vmatprep.subr.mxu0 0.0
    %688 = vmatpush1.msra.mxu0 0.0
    %689 = vmatprep.subr.mxu0 0.0
    %690 = vmatpush1.msra.mxu0 0.0
    %691 = vmatprep.subr.mxu0 0.0
    %692 = vmatpush1.msra.mxu0 0.0
    %693 = vmatprep.subr.mxu0 0.0
    %694 = vmatpush1.msra.mxu0 0.0
    %695 = vmatprep.mubr.f32.mxu0 0.0
    %696 = vmatmul.mubr.f32.gmra.mrb[0].mxu0 %v629
    %v697 = vpop.f32.mrb[0].mxu0
    %v698 = vadd.f32 0.0, %v697
    %v699 = vpop.f32.mrb[0].mxu0
    %700 = vdwg.mxu0
    %v702 = vrot.slane %v698, 4
    %v704 = vadd.f32 %v191, %v702
    %v705 = vxor.u32 %v704, 2147483648
    %v706 = vmul.f32 %v705, 1.442695
    %v707 = vpow.pop %v706
    %v708 = vadd.f32 %v707, 1.0
    %v709 = vrcp.pop %v708
    %v710 = vmul.f32 1.0, %v709
    %v711 = vtanh.pop %v704
    %v713 = vrot.slane %v511, 6
    %v715 = vmul.f32 %v710, %v713
    %717 = vrot.lane.b32.xlu0 %v711, 96
    %v718 = vpop.permute.xlu0 %717
    %v720 = vmul.f32 %v710, %v718
    %722 = vrot.lane.b32.xlu0 %v720, 16
    %v723 = vpop.permute.xlu0 %722
    %v725 = vadd.f32 %v715, %v723
    %v726 = vtanh.pop %v725
    %728 = vrot.lane.b32.xlu0 %v726, 32
    %v729 = vpop.permute.xlu0 %728
    %v731 = vmul.f32 %v710, %v729
    %733 = vrot.lane.b32.xlu0 %v731, 80
    %v734 = vpop.permute.xlu0 %733
    %v737 = vrot.slane %v625, 4
    %738 = vrot.lane.b32.xlu0 %v737, 48
    %v739 = vpop.permute.xlu0 %738
    %v741 = vsel %vm117, %v734, %v739
    %v743 = vrot.slane %v741, 4
    %v744 = vsel %vm317, %v743, 0
    %746 = vmatprep.subr.mxu0 0.0
    %747 = vmatpush1.msra.mxu0 %v201
    %748 = vmatprep.subr.mxu0 0.0
    %749 = vmatpush1.msra.mxu0 %v202
    %750 = vmatprep.subr.mxu0 0.0
    %751 = vmatpush1.msra.mxu0 %v203
    %752 = vmatprep.subr.mxu0 0.0
    %753 = vmatpush1.msra.mxu0 %v204
    %754 = vmatprep.subr.mxu0 0.0
    %755 = vmatpush1.msra.mxu0 %v205
    %756 = vmatprep.subr.mxu0 0.0
    %757 = vmatpush1.msra.mxu0 %v206
    %758 = vmatprep.subr.mxu0 0.0
    %759 = vmatpush1.msra.mxu0 0.0
    %760 = vmatprep.subr.mxu0 0.0
    %761 = vmatpush1.msra.mxu0 0.0
    %762 = vmatprep.subr.mxu0 0.0
    %763 = vmatpush1.msra.mxu0 0.0
    %764 = vmatprep.subr.mxu0 0.0
    %765 = vmatpush1.msra.mxu0 0.0
    %766 = vmatprep.subr.mxu0 0.0
    %767 = vmatpush1.msra.mxu0 0.0
    %768 = vmatprep.subr.mxu0 0.0
    %769 = vmatpush1.msra.mxu0 0.0
    %770 = vmatprep.subr.mxu0 0.0
    %771 = vmatpush1.msra.mxu0 0.0
    %772 = vmatprep.subr.mxu0 0.0
    %773 = vmatpush1.msra.mxu0 0.0
    %774 = vmatprep.subr.mxu0 0.0
    %775 = vmatpush1.msra.mxu0 0.0
    %776 = vmatprep.subr.mxu0 0.0
    %777 = vmatpush1.msra.mxu0 0.0
    %778 = vmatprep.subr.mxu0 0.0
    %779 = vmatpush1.msra.mxu0 0.0
    %780 = vmatprep.subr.mxu0 0.0
    %781 = vmatpush1.msra.mxu0 0.0
    %782 = vmatprep.subr.mxu0 0.0
    %783 = vmatpush1.msra.mxu0 0.0
    %784 = vmatprep.subr.mxu0 0.0
    %785 = vmatpush1.msra.mxu0 0.0
    %786 = vmatprep.subr.mxu0 0.0
    %787 = vmatpush1.msra.mxu0 0.0
    %788 = vmatprep.subr.mxu0 0.0
    %789 = vmatpush1.msra.mxu0 0.0
    %790 = vmatprep.subr.mxu0 0.0
    %791 = vmatpush1.msra.mxu0 0.0
    %792 = vmatprep.subr.mxu0 0.0
    %793 = vmatpush1.msra.mxu0 0.0
    %794 = vmatprep.subr.mxu0 0.0
    %795 = vmatpush1.msra.mxu0 0.0
    %796 = vmatprep.subr.mxu0 0.0
    %797 = vmatpush1.msra.mxu0 0.0
    %798 = vmatprep.subr.mxu0 0.0
    %799 = vmatpush1.msra.mxu0 0.0
    %800 = vmatprep.subr.mxu0 0.0
    %801 = vmatpush1.msra.mxu0 0.0
    %802 = vmatprep.subr.mxu0 0.0
    %803 = vmatpush1.msra.mxu0 0.0
    %804 = vmatprep.subr.mxu0 0.0
    %805 = vmatpush1.msra.mxu0 0.0
    %806 = vmatprep.subr.mxu0 0.0
    %807 = vmatpush1.msra.mxu0 0.0
    %808 = vmatprep.subr.mxu0 0.0
    %809 = vmatpush1.msra.mxu0 0.0
    %810 = vmatprep.mubr.f32.mxu0 0.0
    %811 = vmatmul.mubr.f32.gmra.mrb[0].mxu0 %v744
    %v812 = vpop.f32.mrb[0].mxu0
    %v813 = vadd.f32 %v315, %v812
    %v814 = vpop.f32.mrb[0].mxu0
    %815 = vdwg.mxu0
    %v816 = vxor.u32 %v813, 2147483648
    %v817 = vmul.f32 %v816, 1.442695
    %v818 = vpow.pop %v817
    %v819 = vadd.f32 %v818, 1.0
    %v820 = vrcp.pop %v819
    %v821 = vmul.f32 1.0, %v820
    %v822 = vtanh.pop %v813
    %v823 = vmul.f32 %v821, %v619
    %825 = vrot.lane.b32.xlu0 %v822, 64
    %v826 = vpop.permute.xlu0 %825
    %v828 = vmul.f32 %v821, %v826
    %830 = vrot.lane.b32.xlu0 %v828, 32
    %v831 = vpop.permute.xlu0 %830
    %v833 = vadd.f32 %v823, %v831
    %v834 = vtanh.pop %v833
    %836 = vrot.lane.b32.xlu0 %v834, 64
    %v837 = vpop.permute.xlu0 %836
    %v839 = vmul.f32 %v821, %v837
    %v840 = vrot.slane %v731, 4
    %841 = vrot.lane.b32.xlu0 %v840, 80
    %v842 = vpop.permute.xlu0 %841
    %v843 = vsel %vm117, %v842, 0
    %845 = vmatprep.subr.mxu0 0.0
    %846 = vmatpush1.msra.mxu0 %v199
    %847 = vmatprep.subr.mxu0 0.0
    %848 = vmatpush1.msra.mxu0 %v200
    %849 = vmatprep.subr.mxu0 0.0
    %850 = vmatpush1.msra.mxu0 0.0
    %851 = vmatprep.subr.mxu0 0.0
    %852 = vmatpush1.msra.mxu0 0.0
    %853 = vmatprep.subr.mxu0 0.0
    %854 = vmatpush1.msra.mxu0 0.0
    %855 = vmatprep.subr.mxu0 0.0
    %856 = vmatpush1.msra.mxu0 0.0
    %857 = vmatprep.subr.mxu0 0.0
    %858 = vmatpush1.msra.mxu0 0.0
    %859 = vmatprep.subr.mxu0 0.0
    %860 = vmatpush1.msra.mxu0 0.0
    %861 = vmatprep.subr.mxu0 0.0
    %862 = vmatpush1.msra.mxu0 0.0
    %863 = vmatprep.subr.mxu0 0.0
    %864 = vmatpush1.msra.mxu0 0.0
    %865 = vmatprep.subr.mxu0 0.0
    %866 = vmatpush1.msra.mxu0 0.0
    %867 = vmatprep.subr.mxu0 0.0
    %868 = vmatpush1.msra.mxu0 0.0
    %869 = vmatprep.subr.mxu0 0.0
    %870 = vmatpush1.msra.mxu0 0.0
    %871 = vmatprep.subr.mxu0 0.0
    %872 = vmatpush1.msra.mxu0 0.0
    %873 = vmatprep.subr.mxu0 0.0
    %874 = vmatpush1.msra.mxu0 0.0
    %875 = vmatprep.subr.mxu0 0.0
    %876 = vmatpush1.msra.mxu0 0.0
    %877 = vmatprep.subr.mxu0 0.0
    %878 = vmatpush1.msra.mxu0 0.0
    %879 = vmatprep.subr.mxu0 0.0
    %880 = vmatpush1.msra.mxu0 0.0
    %881 = vmatprep.subr.mxu0 0.0
    %882 = vmatpush1.msra.mxu0 0.0
    %883 = vmatprep.subr.mxu0 0.0
    %884 = vmatpush1.msra.mxu0 0.0
    %885 = vmatprep.subr.mxu0 0.0
    %886 = vmatpush1.msra.mxu0 0.0
    %887 = vmatprep.subr.mxu0 0.0
    %888 = vmatpush1.msra.mxu0 0.0
    %889 = vmatprep.subr.mxu0 0.0
    %890 = vmatpush1.msra.mxu0 0.0
    %891 = vmatprep.subr.mxu0 0.0
    %892 = vmatpush1.msra.mxu0 0.0
    %893 = vmatprep.subr.mxu0 0.0
    %894 = vmatpush1.msra.mxu0 0.0
    %895 = vmatprep.subr.mxu0 0.0
    %896 = vmatpush1.msra.mxu0 0.0
    %897 = vmatprep.subr.mxu0 0.0
    %898 = vmatpush1.msra.mxu0 0.0
    %899 = vmatprep.subr.mxu0 0.0
    %900 = vmatpush1.msra.mxu0 0.0
    %901 = vmatprep.subr.mxu0 0.0
    %902 = vmatpush1.msra.mxu0 0.0
    %903 = vmatprep.subr.mxu0 0.0
    %904 = vmatpush1.msra.mxu0 0.0
    %905 = vmatprep.subr.mxu0 0.0
    %906 = vmatpush1.msra.mxu0 0.0
    %907 = vmatprep.subr.mxu0 0.0
    %908 = vmatpush1.msra.mxu0 0.0
    %909 = vmatprep.mubr.f32.mxu0 0.0
    %910 = vmatmul.mubr.f32.gmra.mrb[0].mxu0 %v843
    %v911 = vpop.f32.mrb[0].mxu0
    %v912 = vadd.f32 0.0, %v911
    %v913 = vpop.f32.mrb[0].mxu0
    %914 = vdwg.mxu0
    %v916 = vrot.slane %v912, 2
    %v918 = vadd.f32 %v191, %v916
    %v919 = vxor.u32 %v918, 2147483648
    %v920 = vmul.f32 %v919, 1.442695
    %v921 = vpow.pop %v920
    %v922 = vadd.f32 %v921, 1.0
    %v923 = vrcp.pop %v922
    %v924 = vmul.f32 1.0, %v923
    %v925 = vtanh.pop %v918
    %v927 = vrot.slane %v725, 6
    %v929 = vmul.f32 %v924, %v927
    %931 = vrot.lane.b32.xlu0 %v925, 96
    %v932 = vpop.permute.xlu0 %931
    %v934 = vmul.f32 %v924, %v932
    %936 = vrot.lane.b32.xlu0 %v934, 16
    %v937 = vpop.permute.xlu0 %936
    %v939 = vadd.f32 %v929, %v937
    %v940 = vtanh.pop %v939
    %942 = vrot.lane.b32.xlu0 %v940, 32
    %v943 = vpop.permute.xlu0 %942
    %v945 = vmul.f32 %v924, %v943
    %947 = vrot.lane.b32.xlu0 %v945, 80
    %v948 = vpop.permute.xlu0 %947
    %v951 = vrot.slane %v839, 2
    %952 = vrot.lane.b32.xlu0 %v951, 48
    %v953 = vpop.permute.xlu0 %952
    %v955 = vsel %vm117, %v948, %v953
    %v957 = vrot.slane %v955, 6
    %v958 = vsel %vm317, %v957, 0
    %960 = vmatprep.subr.mxu0 0.0
    %961 = vmatpush1.msra.mxu0 %v201
    %962 = vmatprep.subr.mxu0 0.0
    %963 = vmatpush1.msra.mxu0 %v202
    %964 = vmatprep.subr.mxu0 0.0
    %965 = vmatpush1.msra.mxu0 %v203
    %966 = vmatprep.subr.mxu0 0.0
    %967 = vmatpush1.msra.mxu0 %v204
    %968 = vmatprep.subr.mxu0 0.0
    %969 = vmatpush1.msra.mxu0 %v205
    %970 = vmatprep.subr.mxu0 0.0
    %971 = vmatpush1.msra.mxu0 %v206
    %972 = vmatprep.subr.mxu0 0.0
    %973 = vmatpush1.msra.mxu0 0.0
    %974 = vmatprep.subr.mxu0 0.0
    %975 = vmatpush1.msra.mxu0 0.0
    %976 = vmatprep.subr.mxu0 0.0
    %977 = vmatpush1.msra.mxu0 0.0
    %978 = vmatprep.subr.mxu0 0.0
    %979 = vmatpush1.msra.mxu0 0.0
    %980 = vmatprep.subr.mxu0 0.0
    %981 = vmatpush1.msra.mxu0 0.0
    %982 = vmatprep.subr.mxu0 0.0
    %983 = vmatpush1.msra.mxu0 0.0
    %984 = vmatprep.subr.mxu0 0.0
    %985 = vmatpush1.msra.mxu0 0.0
    %986 = vmatprep.subr.mxu0 0.0
    %987 = vmatpush1.msra.mxu0 0.0
    %988 = vmatprep.subr.mxu0 0.0
    %989 = vmatpush1.msra.mxu0 0.0
    %990 = vmatprep.subr.mxu0 0.0
    %991 = vmatpush1.msra.mxu0 0.0
    %992 = vmatprep.subr.mxu0 0.0
    %993 = vmatpush1.msra.mxu0 0.0
    %994 = vmatprep.subr.mxu0 0.0
    %995 = vmatpush1.msra.mxu0 0.0
    %996 = vmatprep.subr.mxu0 0.0
    %997 = vmatpush1.msra.mxu0 0.0
    %998 = vmatprep.subr.mxu0 0.0
    %999 = vmatpush1.msra.mxu0 0.0
    %1000 = vmatprep.subr.mxu0 0.0
    %1001 = vmatpush1.msra.mxu0 0.0
    %1002 = vmatprep.subr.mxu0 0.0
    %1003 = vmatpush1.msra.mxu0 0.0
    %1004 = vmatprep.subr.mxu0 0.0
    %1005 = vmatpush1.msra.mxu0 0.0
    %1006 = vmatprep.subr.mxu0 0.0
    %1007 = vmatpush1.msra.mxu0 0.0
    %1008 = vmatprep.subr.mxu0 0.0
    %1009 = vmatpush1.msra.mxu0 0.0
    %1010 = vmatprep.subr.mxu0 0.0
    %1011 = vmatpush1.msra.mxu0 0.0
    %1012 = vmatprep.subr.mxu0 0.0
    %1013 = vmatpush1.msra.mxu0 0.0
    %1014 = vmatprep.subr.mxu0 0.0
    %1015 = vmatpush1.msra.mxu0 0.0
    %1016 = vmatprep.subr.mxu0 0.0
    %1017 = vmatpush1.msra.mxu0 0.0
    %1018 = vmatprep.subr.mxu0 0.0
    %1019 = vmatpush1.msra.mxu0 0.0
    %1020 = vmatprep.subr.mxu0 0.0
    %1021 = vmatpush1.msra.mxu0 0.0
    %1022 = vmatprep.subr.mxu0 0.0
    %1023 = vmatpush1.msra.mxu0 0.0
    %1024 = vmatprep.mubr.f32.mxu0 0.0
    %1025 = vmatmul.mubr.f32.gmra.mrb[0].mxu0 %v958
    %v1026 = vpop.f32.mrb[0].mxu0
    %v1027 = vadd.f32 %v315, %v1026
    %v1028 = vpop.f32.mrb[0].mxu0
    %1029 = vdwg.mxu0
    %v1030 = vxor.u32 %v1027, 2147483648
    %v1031 = vmul.f32 %v1030, 1.442695
    %v1032 = vpow.pop %v1031
    %v1033 = vadd.f32 %v1032, 1.0
    %v1034 = vrcp.pop %v1033
    %v1035 = vmul.f32 1.0, %v1034
    %v1036 = vtanh.pop %v1027
    %v1037 = vmul.f32 %v1035, %v833
    %1039 = vrot.lane.b32.xlu0 %v1036, 64
    %v1040 = vpop.permute.xlu0 %1039
    %v1042 = vmul.f32 %v1035, %v1040
    %1044 = vrot.lane.b32.xlu0 %v1042, 32
    %v1045 = vpop.permute.xlu0 %1044
    %v1047 = vadd.f32 %v1037, %v1045
    %v1048 = vtanh.pop %v1047
    %1050 = vrot.lane.b32.xlu0 %v1048, 64
    %v1051 = vpop.permute.xlu0 %1050
    %v1053 = vmul.f32 %v1035, %v1051
    %v1054 = vrot.slane %v945, 6
    %1055 = vrot.lane.b32.xlu0 %v1054, 80
    %v1056 = vpop.permute.xlu0 %1055
    %v1057 = vsel %vm117, %v1056, 0
    %1059 = vmatprep.subr.mxu0 0.0
    %1060 = vmatpush1.msra.mxu0 %v199
    %1061 = vmatprep.subr.mxu0 0.0
    %1062 = vmatpush1.msra.mxu0 %v200
    %1063 = vmatprep.subr.mxu0 0.0
    %1064 = vmatpush1.msra.mxu0 0.0
    %1065 = vmatprep.subr.mxu0 0.0
    %1066 = vmatpush1.msra.mxu0 0.0
    %1067 = vmatprep.subr.mxu0 0.0
    %1068 = vmatpush1.msra.mxu0 0.0
    %1069 = vmatprep.subr.mxu0 0.0
    %1070 = vmatpush1.msra.mxu0 0.0
    %1071 = vmatprep.subr.mxu0 0.0
    %1072 = vmatpush1.msra.mxu0 0.0
    %1073 = vmatprep.subr.mxu0 0.0
    %1074 = vmatpush1.msra.mxu0 0.0
    %1075 = vmatprep.subr.mxu0 0.0
    %1076 = vmatpush1.msra.mxu0 0.0
    %1077 = vmatprep.subr.mxu0 0.0
    %1078 = vmatpush1.msra.mxu0 0.0
    %1079 = vmatprep.subr.mxu0 0.0
    %1080 = vmatpush1.msra.mxu0 0.0
    %1081 = vmatprep.subr.mxu0 0.0
    %1082 = vmatpush1.msra.mxu0 0.0
    %1083 = vmatprep.subr.mxu0 0.0
    %1084 = vmatpush1.msra.mxu0 0.0
    %1085 = vmatprep.subr.mxu0 0.0
    %1086 = vmatpush1.msra.mxu0 0.0
    %1087 = vmatprep.subr.mxu0 0.0
    %1088 = vmatpush1.msra.mxu0 0.0
    %1089 = vmatprep.subr.mxu0 0.0
    %1090 = vmatpush1.msra.mxu0 0.0
    %1091 = vmatprep.subr.mxu0 0.0
    %1092 = vmatpush1.msra.mxu0 0.0
    %1093 = vmatprep.subr.mxu0 0.0
    %1094 = vmatpush1.msra.mxu0 0.0
    %1095 = vmatprep.subr.mxu0 0.0
    %1096 = vmatpush1.msra.mxu0 0.0
    %1097 = vmatprep.subr.mxu0 0.0
    %1098 = vmatpush1.msra.mxu0 0.0
    %1099 = vmatprep.subr.mxu0 0.0
    %1100 = vmatpush1.msra.mxu0 0.0
    %1101 = vmatprep.subr.mxu0 0.0
    %1102 = vmatpush1.msra.mxu0 0.0
    %1103 = vmatprep.subr.mxu0 0.0
    %1104 = vmatpush1.msra.mxu0 0.0
    %1105 = vmatprep.subr.mxu0 0.0
    %1106 = vmatpush1.msra.mxu0 0.0
    %1107 = vmatprep.subr.mxu0 0.0
    %1108 = vmatpush1.msra.mxu0 0.0
    %1109 = vmatprep.subr.mxu0 0.0
    %1110 = vmatpush1.msra.mxu0 0.0
    %1111 = vmatprep.subr.mxu0 0.0
    %1112 = vmatpush1.msra.mxu0 0.0
    %1113 = vmatprep.subr.mxu0 0.0
    %1114 = vmatpush1.msra.mxu0 0.0
    %1115 = vmatprep.subr.mxu0 0.0
    %1116 = vmatpush1.msra.mxu0 0.0
    %1117 = vmatprep.subr.mxu0 0.0
    %1118 = vmatpush1.msra.mxu0 0.0
    %1119 = vmatprep.subr.mxu0 0.0
    %1120 = vmatpush1.msra.mxu0 0.0
    %1121 = vmatprep.subr.mxu0 0.0
    %1122 = vmatpush1.msra.mxu0 0.0
    %1123 = vmatprep.mubr.f32.mxu0 0.0
    %1124 = vmatmul.mubr.f32.gmra.mrb[0].mxu0 %v1057
    %v1125 = vpop.f32.mrb[0].mxu0
    %v1126 = vadd.f32 0.0, %v1125
    %v1127 = vpop.f32.mrb[0].mxu0
    %1128 = vdwg.mxu0
    %v1129 = vadd.f32 %v196, %v1126
    %v1130 = vxor.u32 %v1129, 2147483648
    %v1131 = vmul.f32 %v1130, 1.442695
    %v1132 = vpow.pop %v1131
    %v1133 = vadd.f32 %v1132, 1.0
    %v1134 = vrcp.pop %v1133
    %v1135 = vmul.f32 1.0, %v1134
    %v1136 = vtanh.pop %v1129
    %v1138 = vrot.slane %v939, 6
    %v1140 = vmul.f32 %v1135, %v1138
    %1142 = vrot.lane.b32.xlu0 %v1136, 96
    %v1143 = vpop.permute.xlu0 %1142
    %v1145 = vmul.f32 %v1135, %v1143
    %1147 = vrot.lane.b32.xlu0 %v1145, 16
    %v1148 = vpop.permute.xlu0 %1147
    %v1150 = vadd.f32 %v1140, %v1148
    %v1151 = vtanh.pop %v1150
    %1153 = vrot.lane.b32.xlu0 %v1151, 32
    %v1154 = vpop.permute.xlu0 %1153
    %v1156 = vmul.f32 %v1135, %v1154
    %1158 = vrot.lane.b32.xlu0 %v1156, 80
    %v1159 = vpop.permute.xlu0 %1158
    %1162 = vrot.lane.b32.xlu0 %v1053, 48
    %v1163 = vpop.permute.xlu0 %1162
    %v1165 = vsel %vm117, %v1159, %v1163
    %v1167 = vsel %vm317, %v1165, 0
    %1169 = vmatprep.subr.mxu0 0.0
    %1170 = vmatpush1.msra.mxu0 %v201
    %1171 = vmatprep.subr.mxu0 0.0
    %1172 = vmatpush1.msra.mxu0 %v202
    %1173 = vmatprep.subr.mxu0 0.0
    %1174 = vmatpush1.msra.mxu0 %v203
    %1175 = vmatprep.subr.mxu0 0.0
    %1176 = vmatpush1.msra.mxu0 %v204
    %1177 = vmatprep.subr.mxu0 0.0
    %1178 = vmatpush1.msra.mxu0 %v205
    %1179 = vmatprep.subr.mxu0 0.0
    %1180 = vmatpush1.msra.mxu0 %v206
    %1181 = vmatprep.subr.mxu0 0.0
    %1182 = vmatpush1.msra.mxu0 0.0
    %1183 = vmatprep.subr.mxu0 0.0
    %1184 = vmatpush1.msra.mxu0 0.0
    %1185 = vmatprep.subr.mxu0 0.0
    %1186 = vmatpush1.msra.mxu0 0.0
    %1187 = vmatprep.subr.mxu0 0.0
    %1188 = vmatpush1.msra.mxu0 0.0
    %1189 = vmatprep.subr.mxu0 0.0
    %1190 = vmatpush1.msra.mxu0 0.0
    %1191 = vmatprep.subr.mxu0 0.0
    %1192 = vmatpush1.msra.mxu0 0.0
    %1193 = vmatprep.subr.mxu0 0.0
    %1194 = vmatpush1.msra.mxu0 0.0
    %1195 = vmatprep.subr.mxu0 0.0
    %1196 = vmatpush1.msra.mxu0 0.0
    %1197 = vmatprep.subr.mxu0 0.0
    %1198 = vmatpush1.msra.mxu0 0.0
    %1199 = vmatprep.subr.mxu0 0.0
    %1200 = vmatpush1.msra.mxu0 0.0
    %1201 = vmatprep.subr.mxu0 0.0
    %1202 = vmatpush1.msra.mxu0 0.0
    %1203 = vmatprep.subr.mxu0 0.0
    %1204 = vmatpush1.msra.mxu0 0.0
    %1205 = vmatprep.subr.mxu0 0.0
    %1206 = vmatpush1.msra.mxu0 0.0
    %1207 = vmatprep.subr.mxu0 0.0
    %1208 = vmatpush1.msra.mxu0 0.0
    %1209 = vmatprep.subr.mxu0 0.0
    %1210 = vmatpush1.msra.mxu0 0.0
    %1211 = vmatprep.subr.mxu0 0.0
    %1212 = vmatpush1.msra.mxu0 0.0
    %1213 = vmatprep.subr.mxu0 0.0
    %1214 = vmatpush1.msra.mxu0 0.0
    %1215 = vmatprep.subr.mxu0 0.0
    %1216 = vmatpush1.msra.mxu0 0.0
    %1217 = vmatprep.subr.mxu0 0.0
    %1218 = vmatpush1.msra.mxu0 0.0
    %1219 = vmatprep.subr.mxu0 0.0
    %1220 = vmatpush1.msra.mxu0 0.0
    %1221 = vmatprep.subr.mxu0 0.0
    %1222 = vmatpush1.msra.mxu0 0.0
    %1223 = vmatprep.subr.mxu0 0.0
    %1224 = vmatpush1.msra.mxu0 0.0
    %1225 = vmatprep.subr.mxu0 0.0
    %1226 = vmatpush1.msra.mxu0 0.0
    %1227 = vmatprep.subr.mxu0 0.0
    %1228 = vmatpush1.msra.mxu0 0.0
    %1229 = vmatprep.subr.mxu0 0.0
    %1230 = vmatpush1.msra.mxu0 0.0
    %1231 = vmatprep.subr.mxu0 0.0
    %1232 = vmatpush1.msra.mxu0 0.0
    %1233 = vmatprep.mubr.f32.mxu0 0.0
    %1234 = vmatmul.mubr.f32.gmra.mrb[0].mxu0 %v1167
    %v1235 = vpop.f32.mrb[0].mxu0
    %v1236 = vadd.f32 %v315, %v1235
    %v1237 = vpop.f32.mrb[0].mxu0
    %1238 = vdwg.mxu0
    %v1239 = vxor.u32 %v1236, 2147483648
    %v1240 = vmul.f32 %v1239, 1.442695
    %v1241 = vpow.pop %v1240
    %v1242 = vadd.f32 %v1241, 1.0
    %v1243 = vrcp.pop %v1242
    %v1244 = vmul.f32 1.0, %v1243
    %v1245 = vtanh.pop %v1236
    %v1246 = vmul.f32 %v1244, %v1047
    %1248 = vrot.lane.b32.xlu0 %v1245, 64
    %v1249 = vpop.permute.xlu0 %1248
    %v1251 = vmul.f32 %v1244, %v1249
    %1253 = vrot.lane.b32.xlu0 %v1251, 32
    %v1254 = vpop.permute.xlu0 %1253
    %v1256 = vadd.f32 %v1246, %v1254
    %v1257 = vtanh.pop %v1256
    %1259 = vrot.lane.b32.xlu0 %v1257, 64
    %v1260 = vpop.permute.xlu0 %1259
    %v1262 = vmul.f32 %v1244, %v1260
    %v1263 = vsel %vm117, %v1159, 0
    %1265 = vmatprep.subr.mxu0 0.0
    %1266 = vmatpush1.msra.mxu0 %v199
    %1267 = vmatprep.subr.mxu0 0.0
    %1268 = vmatpush1.msra.mxu0 %v200
    %1269 = vmatprep.subr.mxu0 0.0
    %1270 = vmatpush1.msra.mxu0 0.0
    %1271 = vmatprep.subr.mxu0 0.0
    %1272 = vmatpush1.msra.mxu0 0.0
    %1273 = vmatprep.subr.mxu0 0.0
    %1274 = vmatpush1.msra.mxu0 0.0
    %1275 = vmatprep.subr.mxu0 0.0
    %1276 = vmatpush1.msra.mxu0 0.0
    %1277 = vmatprep.subr.mxu0 0.0
    %1278 = vmatpush1.msra.mxu0 0.0
    %1279 = vmatprep.subr.mxu0 0.0
    %1280 = vmatpush1.msra.mxu0 0.0
    %1281 = vmatprep.subr.mxu0 0.0
    %1282 = vmatpush1.msra.mxu0 0.0
    %1283 = vmatprep.subr.mxu0 0.0
    %1284 = vmatpush1.msra.mxu0 0.0
    %1285 = vmatprep.subr.mxu0 0.0
    %1286 = vmatpush1.msra.mxu0 0.0
    %1287 = vmatprep.subr.mxu0 0.0
    %1288 = vmatpush1.msra.mxu0 0.0
    %1289 = vmatprep.subr.mxu0 0.0
    %1290 = vmatpush1.msra.mxu0 0.0
    %1291 = vmatprep.subr.mxu0 0.0
    %1292 = vmatpush1.msra.mxu0 0.0
    %1293 = vmatprep.subr.mxu0 0.0
    %1294 = vmatpush1.msra.mxu0 0.0
    %1295 = vmatprep.subr.mxu0 0.0
    %1296 = vmatpush1.msra.mxu0 0.0
    %1297 = vmatprep.subr.mxu0 0.0
    %1298 = vmatpush1.msra.mxu0 0.0
    %1299 = vmatprep.subr.mxu0 0.0
    %1300 = vmatpush1.msra.mxu0 0.0
    %1301 = vmatprep.subr.mxu0 0.0
    %1302 = vmatpush1.msra.mxu0 0.0
    %1303 = vmatprep.subr.mxu0 0.0
    %1304 = vmatpush1.msra.mxu0 0.0
    %1305 = vmatprep.subr.mxu0 0.0
    %1306 = vmatpush1.msra.mxu0 0.0
    %1307 = vmatprep.subr.mxu0 0.0
    %1308 = vmatpush1.msra.mxu0 0.0
    %1309 = vmatprep.subr.mxu0 0.0
    %1310 = vmatpush1.msra.mxu0 0.0
    %1311 = vmatprep.subr.mxu0 0.0
    %1312 = vmatpush1.msra.mxu0 0.0
    %1313 = vmatprep.subr.mxu0 0.0
    %1314 = vmatpush1.msra.mxu0 0.0
    %1315 = vmatprep.subr.mxu0 0.0
    %1316 = vmatpush1.msra.mxu0 0.0
    %1317 = vmatprep.subr.mxu0 0.0
    %1318 = vmatpush1.msra.mxu0 0.0
    %1319 = vmatprep.subr.mxu0 0.0
    %1320 = vmatpush1.msra.mxu0 0.0
    %1321 = vmatprep.subr.mxu0 0.0
    %1322 = vmatpush1.msra.mxu0 0.0
    %1323 = vmatprep.subr.mxu0 0.0
    %1324 = vmatpush1.msra.mxu0 0.0
    %1325 = vmatprep.subr.mxu0 0.0
    %1326 = vmatpush1.msra.mxu0 0.0
    %1327 = vmatprep.subr.mxu0 0.0
    %1328 = vmatpush1.msra.mxu0 0.0
    %1329 = vmatprep.mubr.f32.mxu0 0.0
    %1330 = vmatmul.mubr.f32.gmra.mrb[0].mxu0 %v1263
    %v1331 = vpop.f32.mrb[0].mxu0
    %v1332 = vadd.f32 0.0, %v1331
    %v1333 = vpop.f32.mrb[0].mxu0
    %1334 = vdwg.mxu0
    %v1336 = vrot.slane %v1332, 6
    %v1338 = vadd.f32 %v196, %v1336
    %v1339 = vxor.u32 %v1338, 2147483648
    %v1340 = vmul.f32 %v1339, 1.442695
    %v1341 = vpow.pop %v1340
    %v1342 = vadd.f32 %v1341, 1.0
    %v1343 = vrcp.pop %v1342
    %v1344 = vmul.f32 1.0, %v1343
    %v1345 = vtanh.pop %v1338
    %v1347 = vrot.slane %v1150, 6
    %v1349 = vmul.f32 %v1344, %v1347
    %1351 = vrot.lane.b32.xlu0 %v1345, 96
    %v1352 = vpop.permute.xlu0 %1351
    %v1354 = vmul.f32 %v1344, %v1352
    %1356 = vrot.lane.b32.xlu0 %v1354, 16
    %v1357 = vpop.permute.xlu0 %1356
    %v1359 = vadd.f32 %v1349, %v1357
    %v1360 = vtanh.pop %v1359
    %1362 = vrot.lane.b32.xlu0 %v1360, 32
    %v1363 = vpop.permute.xlu0 %1362
    %v1365 = vmul.f32 %v1344, %v1363
    %1367 = vrot.lane.b32.xlu0 %v1365, 80
    %v1368 = vpop.permute.xlu0 %1367
    %v1371 = vrot.slane %v1262, 6
    %1372 = vrot.lane.b32.xlu0 %v1371, 48
    %v1373 = vpop.permute.xlu0 %1372
    %v1375 = vsel %vm117, %v1368, %v1373
    %v1377 = vrot.slane %v1375, 2
    %v1378 = vsel %vm317, %v1377, 0
    %1380 = vmatprep.subr.mxu0 0.0
    %1381 = vmatpush1.msra.mxu0 %v201
    %1382 = vmatprep.subr.mxu0 0.0
    %1383 = vmatpush1.msra.mxu0 %v202
    %1384 = vmatprep.subr.mxu0 0.0
    %1385 = vmatpush1.msra.mxu0 %v203
    %1386 = vmatprep.subr.mxu0 0.0
    %1387 = vmatpush1.msra.mxu0 %v204
    %1388 = vmatprep.subr.mxu0 0.0
    %1389 = vmatpush1.msra.mxu0 %v205
    %1390 = vmatprep.subr.mxu0 0.0
    %1391 = vmatpush1.msra.mxu0 %v206
    %1392 = vmatprep.subr.mxu0 0.0
    %1393 = vmatpush1.msra.mxu0 0.0
    %1394 = vmatprep.subr.mxu0 0.0
    %1395 = vmatpush1.msra.mxu0 0.0
    %1396 = vmatprep.subr.mxu0 0.0
    %1397 = vmatpush1.msra.mxu0 0.0
    %1398 = vmatprep.subr.mxu0 0.0
    %1399 = vmatpush1.msra.mxu0 0.0
    %1400 = vmatprep.subr.mxu0 0.0
    %1401 = vmatpush1.msra.mxu0 0.0
    %1402 = vmatprep.subr.mxu0 0.0
    %1403 = vmatpush1.msra.mxu0 0.0
    %1404 = vmatprep.subr.mxu0 0.0
    %1405 = vmatpush1.msra.mxu0 0.0
    %1406 = vmatprep.subr.mxu0 0.0
    %1407 = vmatpush1.msra.mxu0 0.0
    %1408 = vmatprep.subr.mxu0 0.0
    %1409 = vmatpush1.msra.mxu0 0.0
    %1410 = vmatprep.subr.mxu0 0.0
    %1411 = vmatpush1.msra.mxu0 0.0
    %1412 = vmatprep.subr.mxu0 0.0
    %1413 = vmatpush1.msra.mxu0 0.0
    %1414 = vmatprep.subr.mxu0 0.0
    %1415 = vmatpush1.msra.mxu0 0.0
    %1416 = vmatprep.subr.mxu0 0.0
    %1417 = vmatpush1.msra.mxu0 0.0
    %1418 = vmatprep.subr.mxu0 0.0
    %1419 = vmatpush1.msra.mxu0 0.0
    %1420 = vmatprep.subr.mxu0 0.0
    %1421 = vmatpush1.msra.mxu0 0.0
    %1422 = vmatprep.subr.mxu0 0.0
    %1423 = vmatpush1.msra.mxu0 0.0
    %1424 = vmatprep.subr.mxu0 0.0
    %1425 = vmatpush1.msra.mxu0 0.0
    %1426 = vmatprep.subr.mxu0 0.0
    %1427 = vmatpush1.msra.mxu0 0.0
    %1428 = vmatprep.subr.mxu0 0.0
    %1429 = vmatpush1.msra.mxu0 0.0
    %1430 = vmatprep.subr.mxu0 0.0
    %1431 = vmatpush1.msra.mxu0 0.0
    %1432 = vmatprep.subr.mxu0 0.0
    %1433 = vmatpush1.msra.mxu0 0.0
    %1434 = vmatprep.subr.mxu0 0.0
    %1435 = vmatpush1.msra.mxu0 0.0
    %1436 = vmatprep.subr.mxu0 0.0
    %1437 = vmatpush1.msra.mxu0 0.0
    %1438 = vmatprep.subr.mxu0 0.0
    %1439 = vmatpush1.msra.mxu0 0.0
    %1440 = vmatprep.subr.mxu0 0.0
    %1441 = vmatpush1.msra.mxu0 0.0
    %1442 = vmatprep.subr.mxu0 0.0
    %1443 = vmatpush1.msra.mxu0 0.0
    %1444 = vmatprep.mubr.f32.mxu0 0.0
    %1445 = vmatmul.mubr.f32.gmra.mrb[0].mxu0 %v1378
    %v1446 = vpop.f32.mrb[0].mxu0
    %v1447 = vadd.f32 %v315, %v1446
    %v1448 = vpop.f32.mrb[0].mxu0
    %1449 = vdwg.mxu0
    %v1450 = vxor.u32 %v1447, 2147483648
    %v1451 = vmul.f32 %v1450, 1.442695
    %v1452 = vpow.pop %v1451
    %v1453 = vadd.f32 %v1452, 1.0
    %v1454 = vrcp.pop %v1453
    %v1455 = vmul.f32 1.0, %v1454
    %v1456 = vtanh.pop %v1447
    %v1457 = vmul.f32 %v1455, %v1256
    %1459 = vrot.lane.b32.xlu0 %v1456, 64
    %v1460 = vpop.permute.xlu0 %1459
    %v1462 = vmul.f32 %v1455, %v1460
    %1464 = vrot.lane.b32.xlu0 %v1462, 32
    %v1465 = vpop.permute.xlu0 %1464
    %v1467 = vadd.f32 %v1457, %v1465
    %v1468 = vtanh.pop %v1467
    %1470 = vrot.lane.b32.xlu0 %v1468, 64
    %v1471 = vpop.permute.xlu0 %1470
    %v1473 = vmul.f32 %v1455, %v1471
    %v1474 = vrot.slane %v1365, 2
    %1475 = vrot.lane.b32.xlu0 %v1474, 80
    %v1476 = vpop.permute.xlu0 %1475
    %v1477 = vsel %vm117, %v1476, 0
    %1479 = vmatprep.subr.mxu0 0.0
    %1480 = vmatpush1.msra.mxu0 %v199
    %1481 = vmatprep.subr.mxu0 0.0
    %1482 = vmatpush1.msra.mxu0 %v200
    %1483 = vmatprep.subr.mxu0 0.0
    %1484 = vmatpush1.msra.mxu0 0.0
    %1485 = vmatprep.subr.mxu0 0.0
    %1486 = vmatpush1.msra.mxu0 0.0
    %1487 = vmatprep.subr.mxu0 0.0
    %1488 = vmatpush1.msra.mxu0 0.0
    %1489 = vmatprep.subr.mxu0 0.0
    %1490 = vmatpush1.msra.mxu0 0.0
    %1491 = vmatprep.subr.mxu0 0.0
    %1492 = vmatpush1.msra.mxu0 0.0
    %1493 = vmatprep.subr.mxu0 0.0
    %1494 = vmatpush1.msra.mxu0 0.0
    %1495 = vmatprep.subr.mxu0 0.0
    %1496 = vmatpush1.msra.mxu0 0.0
    %1497 = vmatprep.subr.mxu0 0.0
    %1498 = vmatpush1.msra.mxu0 0.0
    %1499 = vmatprep.subr.mxu0 0.0
    %1500 = vmatpush1.msra.mxu0 0.0
    %1501 = vmatprep.subr.mxu0 0.0
    %1502 = vmatpush1.msra.mxu0 0.0
    %1503 = vmatprep.subr.mxu0 0.0
    %1504 = vmatpush1.msra.mxu0 0.0
    %1505 = vmatprep.subr.mxu0 0.0
    %1506 = vmatpush1.msra.mxu0 0.0
    %1507 = vmatprep.subr.mxu0 0.0
    %1508 = vmatpush1.msra.mxu0 0.0
    %1509 = vmatprep.subr.mxu0 0.0
    %1510 = vmatpush1.msra.mxu0 0.0
    %1511 = vmatprep.subr.mxu0 0.0
    %1512 = vmatpush1.msra.mxu0 0.0
    %1513 = vmatprep.subr.mxu0 0.0
    %1514 = vmatpush1.msra.mxu0 0.0
    %1515 = vmatprep.subr.mxu0 0.0
    %1516 = vmatpush1.msra.mxu0 0.0
    %1517 = vmatprep.subr.mxu0 0.0
    %1518 = vmatpush1.msra.mxu0 0.0
    %1519 = vmatprep.subr.mxu0 0.0
    %1520 = vmatpush1.msra.mxu0 0.0
    %1521 = vmatprep.subr.mxu0 0.0
    %1522 = vmatpush1.msra.mxu0 0.0
    %1523 = vmatprep.subr.mxu0 0.0
    %1524 = vmatpush1.msra.mxu0 0.0
    %1525 = vmatprep.subr.mxu0 0.0
    %1526 = vmatpush1.msra.mxu0 0.0
    %1527 = vmatprep.subr.mxu0 0.0
    %1528 = vmatpush1.msra.mxu0 0.0
    %1529 = vmatprep.subr.mxu0 0.0
    %1530 = vmatpush1.msra.mxu0 0.0
    %1531 = vmatprep.subr.mxu0 0.0
    %1532 = vmatpush1.msra.mxu0 0.0
    %1533 = vmatprep.subr.mxu0 0.0
    %1534 = vmatpush1.msra.mxu0 0.0
    %1535 = vmatprep.subr.mxu0 0.0
    %1536 = vmatpush1.msra.mxu0 0.0
    %1537 = vmatprep.subr.mxu0 0.0
    %1538 = vmatpush1.msra.mxu0 0.0
    %1539 = vmatprep.subr.mxu0 0.0
    %1540 = vmatpush1.msra.mxu0 0.0
    %1541 = vmatprep.subr.mxu0 0.0
    %1542 = vmatpush1.msra.mxu0 0.0
    %1543 = vmatprep.mubr.f32.mxu0 0.0
    %1544 = vmatmul.mubr.f32.gmra.mrb[0].mxu0 %v1477
    %v1545 = vpop.f32.mrb[0].mxu0
    %v1546 = vadd.f32 0.0, %v1545
    %v1547 = vpop.f32.mrb[0].mxu0
    %1548 = vdwg.mxu0
    %v1550 = vrot.slane %v1546, 4
    %v1552 = vadd.f32 %v196, %v1550
    %v1553 = vxor.u32 %v1552, 2147483648
    %v1554 = vmul.f32 %v1553, 1.442695
    %v1555 = vpow.pop %v1554
    %v1556 = vadd.f32 %v1555, 1.0
    %v1557 = vrcp.pop %v1556
    %v1558 = vmul.f32 1.0, %v1557
    %v1559 = vtanh.pop %v1552
    %v1561 = vrot.slane %v1359, 6
    %v1563 = vmul.f32 %v1558, %v1561
    %1565 = vrot.lane.b32.xlu0 %v1559, 96
    %v1566 = vpop.permute.xlu0 %1565
    %v1568 = vmul.f32 %v1558, %v1566
    %1570 = vrot.lane.b32.xlu0 %v1568, 16
    %v1571 = vpop.permute.xlu0 %1570
    %v1573 = vadd.f32 %v1563, %v1571
    %v1574 = vtanh.pop %v1573
    %1576 = vrot.lane.b32.xlu0 %v1574, 32
    %v1577 = vpop.permute.xlu0 %1576
    %v1579 = vmul.f32 %v1558, %v1577
    %1581 = vrot.lane.b32.xlu0 %v1579, 80
    %v1582 = vpop.permute.xlu0 %1581
    %v1585 = vrot.slane %v1473, 4
    %1586 = vrot.lane.b32.xlu0 %v1585, 48
    %v1587 = vpop.permute.xlu0 %1586
    %v1589 = vsel %vm117, %v1582, %v1587
    %v1591 = vrot.slane %v1589, 4
    %v1592 = vsel %vm317, %v1591, 0
    %1594 = vmatprep.subr.mxu0 0.0
    %1595 = vmatpush1.msra.mxu0 %v201
    %1596 = vmatprep.subr.mxu0 0.0
    %1597 = vmatpush1.msra.mxu0 %v202
    %1598 = vmatprep.subr.mxu0 0.0
    %1599 = vmatpush1.msra.mxu0 %v203
    %1600 = vmatprep.subr.mxu0 0.0
    %1601 = vmatpush1.msra.mxu0 %v204
    %1602 = vmatprep.subr.mxu0 0.0
    %1603 = vmatpush1.msra.mxu0 %v205
    %1604 = vmatprep.subr.mxu0 0.0
    %1605 = vmatpush1.msra.mxu0 %v206
    %1606 = vmatprep.subr.mxu0 0.0
    %1607 = vmatpush1.msra.mxu0 0.0
    %1608 = vmatprep.subr.mxu0 0.0
    %1609 = vmatpush1.msra.mxu0 0.0
    %1610 = vmatprep.subr.mxu0 0.0
    %1611 = vmatpush1.msra.mxu0 0.0
    %1612 = vmatprep.subr.mxu0 0.0
    %1613 = vmatpush1.msra.mxu0 0.0
    %1614 = vmatprep.subr.mxu0 0.0
    %1615 = vmatpush1.msra.mxu0 0.0
    %1616 = vmatprep.subr.mxu0 0.0
    %1617 = vmatpush1.msra.mxu0 0.0
    %1618 = vmatprep.subr.mxu0 0.0
    %1619 = vmatpush1.msra.mxu0 0.0
    %1620 = vmatprep.subr.mxu0 0.0
    %1621 = vmatpush1.msra.mxu0 0.0
    %1622 = vmatprep.subr.mxu0 0.0
    %1623 = vmatpush1.msra.mxu0 0.0
    %1624 = vmatprep.subr.mxu0 0.0
    %1625 = vmatpush1.msra.mxu0 0.0
    %1626 = vmatprep.subr.mxu0 0.0
    %1627 = vmatpush1.msra.mxu0 0.0
    %1628 = vmatprep.subr.mxu0 0.0
    %1629 = vmatpush1.msra.mxu0 0.0
    %1630 = vmatprep.subr.mxu0 0.0
    %1631 = vmatpush1.msra.mxu0 0.0
    %1632 = vmatprep.subr.mxu0 0.0
    %1633 = vmatpush1.msra.mxu0 0.0
    %1634 = vmatprep.subr.mxu0 0.0
    %1635 = vmatpush1.msra.mxu0 0.0
    %1636 = vmatprep.subr.mxu0 0.0
    %1637 = vmatpush1.msra.mxu0 0.0
    %1638 = vmatprep.subr.mxu0 0.0
    %1639 = vmatpush1.msra.mxu0 0.0
    %1640 = vmatprep.subr.mxu0 0.0
    %1641 = vmatpush1.msra.mxu0 0.0
    %1642 = vmatprep.subr.mxu0 0.0
    %1643 = vmatpush1.msra.mxu0 0.0
    %1644 = vmatprep.subr.mxu0 0.0
    %1645 = vmatpush1.msra.mxu0 0.0
    %1646 = vmatprep.subr.mxu0 0.0
    %1647 = vmatpush1.msra.mxu0 0.0
    %1648 = vmatprep.subr.mxu0 0.0
    %1649 = vmatpush1.msra.mxu0 0.0
    %1650 = vmatprep.subr.mxu0 0.0
    %1651 = vmatpush1.msra.mxu0 0.0
    %1652 = vmatprep.subr.mxu0 0.0
    %1653 = vmatpush1.msra.mxu0 0.0
    %1654 = vmatprep.subr.mxu0 0.0
    %1655 = vmatpush1.msra.mxu0 0.0
    %1656 = vmatprep.subr.mxu0 0.0
    %1657 = vmatpush1.msra.mxu0 0.0
    %1658 = vmatprep.mubr.f32.mxu0 0.0
    %1659 = vmatmul.mubr.f32.gmra.mrb[0].mxu0 %v1592
    %v1660 = vpop.f32.mrb[0].mxu0
    %v1661 = vadd.f32 %v315, %v1660
    %v1662 = vpop.f32.mrb[0].mxu0
    %1663 = vdwg.mxu0
    %v1664 = vxor.u32 %v1661, 2147483648
    %v1665 = vmul.f32 %v1664, 1.442695
    %v1666 = vpow.pop %v1665
    %v1667 = vadd.f32 %v1666, 1.0
    %v1668 = vrcp.pop %v1667
    %v1669 = vmul.f32 1.0, %v1668
    %v1670 = vtanh.pop %v1661
    %v1671 = vmul.f32 %v1669, %v1467
    %1673 = vrot.lane.b32.xlu0 %v1670, 64
    %v1674 = vpop.permute.xlu0 %1673
    %v1676 = vmul.f32 %v1669, %v1674
    %1678 = vrot.lane.b32.xlu0 %v1676, 32
    %v1679 = vpop.permute.xlu0 %1678
    %v1681 = vadd.f32 %v1671, %v1679
    %v1682 = vtanh.pop %v1681
    %1684 = vrot.lane.b32.xlu0 %v1682, 64
    %v1685 = vpop.permute.xlu0 %1684
    %v1687 = vmul.f32 %v1669, %v1685
    %v1688 = vrot.slane %v1579, 4
    %1689 = vrot.lane.b32.xlu0 %v1688, 80
    %v1690 = vpop.permute.xlu0 %1689
    %v1691 = vsel %vm117, %v1690, 0
    %1693 = vmatprep.subr.mxu0 0.0
    %1694 = vmatpush1.msra.mxu0 %v199
    %1695 = vmatprep.subr.mxu0 0.0
    %1696 = vmatpush1.msra.mxu0 %v200
    %1697 = vmatprep.subr.mxu0 0.0
    %1698 = vmatpush1.msra.mxu0 0.0
    %1699 = vmatprep.subr.mxu0 0.0
    %1700 = vmatpush1.msra.mxu0 0.0
    %1701 = vmatprep.subr.mxu0 0.0
    %1702 = vmatpush1.msra.mxu0 0.0
    %1703 = vmatprep.subr.mxu0 0.0
    %1704 = vmatpush1.msra.mxu0 0.0
    %1705 = vmatprep.subr.mxu0 0.0
    %1706 = vmatpush1.msra.mxu0 0.0
    %1707 = vmatprep.subr.mxu0 0.0
    %1708 = vmatpush1.msra.mxu0 0.0
    %1709 = vmatprep.subr.mxu0 0.0
    %1710 = vmatpush1.msra.mxu0 0.0
    %1711 = vmatprep.subr.mxu0 0.0
    %1712 = vmatpush1.msra.mxu0 0.0
    %1713 = vmatprep.subr.mxu0 0.0
    %1714 = vmatpush1.msra.mxu0 0.0
    %1715 = vmatprep.subr.mxu0 0.0
    %1716 = vmatpush1.msra.mxu0 0.0
    %1717 = vmatprep.subr.mxu0 0.0
    %1718 = vmatpush1.msra.mxu0 0.0
    %1719 = vmatprep.subr.mxu0 0.0
    %1720 = vmatpush1.msra.mxu0 0.0
    %1721 = vmatprep.subr.mxu0 0.0
    %1722 = vmatpush1.msra.mxu0 0.0
    %1723 = vmatprep.subr.mxu0 0.0
    %1724 = vmatpush1.msra.mxu0 0.0
    %1725 = vmatprep.subr.mxu0 0.0
    %1726 = vmatpush1.msra.mxu0 0.0
    %1727 = vmatprep.subr.mxu0 0.0
    %1728 = vmatpush1.msra.mxu0 0.0
    %1729 = vmatprep.subr.mxu0 0.0
    %1730 = vmatpush1.msra.mxu0 0.0
    %1731 = vmatprep.subr.mxu0 0.0
    %1732 = vmatpush1.msra.mxu0 0.0
    %1733 = vmatprep.subr.mxu0 0.0
    %1734 = vmatpush1.msra.mxu0 0.0
    %1735 = vmatprep.subr.mxu0 0.0
    %1736 = vmatpush1.msra.mxu0 0.0
    %1737 = vmatprep.subr.mxu0 0.0
    %1738 = vmatpush1.msra.mxu0 0.0
    %1739 = vmatprep.subr.mxu0 0.0
    %1740 = vmatpush1.msra.mxu0 0.0
    %1741 = vmatprep.subr.mxu0 0.0
    %1742 = vmatpush1.msra.mxu0 0.0
    %1743 = vmatprep.subr.mxu0 0.0
    %1744 = vmatpush1.msra.mxu0 0.0
    %1745 = vmatprep.subr.mxu0 0.0
    %1746 = vmatpush1.msra.mxu0 0.0
    %1747 = vmatprep.subr.mxu0 0.0
    %1748 = vmatpush1.msra.mxu0 0.0
    %1749 = vmatprep.subr.mxu0 0.0
    %1750 = vmatpush1.msra.mxu0 0.0
    %1751 = vmatprep.subr.mxu0 0.0
    %1752 = vmatpush1.msra.mxu0 0.0
    %1753 = vmatprep.subr.mxu0 0.0
    %1754 = vmatpush1.msra.mxu0 0.0
    %1755 = vmatprep.subr.mxu0 0.0
    %1756 = vmatpush1.msra.mxu0 0.0
    %1757 = vmatprep.mubr.f32.mxu0 0.0
    %1758 = vmatmul.mubr.f32.gmra.mrb[0].mxu0 %v1691
    %v1759 = vpop.f32.mrb[0].mxu0
    %v1760 = vadd.f32 0.0, %v1759
    %v1761 = vpop.f32.mrb[0].mxu0
    %1762 = vdwg.mxu0
    %v1764 = vrot.slane %v1760, 2
    %v1766 = vadd.f32 %v196, %v1764
    %v1767 = vxor.u32 %v1766, 2147483648
    %v1768 = vmul.f32 %v1767, 1.442695
    %v1769 = vpow.pop %v1768
    %v1770 = vadd.f32 %v1769, 1.0
    %v1771 = vrcp.pop %v1770
    %v1772 = vmul.f32 1.0, %v1771
    %v1773 = vtanh.pop %v1766
    %v1775 = vrot.slane %v1573, 6
    %v1777 = vmul.f32 %v1772, %v1775
    %1779 = vrot.lane.b32.xlu0 %v1773, 96
    %v1780 = vpop.permute.xlu0 %1779
    %v1782 = vmul.f32 %v1772, %v1780
    %1784 = vrot.lane.b32.xlu0 %v1782, 16
    %v1785 = vpop.permute.xlu0 %1784
    %v1787 = vadd.f32 %v1777, %v1785
    %v1788 = vtanh.pop %v1787
    %1790 = vrot.lane.b32.xlu0 %v1788, 32
    %v1791 = vpop.permute.xlu0 %1790
    %v1793 = vmul.f32 %v1772, %v1791
    %1795 = vrot.lane.b32.xlu0 %v1793, 80
    %v1796 = vpop.permute.xlu0 %1795
    %v1799 = vrot.slane %v1687, 2
    %1800 = vrot.lane.b32.xlu0 %v1799, 48
    %v1801 = vpop.permute.xlu0 %1800
    %v1803 = vsel %vm117, %v1796, %v1801
    %v1805 = vrot.slane %v1803, 6
    %v1806 = vsel %vm317, %v1805, 0
    %1808 = vmatprep.subr.mxu0 0.0
    %1809 = vmatpush1.msra.mxu0 %v201
    %1810 = vmatprep.subr.mxu0 0.0
    %1811 = vmatpush1.msra.mxu0 %v202
    %1812 = vmatprep.subr.mxu0 0.0
    %1813 = vmatpush1.msra.mxu0 %v203
    %1814 = vmatprep.subr.mxu0 0.0
    %1815 = vmatpush1.msra.mxu0 %v204
    %1816 = vmatprep.subr.mxu0 0.0
    %1817 = vmatpush1.msra.mxu0 %v205
    %1818 = vmatprep.subr.mxu0 0.0
    %1819 = vmatpush1.msra.mxu0 %v206
    %1820 = vmatprep.subr.mxu0 0.0
    %1821 = vmatpush1.msra.mxu0 0.0
    %1822 = vmatprep.subr.mxu0 0.0
    %1823 = vmatpush1.msra.mxu0 0.0
    %1824 = vmatprep.subr.mxu0 0.0
    %1825 = vmatpush1.msra.mxu0 0.0
    %1826 = vmatprep.subr.mxu0 0.0
    %1827 = vmatpush1.msra.mxu0 0.0
    %1828 = vmatprep.subr.mxu0 0.0
    %1829 = vmatpush1.msra.mxu0 0.0
    %1830 = vmatprep.subr.mxu0 0.0
    %1831 = vmatpush1.msra.mxu0 0.0
    %1832 = vmatprep.subr.mxu0 0.0
    %1833 = vmatpush1.msra.mxu0 0.0
    %1834 = vmatprep.subr.mxu0 0.0
    %1835 = vmatpush1.msra.mxu0 0.0
    %1836 = vmatprep.subr.mxu0 0.0
    %1837 = vmatpush1.msra.mxu0 0.0
    %1838 = vmatprep.subr.mxu0 0.0
    %1839 = vmatpush1.msra.mxu0 0.0
    %1840 = vmatprep.subr.mxu0 0.0
    %1841 = vmatpush1.msra.mxu0 0.0
    %1842 = vmatprep.subr.mxu0 0.0
    %1843 = vmatpush1.msra.mxu0 0.0
    %1844 = vmatprep.subr.mxu0 0.0
    %1845 = vmatpush1.msra.mxu0 0.0
    %1846 = vmatprep.subr.mxu0 0.0
    %1847 = vmatpush1.msra.mxu0 0.0
    %1848 = vmatprep.subr.mxu0 0.0
    %1849 = vmatpush1.msra.mxu0 0.0
    %1850 = vmatprep.subr.mxu0 0.0
    %1851 = vmatpush1.msra.mxu0 0.0
    %1852 = vmatprep.subr.mxu0 0.0
    %1853 = vmatpush1.msra.mxu0 0.0
    %1854 = vmatprep.subr.mxu0 0.0
    %1855 = vmatpush1.msra.mxu0 0.0
    %1856 = vmatprep.subr.mxu0 0.0
    %1857 = vmatpush1.msra.mxu0 0.0
    %1858 = vmatprep.subr.mxu0 0.0
    %1859 = vmatpush1.msra.mxu0 0.0
    %1860 = vmatprep.subr.mxu0 0.0
    %1861 = vmatpush1.msra.mxu0 0.0
    %1862 = vmatprep.subr.mxu0 0.0
    %1863 = vmatpush1.msra.mxu0 0.0
    %1864 = vmatprep.subr.mxu0 0.0
    %1865 = vmatpush1.msra.mxu0 0.0
    %1866 = vmatprep.subr.mxu0 0.0
    %1867 = vmatpush1.msra.mxu0 0.0
    %1868 = vmatprep.subr.mxu0 0.0
    %1869 = vmatpush1.msra.mxu0 0.0
    %1870 = vmatprep.subr.mxu0 0.0
    %1871 = vmatpush1.msra.mxu0 0.0
    %1872 = vmatprep.mubr.f32.mxu0 0.0
    %1873 = vmatmul.mubr.f32.gmra.mrb[0].mxu0 %v1806
    %v1874 = vpop.f32.mrb[0].mxu0
    %v1875 = vadd.f32 %v315, %v1874
    %v1876 = vpop.f32.mrb[0].mxu0
    %1877 = vdwg.mxu0
    %v1878 = vxor.u32 %v1875, 2147483648
    %v1879 = vmul.f32 %v1878, 1.442695
    %v1880 = vpow.pop %v1879
    %v1881 = vadd.f32 %v1880, 1.0
    %v1882 = vrcp.pop %v1881
    %v1883 = vmul.f32 1.0, %v1882
    %v1884 = vtanh.pop %v1875
    %v1885 = vmul.f32 %v1883, %v1681
    %1887 = vrot.lane.b32.xlu0 %v1884, 64
    %v1888 = vpop.permute.xlu0 %1887
    %v1890 = vmul.f32 %v1883, %v1888
    %1892 = vrot.lane.b32.xlu0 %v1890, 32
    %v1893 = vpop.permute.xlu0 %1892
    %v1895 = vadd.f32 %v1885, %v1893
    %v1896 = vtanh.pop %v1895
    %1898 = vrot.lane.b32.xlu0 %v1896, 64
    %v1899 = vpop.permute.xlu0 %1898
    %v1901 = vmul.f32 %v1883, %v1899
    %v1902 = vrot.slane %v625, 6
    %v1904 = vrot.slane %v839, 4
    %v1906 = vrot.slane %v1053, 2
    %v1908 = vrot.slane %v1473, 6
    %v1910 = vrot.slane %v1687, 4
    %v1913 = vrot.slane %v1901, 2
    %vm1915 = vcmask 1041408
    %v1916 = vsel %vm1915, %v414, %v1902
    %vm1917 = vcmask 1043456
    %v1918 = vsel %vm1917, %v1916, %v1904
    %vm1919 = vcmask 1045504
    %v1920 = vsel %vm1919, %v1918, %v1906
    %v1921 = vsel %vm1915, %v1262, %v1908
    %v1922 = vsel %vm1917, %v1921, %v1910
    %v1923 = vsel %vm1919, %v1922, %v1913
    %v1924 = vpack.c.bf16 %v1923, %v1920
    %v1925 = vld [vmem:[%s6] sm:$0xff]
    %v1926 = vld [vmem:[%s6 + $0x8] sm:$0xff]
    %v1927 = vld [vmem:[%s6 + $0x10] sm:$0xff]
    %v1928 = vld [vmem:[%s6 + $0x18] sm:$0xff]
    %v1929 = vld [vmem:[%s6 + $0x20] sm:$0xff]
    %v1930 = vld [vmem:[%s6 + $0x28] sm:$0xff]
    %v1931 = vld [vmem:[%s6 + $0x30] sm:$0xff]
    %v1932 = vld [vmem:[%s6 + $0x38] sm:$0xff]
    %v1933 = vld [vmem:[%s6 + $0x40] sm:$0xff]
    %v1934 = vld [vmem:[%s6 + $0x48] sm:$0xff]
    %v1935 = vld [vmem:[%s6 + $0x50] sm:$0xff]
    %v1936 = vld [vmem:[%s6 + $0x58] sm:$0xff]
    %v1937 = vld [vmem:[%s6 + $0x60] sm:$0xff]
    %v1938 = vld [vmem:[%s6 + $0x68] sm:$0xff]
    %v1939 = vld [vmem:[%s6 + $0x70] sm:$0xff]
    %v1940 = vld [vmem:[%s6 + $0x78] sm:$0xff]
    %v1941 = vld [vmem:[%s6 + $0x80] sm:$0xff]
    %v1942 = vld [vmem:[%s6 + $0x88] sm:$0xff]
    %v1943 = vld [vmem:[%s6 + $0x90] sm:$0xff]
    %v1944 = vld [vmem:[%s6 + $0x98] sm:$0xff]
    %v1945 = vld [vmem:[%s6 + $0xa0] sm:$0xff]
    %v1946 = vld [vmem:[%s6 + $0xa8] sm:$0xff]
    %v1947 = vld [vmem:[%s6 + $0xb0] sm:$0xff]
    %v1948 = vld [vmem:[%s6 + $0xb8] sm:$0xff]
    %v1949 = vld [vmem:[%s6 + $0xc0] sm:$0xff]
    %v1950 = vld [vmem:[%s6 + $0xc8] sm:$0xff]
    %v1951 = vld [vmem:[%s6 + $0xd0] sm:$0xff]
    %v1952 = vld [vmem:[%s6 + $0xd8] sm:$0xff]
    %v1953 = vld [vmem:[%s6 + $0xe0] sm:$0xff]
    %v1954 = vld [vmem:[%s6 + $0xe8] sm:$0xff]
    %v1955 = vld [vmem:[%s6 + $0xf0] sm:$0xff]
    %v1956 = vld [vmem:[%s6 + $0xf8] sm:$0xff]
    %v1957 = vld [vmem:[#allocation10] sm:$0xff]
    %v1958 = vld [vmem:[#allocation10 + $0x8] sm:$0xff]
    %v1961 = vlaneseq
    %v1962 = vshrl.u32 %v1961, 7
    %v1963 = vsub.s32 0, %v1962
    %v1964 = vrot.slane %v1957, %v1963
    %v1965 = vlaneseq
    %v1966 = vshrl.u32 %v1965, 7
    %v1967 = vsub.s32 1, %v1966
    %v1968 = vrot.slane %v1957, %v1967
    %v1969 = vlaneseq
    %v1970 = vshrl.u32 %v1969, 7
    %v1971 = vsub.s32 2, %v1970
    %v1972 = vrot.slane %v1957, %v1971
    %v1973 = vlaneseq
    %v1974 = vshrl.u32 %v1973, 7
    %v1975 = vsub.s32 3, %v1974
    %v1976 = vrot.slane %v1957, %v1975
    %v1977 = vlaneseq
    %v1978 = vshrl.u32 %v1977, 7
    %v1979 = vsub.s32 4, %v1978
    %v1980 = vrot.slane %v1957, %v1979
    %v1981 = vlaneseq
    %v1982 = vshrl.u32 %v1981, 7
    %v1983 = vsub.s32 5, %v1982
    %v1984 = vrot.slane %v1957, %v1983
    %v1985 = vlaneseq
    %v1986 = vshrl.u32 %v1985, 7
    %v1987 = vsub.s32 6, %v1986
    %v1988 = vrot.slane %v1957, %v1987
    %v1989 = vlaneseq
    %v1990 = vshrl.u32 %v1989, 7
    %v1991 = vsub.s32 7, %v1990
    %v1992 = vrot.slane %v1957, %v1991
    %v1993 = vlaneseq
    %v1994 = vshrl.u32 %v1993, 7
    %v1995 = vsub.s32 0, %v1994
    %v1996 = vrot.slane %v1958, %v1995
    %v1997 = vlaneseq
    %v1998 = vshrl.u32 %v1997, 7
    %v1999 = vsub.s32 1, %v1998
    %v2000 = vrot.slane %v1958, %v1999
    %v2001 = vlaneseq
    %v2002 = vshrl.u32 %v2001, 7
    %v2003 = vsub.s32 2, %v2002
    %v2004 = vrot.slane %v1958, %v2003
    %v2005 = vlaneseq
    %v2006 = vshrl.u32 %v2005, 7
    %v2007 = vsub.s32 3, %v2006
    %v2008 = vrot.slane %v1958, %v2007
    %v2009 = vlaneseq
    %v2010 = vshrl.u32 %v2009, 7
    %v2011 = vsub.s32 4, %v2010
    %v2012 = vrot.slane %v1958, %v2011
    %v2013 = vlaneseq
    %v2014 = vshrl.u32 %v2013, 7
    %v2015 = vsub.s32 5, %v2014
    %v2016 = vrot.slane %v1958, %v2015
    %v2017 = vlaneseq
    %v2018 = vshrl.u32 %v2017, 7
    %v2019 = vsub.s32 6, %v2018
    %v2020 = vrot.slane %v1958, %v2019
    %v2021 = vlaneseq
    %v2022 = vshrl.u32 %v2021, 7
    %v2023 = vsub.s32 7, %v2022
    %v2024 = vrot.slane %v1958, %v2023
    %2042 = vrot.lane.b32.xlu0 %v1924, 32
    %v2043 = vpop.permute.xlu0 %2042
    %v2076 = vunpack.c.l.b16 %v1925
    %v2077 = vunpack.c.h.b16 %v1925
    %v2078 = vunpack.c.l.b16 %v1926
    %v2079 = vunpack.c.h.b16 %v1926
    %v2080 = vunpack.c.l.b16 %v1927
    %v2081 = vunpack.c.h.b16 %v1927
    %v2082 = vunpack.c.l.b16 %v1928
    %v2083 = vunpack.c.h.b16 %v1928
    %v2084 = vunpack.c.l.b16 %v1929
    %v2085 = vunpack.c.h.b16 %v1929
    %v2086 = vunpack.c.l.b16 %v1930
    %v2087 = vunpack.c.h.b16 %v1930
    %v2088 = vunpack.c.l.b16 %v1931
    %v2089 = vunpack.c.h.b16 %v1931
    %v2090 = vunpack.c.l.b16 %v1932
    %v2091 = vunpack.c.h.b16 %v1932
    %v2092 = vunpack.c.l.b16 %v1933
    %v2093 = vunpack.c.h.b16 %v1933
    %v2094 = vunpack.c.l.b16 %v1934
    %v2095 = vunpack.c.h.b16 %v1934
    %v2096 = vunpack.c.l.b16 %v1935
    %v2097 = vunpack.c.h.b16 %v1935
    %v2098 = vunpack.c.l.b16 %v1936
    %v2099 = vunpack.c.h.b16 %v1936
    %v2100 = vunpack.c.l.b16 %v1937
    %v2101 = vunpack.c.h.b16 %v1937
    %v2102 = vunpack.c.l.b16 %v1938
    %v2103 = vunpack.c.h.b16 %v1938
    %v2104 = vunpack.c.l.b16 %v1939
    %v2105 = vunpack.c.h.b16 %v1939
    %v2106 = vunpack.c.l.b16 %v1940
    %v2107 = vunpack.c.h.b16 %v1940
    %v2108 = vunpack.c.l.b16 %v1941
    %v2109 = vunpack.c.h.b16 %v1941
    %v2110 = vunpack.c.l.b16 %v1942
    %v2111 = vunpack.c.h.b16 %v1942
    %v2112 = vunpack.c.l.b16 %v1943
    %v2113 = vunpack.c.h.b16 %v1943
    %v2114 = vunpack.c.l.b16 %v1944
    %v2115 = vunpack.c.h.b16 %v1944
    %v2116 = vunpack.c.l.b16 %v1945
    %v2117 = vunpack.c.h.b16 %v1945
    %v2118 = vunpack.c.l.b16 %v1946
    %v2119 = vunpack.c.h.b16 %v1946
    %v2120 = vunpack.c.l.b16 %v1947
    %v2121 = vunpack.c.h.b16 %v1947
    %v2122 = vunpack.c.l.b16 %v1948
    %v2123 = vunpack.c.h.b16 %v1948
    %v2124 = vunpack.c.l.b16 %v1949
    %v2125 = vunpack.c.h.b16 %v1949
    %v2126 = vunpack.c.l.b16 %v1950
    %v2127 = vunpack.c.h.b16 %v1950
    %v2128 = vunpack.c.l.b16 %v1951
    %v2129 = vunpack.c.h.b16 %v1951
    %v2130 = vunpack.c.l.b16 %v1952
    %v2131 = vunpack.c.h.b16 %v1952
    %v2132 = vunpack.c.l.b16 %v1953
    %v2133 = vunpack.c.h.b16 %v1953
    %v2134 = vunpack.c.l.b16 %v1954
    %v2135 = vunpack.c.h.b16 %v1954
    %v2136 = vunpack.c.l.b16 %v1955
    %v2137 = vunpack.c.h.b16 %v1955
    %v2138 = vunpack.c.l.b16 %v1956
    %v2139 = vunpack.c.h.b16 %v1956
    %v2140 = vpack.c.b16 %v2092, %v2076
    %v2141 = vpack.c.b16 %v2093, %v2077
    %v2142 = vpack.c.b16 %v2094, %v2078
    %v2143 = vpack.c.b16 %v2095, %v2079
    %v2144 = vpack.c.b16 %v2096, %v2080
    %v2145 = vpack.c.b16 %v2097, %v2081
    %v2146 = vpack.c.b16 %v2098, %v2082
    %v2147 = vpack.c.b16 %v2099, %v2083
    %v2148 = vpack.c.b16 %v2100, %v2084
    %v2149 = vpack.c.b16 %v2101, %v2085
    %v2150 = vpack.c.b16 %v2102, %v2086
    %v2151 = vpack.c.b16 %v2103, %v2087
    %v2152 = vpack.c.b16 %v2104, %v2088
    %v2153 = vpack.c.b16 %v2105, %v2089
    %v2154 = vpack.c.b16 %v2106, %v2090
    %v2155 = vpack.c.b16 %v2107, %v2091
    %v2156 = vpack.c.b16 %v2124, %v2108
    %v2157 = vpack.c.b16 %v2125, %v2109
    %v2158 = vpack.c.b16 %v2126, %v2110
    %v2159 = vpack.c.b16 %v2127, %v2111
    %v2160 = vpack.c.b16 %v2128, %v2112
    %v2161 = vpack.c.b16 %v2129, %v2113
    %v2162 = vpack.c.b16 %v2130, %v2114
    %v2163 = vpack.c.b16 %v2131, %v2115
    %v2164 = vpack.c.b16 %v2132, %v2116
    %v2165 = vpack.c.b16 %v2133, %v2117
    %v2166 = vpack.c.b16 %v2134, %v2118
    %v2167 = vpack.c.b16 %v2135, %v2119
    %v2168 = vpack.c.b16 %v2136, %v2120
    %v2169 = vpack.c.b16 %v2137, %v2121
    %v2170 = vpack.c.b16 %v2138, %v2122
    %v2171 = vpack.c.b16 %v2139, %v2123
    %vm2204 = vcmask 261120
    %v2206 = vsel %vm2204, %v2043, 0
    %2208 = vmatprep.subr.bf16.mxu0 %v2141
    %2209 = vmatpush1.bf16.msra.mxu0 %v2140
    %2210 = vmatprep.subr.bf16.mxu0 %v2157
    %2211 = vmatpush1.bf16.msra.mxu0 %v2156
    %2212 = vmatprep.subr.bf16.mxu0 0
    %2213 = vmatpush1.bf16.msra.mxu0 0
    %2214 = vmatprep.subr.bf16.mxu0 0
    %2215 = vmatpush1.bf16.msra.mxu0 0
    %2216 = vmatprep.subr.bf16.mxu0 0
    %2217 = vmatpush1.bf16.msra.mxu0 0
    %2218 = vmatprep.subr.bf16.mxu0 0
    %2219 = vmatpush1.bf16.msra.mxu0 0
    %2220 = vmatprep.subr.bf16.mxu0 0
    %2221 = vmatpush1.bf16.msra.mxu0 0
    %2222 = vmatprep.subr.bf16.mxu0 0
    %2223 = vmatpush1.bf16.msra.mxu0 0
    %2224 = vmatprep.subr.bf16.mxu0 0
    %2225 = vmatpush1.bf16.msra.mxu0 0
    %2226 = vmatprep.subr.bf16.mxu0 0
    %2227 = vmatpush1.bf16.msra.mxu0 0
    %2228 = vmatprep.subr.bf16.mxu0 0
    %2229 = vmatpush1.bf16.msra.mxu0 0
    %2230 = vmatprep.subr.bf16.mxu0 0
    %2231 = vmatpush1.bf16.msra.mxu0 0
    %2232 = vmatprep.subr.bf16.mxu0 0
    %2233 = vmatpush1.bf16.msra.mxu0 0
    %2234 = vmatprep.subr.bf16.mxu0 0
    %2235 = vmatpush1.bf16.msra.mxu0 0
    %2236 = vmatprep.subr.bf16.mxu0 0
    %2237 = vmatpush1.bf16.msra.mxu0 0
    %2238 = vmatprep.subr.bf16.mxu0 0
    %2239 = vmatpush1.bf16.msra.mxu0 0
    %2240 = vmatprep.mubr.bf16.mxu0 0
    %2241 = vmatmul.mubr.bf16.gmra.mrb[0].mxu0 %v2206
    %v2242 = vpop.f32.mrb[0].mxu0
    %v2243 = vadd.f32 %v1964, %v2242
    %v2244 = vpop.f32.mrb[0].mxu0
    %v2245 = vadd.f32 %v1968, %v2244
    %v2246 = vpop.f32.mrb[0].mxu0
    %v2247 = vadd.f32 %v1964, %v2246
    %v2248 = vpop.f32.mrb[0].mxu0
    %v2249 = vadd.f32 %v1968, %v2248
    %2250 = vdwg.mxu0
    %2251 = vmatprep.subr.bf16.mxu0 %v2143
    %2252 = vmatpush1.bf16.msra.mxu0 %v2142
    %2253 = vmatprep.subr.bf16.mxu0 %v2159
    %2254 = vmatpush1.bf16.msra.mxu0 %v2158
    %2255 = vmatprep.subr.bf16.mxu0 0
    %2256 = vmatpush1.bf16.msra.mxu0 0
    %2257 = vmatprep.subr.bf16.mxu0 0
    %2258 = vmatpush1.bf16.msra.mxu0 0
    %2259 = vmatprep.subr.bf16.mxu0 0
    %2260 = vmatpush1.bf16.msra.mxu0 0
    %2261 = vmatprep.subr.bf16.mxu0 0
    %2262 = vmatpush1.bf16.msra.mxu0 0
    %2263 = vmatprep.subr.bf16.mxu0 0
    %2264 = vmatpush1.bf16.msra.mxu0 0
    %2265 = vmatprep.subr.bf16.mxu0 0
    %2266 = vmatpush1.bf16.msra.mxu0 0
    %2267 = vmatprep.subr.bf16.mxu0 0
    %2268 = vmatpush1.bf16.msra.mxu0 0
    %2269 = vmatprep.subr.bf16.mxu0 0
    %2270 = vmatpush1.bf16.msra.mxu0 0
    %2271 = vmatprep.subr.bf16.mxu0 0
    %2272 = vmatpush1.bf16.msra.mxu0 0
    %2273 = vmatprep.subr.bf16.mxu0 0
    %2274 = vmatpush1.bf16.msra.mxu0 0
    %2275 = vmatprep.subr.bf16.mxu0 0
    %2276 = vmatpush1.bf16.msra.mxu0 0
    %2277 = vmatprep.subr.bf16.mxu0 0
    %2278 = vmatpush1.bf16.msra.mxu0 0
    %2279 = vmatprep.subr.bf16.mxu0 0
    %2280 = vmatpush1.bf16.msra.mxu0 0
    %2281 = vmatprep.subr.bf16.mxu0 0
    %2282 = vmatpush1.bf16.msra.mxu0 0
    %2283 = vmatprep.mubr.bf16.mxu0 0
    %2284 = vmatmul.mubr.bf16.gmra.mrb[0].mxu0 %v2206
    %v2285 = vpop.f32.mrb[0].mxu0
    %v2286 = vadd.f32 %v1972, %v2285
    %v2287 = vpop.f32.mrb[0].mxu0
    %v2288 = vadd.f32 %v1976, %v2287
    %v2289 = vpop.f32.mrb[0].mxu0
    %v2290 = vadd.f32 %v1972, %v2289
    %v2291 = vpop.f32.mrb[0].mxu0
    %v2292 = vadd.f32 %v1976, %v2291
    %2293 = vdwg.mxu0
    %2294 = vmatprep.subr.bf16.mxu0 %v2145
    %2295 = vmatpush1.bf16.msra.mxu0 %v2144
    %2296 = vmatprep.subr.bf16.mxu0 %v2161
    %2297 = vmatpush1.bf16.msra.mxu0 %v2160
    %2298 = vmatprep.subr.bf16.mxu0 0
    %2299 = vmatpush1.bf16.msra.mxu0 0
    %2300 = vmatprep.subr.bf16.mxu0 0
    %2301 = vmatpush1.bf16.msra.mxu0 0
    %2302 = vmatprep.subr.bf16.mxu0 0
    %2303 = vmatpush1.bf16.msra.mxu0 0
    %2304 = vmatprep.subr.bf16.mxu0 0
    %2305 = vmatpush1.bf16.msra.mxu0 0
    %2306 = vmatprep.subr.bf16.mxu0 0
    %2307 = vmatpush1.bf16.msra.mxu0 0
    %2308 = vmatprep.subr.bf16.mxu0 0
    %2309 = vmatpush1.bf16.msra.mxu0 0
    %2310 = vmatprep.subr.bf16.mxu0 0
    %2311 = vmatpush1.bf16.msra.mxu0 0
    %2312 = vmatprep.subr.bf16.mxu0 0
    %2313 = vmatpush1.bf16.msra.mxu0 0
    %2314 = vmatprep.subr.bf16.mxu0 0
    %2315 = vmatpush1.bf16.msra.mxu0 0
    %2316 = vmatprep.subr.bf16.mxu0 0
    %2317 = vmatpush1.bf16.msra.mxu0 0
    %2318 = vmatprep.subr.bf16.mxu0 0
    %2319 = vmatpush1.bf16.msra.mxu0 0
    %2320 = vmatprep.subr.bf16.mxu0 0
    %2321 = vmatpush1.bf16.msra.mxu0 0
    %2322 = vmatprep.subr.bf16.mxu0 0
    %2323 = vmatpush1.bf16.msra.mxu0 0
    %2324 = vmatprep.subr.bf16.mxu0 0
    %2325 = vmatpush1.bf16.msra.mxu0 0
    %2326 = vmatprep.mubr.bf16.mxu0 0
    %2327 = vmatmul.mubr.bf16.gmra.mrb[0].mxu0 %v2206
    %v2328 = vpop.f32.mrb[0].mxu0
    %v2329 = vadd.f32 %v1980, %v2328
    %v2330 = vpop.f32.mrb[0].mxu0
    %v2331 = vadd.f32 %v1984, %v2330
    %v2332 = vpop.f32.mrb[0].mxu0
    %v2333 = vadd.f32 %v1980, %v2332
    %v2334 = vpop.f32.mrb[0].mxu0
    %v2335 = vadd.f32 %v1984, %v2334
    %2336 = vdwg.mxu0
    %2337 = vmatprep.subr.bf16.mxu0 %v2147
    %2338 = vmatpush1.bf16.msra.mxu0 %v2146
    %2339 = vmatprep.subr.bf16.mxu0 %v2163
    %2340 = vmatpush1.bf16.msra.mxu0 %v2162
    %2341 = vmatprep.subr.bf16.mxu0 0
    %2342 = vmatpush1.bf16.msra.mxu0 0
    %2343 = vmatprep.subr.bf16.mxu0 0
    %2344 = vmatpush1.bf16.msra.mxu0 0
    %2345 = vmatprep.subr.bf16.mxu0 0
    %2346 = vmatpush1.bf16.msra.mxu0 0
    %2347 = vmatprep.subr.bf16.mxu0 0
    %2348 = vmatpush1.bf16.msra.mxu0 0
    %2349 = vmatprep.subr.bf16.mxu0 0
    %2350 = vmatpush1.bf16.msra.mxu0 0
    %2351 = vmatprep.subr.bf16.mxu0 0
    %2352 = vmatpush1.bf16.msra.mxu0 0
    %2353 = vmatprep.subr.bf16.mxu0 0
    %2354 = vmatpush1.bf16.msra.mxu0 0
    %2355 = vmatprep.subr.bf16.mxu0 0
    %2356 = vmatpush1.bf16.msra.mxu0 0
    %2357 = vmatprep.subr.bf16.mxu0 0
    %2358 = vmatpush1.bf16.msra.mxu0 0
    %2359 = vmatprep.subr.bf16.mxu0 0
    %2360 = vmatpush1.bf16.msra.mxu0 0
    %2361 = vmatprep.subr.bf16.mxu0 0
    %2362 = vmatpush1.bf16.msra.mxu0 0
    %2363 = vmatprep.subr.bf16.mxu0 0
    %2364 = vmatpush1.bf16.msra.mxu0 0
    %2365 = vmatprep.subr.bf16.mxu0 0
    %2366 = vmatpush1.bf16.msra.mxu0 0
    %2367 = vmatprep.subr.bf16.mxu0 0
    %2368 = vmatpush1.bf16.msra.mxu0 0
    %2369 = vmatprep.mubr.bf16.mxu0 0
    %2370 = vmatmul.mubr.bf16.gmra.mrb[0].mxu0 %v2206
    %v2371 = vpop.f32.mrb[0].mxu0
    %v2372 = vadd.f32 %v1988, %v2371
    %v2373 = vpop.f32.mrb[0].mxu0
    %v2374 = vadd.f32 %v1992, %v2373
    %v2375 = vpop.f32.mrb[0].mxu0
    %v2376 = vadd.f32 %v1988, %v2375
    %v2377 = vpop.f32.mrb[0].mxu0
    %v2378 = vadd.f32 %v1992, %v2377
    %2379 = vdwg.mxu0
    %2380 = vmatprep.subr.bf16.mxu0 %v2149
    %2381 = vmatpush1.bf16.msra.mxu0 %v2148
    %2382 = vmatprep.subr.bf16.mxu0 %v2165
    %2383 = vmatpush1.bf16.msra.mxu0 %v2164
    %2384 = vmatprep.subr.bf16.mxu0 0
    %2385 = vmatpush1.bf16.msra.mxu0 0
    %2386 = vmatprep.subr.bf16.mxu0 0
    %2387 = vmatpush1.bf16.msra.mxu0 0
    %2388 = vmatprep.subr.bf16.mxu0 0
    %2389 = vmatpush1.bf16.msra.mxu0 0
    %2390 = vmatprep.subr.bf16.mxu0 0
    %2391 = vmatpush1.bf16.msra.mxu0 0
    %2392 = vmatprep.subr.bf16.mxu0 0
    %2393 = vmatpush1.bf16.msra.mxu0 0
    %2394 = vmatprep.subr.bf16.mxu0 0
    %2395 = vmatpush1.bf16.msra.mxu0 0
    %2396 = vmatprep.subr.bf16.mxu0 0
    %2397 = vmatpush1.bf16.msra.mxu0 0
    %2398 = vmatprep.subr.bf16.mxu0 0
    %2399 = vmatpush1.bf16.msra.mxu0 0
    %2400 = vmatprep.subr.bf16.mxu0 0
    %2401 = vmatpush1.bf16.msra.mxu0 0
    %2402 = vmatprep.subr.bf16.mxu0 0
    %2403 = vmatpush1.bf16.msra.mxu0 0
    %2404 = vmatprep.subr.bf16.mxu0 0
    %2405 = vmatpush1.bf16.msra.mxu0 0
    %2406 = vmatprep.subr.bf16.mxu0 0
    %2407 = vmatpush1.bf16.msra.mxu0 0
    %2408 = vmatprep.subr.bf16.mxu0 0
    %2409 = vmatpush1.bf16.msra.mxu0 0
    %2410 = vmatprep.subr.bf16.mxu0 0
    %2411 = vmatpush1.bf16.msra.mxu0 0
    %2412 = vmatprep.mubr.bf16.mxu0 0
    %2413 = vmatmul.mubr.bf16.gmra.mrb[0].mxu0 %v2206
    %v2414 = vpop.f32.mrb[0].mxu0
    %v2415 = vadd.f32 %v1996, %v2414
    %v2416 = vpop.f32.mrb[0].mxu0
    %v2417 = vadd.f32 %v2000, %v2416
    %v2418 = vpop.f32.mrb[0].mxu0
    %v2419 = vadd.f32 %v1996, %v2418
    %v2420 = vpop.f32.mrb[0].mxu0
    %v2421 = vadd.f32 %v2000, %v2420
    %2422 = vdwg.mxu0
    %2423 = vmatprep.subr.bf16.mxu0 %v2151
    %2424 = vmatpush1.bf16.msra.mxu0 %v2150
    %2425 = vmatprep.subr.bf16.mxu0 %v2167
    %2426 = vmatpush1.bf16.msra.mxu0 %v2166
    %2427 = vmatprep.subr.bf16.mxu0 0
    %2428 = vmatpush1.bf16.msra.mxu0 0
    %2429 = vmatprep.subr.bf16.mxu0 0
    %2430 = vmatpush1.bf16.msra.mxu0 0
    %2431 = vmatprep.subr.bf16.mxu0 0
    %2432 = vmatpush1.bf16.msra.mxu0 0
    %2433 = vmatprep.subr.bf16.mxu0 0
    %2434 = vmatpush1.bf16.msra.mxu0 0
    %2435 = vmatprep.subr.bf16.mxu0 0
    %2436 = vmatpush1.bf16.msra.mxu0 0
    %2437 = vmatprep.subr.bf16.mxu0 0
    %2438 = vmatpush1.bf16.msra.mxu0 0
    %2439 = vmatprep.subr.bf16.mxu0 0
    %2440 = vmatpush1.bf16.msra.mxu0 0
    %2441 = vmatprep.subr.bf16.mxu0 0
    %2442 = vmatpush1.bf16.msra.mxu0 0
    %2443 = vmatprep.subr.bf16.mxu0 0
    %2444 = vmatpush1.bf16.msra.mxu0 0
    %2445 = vmatprep.subr.bf16.mxu0 0
    %2446 = vmatpush1.bf16.msra.mxu0 0
    %2447 = vmatprep.subr.bf16.mxu0 0
    %2448 = vmatpush1.bf16.msra.mxu0 0
    %2449 = vmatprep.subr.bf16.mxu0 0
    %2450 = vmatpush1.bf16.msra.mxu0 0
    %2451 = vmatprep.subr.bf16.mxu0 0
    %2452 = vmatpush1.bf16.msra.mxu0 0
    %2453 = vmatprep.subr.bf16.mxu0 0
    %2454 = vmatpush1.bf16.msra.mxu0 0
    %2455 = vmatprep.mubr.bf16.mxu0 0
    %2456 = vmatmul.mubr.bf16.gmra.mrb[0].mxu0 %v2206
    %v2457 = vpop.f32.mrb[0].mxu0
    %v2458 = vadd.f32 %v2004, %v2457
    %v2459 = vpop.f32.mrb[0].mxu0
    %v2460 = vadd.f32 %v2008, %v2459
    %v2461 = vpop.f32.mrb[0].mxu0
    %v2462 = vadd.f32 %v2004, %v2461
    %v2463 = vpop.f32.mrb[0].mxu0
    %v2464 = vadd.f32 %v2008, %v2463
    %2465 = vdwg.mxu0
    %2466 = vmatprep.subr.bf16.mxu0 %v2153
    %2467 = vmatpush1.bf16.msra.mxu0 %v2152
    %2468 = vmatprep.subr.bf16.mxu0 %v2169
    %2469 = vmatpush1.bf16.msra.mxu0 %v2168
    %2470 = vmatprep.subr.bf16.mxu0 0
    %2471 = vmatpush1.bf16.msra.mxu0 0
    %2472 = vmatprep.subr.bf16.mxu0 0
    %2473 = vmatpush1.bf16.msra.mxu0 0
    %2474 = vmatprep.subr.bf16.mxu0 0
    %2475 = vmatpush1.bf16.msra.mxu0 0
    %2476 = vmatprep.subr.bf16.mxu0 0
    %2477 = vmatpush1.bf16.msra.mxu0 0
    %2478 = vmatprep.subr.bf16.mxu0 0
    %2479 = vmatpush1.bf16.msra.mxu0 0
    %2480 = vmatprep.subr.bf16.mxu0 0
    %2481 = vmatpush1.bf16.msra.mxu0 0
    %2482 = vmatprep.subr.bf16.mxu0 0
    %2483 = vmatpush1.bf16.msra.mxu0 0
    %2484 = vmatprep.subr.bf16.mxu0 0
    %2485 = vmatpush1.bf16.msra.mxu0 0
    %2486 = vmatprep.subr.bf16.mxu0 0
    %2487 = vmatpush1.bf16.msra.mxu0 0
    %2488 = vmatprep.subr.bf16.mxu0 0
    %2489 = vmatpush1.bf16.msra.mxu0 0
    %2490 = vmatprep.subr.bf16.mxu0 0
    %2491 = vmatpush1.bf16.msra.mxu0 0
    %2492 = vmatprep.subr.bf16.mxu0 0
    %2493 = vmatpush1.bf16.msra.mxu0 0
    %2494 = vmatprep.subr.bf16.mxu0 0
    %2495 = vmatpush1.bf16.msra.mxu0 0
    %2496 = vmatprep.subr.bf16.mxu0 0
    %2497 = vmatpush1.bf16.msra.mxu0 0
    %2498 = vmatprep.mubr.bf16.mxu0 0
    %2499 = vmatmul.mubr.bf16.gmra.mrb[0].mxu0 %v2206
    %v2500 = vpop.f32.mrb[0].mxu0
    %v2501 = vadd.f32 %v2012, %v2500
    %v2502 = vpop.f32.mrb[0].mxu0
    %v2503 = vadd.f32 %v2016, %v2502
    %v2504 = vpop.f32.mrb[0].mxu0
    %v2505 = vadd.f32 %v2012, %v2504
    %v2506 = vpop.f32.mrb[0].mxu0
    %v2507 = vadd.f32 %v2016, %v2506
    %2508 = vdwg.mxu0
    %2509 = vmatprep.subr.bf16.mxu0 %v2155
    %2510 = vmatpush1.bf16.msra.mxu0 %v2154
    %2511 = vmatprep.subr.bf16.mxu0 %v2171
    %2512 = vmatpush1.bf16.msra.mxu0 %v2170
    %2513 = vmatprep.subr.bf16.mxu0 0
    %2514 = vmatpush1.bf16.msra.mxu0 0
    %2515 = vmatprep.subr.bf16.mxu0 0
    %2516 = vmatpush1.bf16.msra.mxu0 0
    %2517 = vmatprep.subr.bf16.mxu0 0
    %2518 = vmatpush1.bf16.msra.mxu0 0
    %2519 = vmatprep.subr.bf16.mxu0 0
    %2520 = vmatpush1.bf16.msra.mxu0 0
    %2521 = vmatprep.subr.bf16.mxu0 0
    %2522 = vmatpush1.bf16.msra.mxu0 0
    %2523 = vmatprep.subr.bf16.mxu0 0
    %2524 = vmatpush1.bf16.msra.mxu0 0
    %2525 = vmatprep.subr.bf16.mxu0 0
    %2526 = vmatpush1.bf16.msra.mxu0 0
    %2527 = vmatprep.subr.bf16.mxu0 0
    %2528 = vmatpush1.bf16.msra.mxu0 0
    %2529 = vmatprep.subr.bf16.mxu0 0
    %2530 = vmatpush1.bf16.msra.mxu0 0
    %2531 = vmatprep.subr.bf16.mxu0 0
    %2532 = vmatpush1.bf16.msra.mxu0 0
    %2533 = vmatprep.subr.bf16.mxu0 0
    %2534 = vmatpush1.bf16.msra.mxu0 0
    %2535 = vmatprep.subr.bf16.mxu0 0
    %2536 = vmatpush1.bf16.msra.mxu0 0
    %2537 = vmatprep.subr.bf16.mxu0 0
    %2538 = vmatpush1.bf16.msra.mxu0 0
    %2539 = vmatprep.subr.bf16.mxu0 0
    %2540 = vmatpush1.bf16.msra.mxu0 0
    %2541 = vmatprep.mubr.bf16.mxu0 0
    %2542 = vmatmul.mubr.bf16.gmra.mrb[0].mxu0 %v2206
    %v2543 = vpop.f32.mrb[0].mxu0
    %v2544 = vadd.f32 %v2020, %v2543
    %v2545 = vpop.f32.mrb[0].mxu0
    %v2546 = vadd.f32 %v2024, %v2545
    %v2547 = vpop.f32.mrb[0].mxu0
    %v2548 = vadd.f32 %v2020, %v2547
    %v2549 = vpop.f32.mrb[0].mxu0
    %v2550 = vadd.f32 %v2024, %v2549
    %2551 = vdwg.mxu0
    %vm2552 = vcmp.gt.f32.partialorder %v2243, 0.0
    %vm2553 = vcmp.gt.f32.partialorder %v2245, 0.0
    %vm2554 = vcmp.gt.f32.partialorder %v2286, 0.0
    %vm2555 = vcmp.gt.f32.partialorder %v2288, 0.0
    %vm2556 = vcmp.gt.f32.partialorder %v2329, 0.0
    %vm2557 = vcmp.gt.f32.partialorder %v2331, 0.0
    %vm2558 = vcmp.gt.f32.partialorder %v2372, 0.0
    %vm2559 = vcmp.gt.f32.partialorder %v2374, 0.0
    %vm2560 = vcmp.gt.f32.partialorder %v2415, 0.0
    %vm2561 = vcmp.gt.f32.partialorder %v2417, 0.0
    %vm2562 = vcmp.gt.f32.partialorder %v2458, 0.0
    %vm2563 = vcmp.gt.f32.partialorder %v2460, 0.0
    %vm2564 = vcmp.gt.f32.partialorder %v2501, 0.0
    %vm2565 = vcmp.gt.f32.partialorder %v2503, 0.0
    %vm2566 = vcmp.gt.f32.partialorder %v2544, 0.0
    %vm2567 = vcmp.gt.f32.partialorder %v2546, 0.0
    %vm2568 = vcmp.gt.f32.partialorder %v2247, 0.0
    %vm2569 = vcmp.gt.f32.partialorder %v2249, 0.0
    %vm2570 = vcmp.gt.f32.partialorder %v2290, 0.0
    %vm2571 = vcmp.gt.f32.partialorder %v2292, 0.0
    %vm2572 = vcmp.gt.f32.partialorder %v2333, 0.0
    %vm2573 = vcmp.gt.f32.partialorder %v2335, 0.0
    %vm2574 = vcmp.gt.f32.partialorder %v2376, 0.0
    %vm2575 = vcmp.gt.f32.partialorder %v2378, 0.0
    %vm2576 = vcmp.gt.f32.partialorder %v2419, 0.0
    %vm2577 = vcmp.gt.f32.partialorder %v2421, 0.0
    %vm2578 = vcmp.gt.f32.partialorder %v2462, 0.0
    %vm2579 = vcmp.gt.f32.partialorder %v2464, 0.0
    %vm2580 = vcmp.gt.f32.partialorder %v2505, 0.0
    %vm2581 = vcmp.gt.f32.partialorder %v2507, 0.0
    %vm2582 = vcmp.gt.f32.partialorder %v2548, 0.0
    %vm2583 = vcmp.gt.f32.partialorder %v2550, 0.0
    %v2584 = vmul.f32 %v2243, 0.01
    %v2585 = vmul.f32 %v2245, 0.01
    %v2586 = vmul.f32 %v2286, 0.01
    %v2587 = vmul.f32 %v2288, 0.01
    %v2588 = vmul.f32 %v2329, 0.01
    %v2589 = vmul.f32 %v2331, 0.01
    %v2590 = vmul.f32 %v2372, 0.01
    %v2591 = vmul.f32 %v2374, 0.01
    %v2592 = vmul.f32 %v2415, 0.01
    %v2593 = vmul.f32 %v2417, 0.01
    %v2594 = vmul.f32 %v2458, 0.01
    %v2595 = vmul.f32 %v2460, 0.01
    %v2596 = vmul.f32 %v2501, 0.01
    %v2597 = vmul.f32 %v2503, 0.01
    %v2598 = vmul.f32 %v2544, 0.01
    %v2599 = vmul.f32 %v2546, 0.01
    %v2600 = vmul.f32 %v2247, 0.01
    %v2601 = vmul.f32 %v2249, 0.01
    %v2602 = vmul.f32 %v2290, 0.01
    %v2603 = vmul.f32 %v2292, 0.01
    %v2604 = vmul.f32 %v2333, 0.01
    %v2605 = vmul.f32 %v2335, 0.01
    %v2606 = vmul.f32 %v2376, 0.01
    %v2607 = vmul.f32 %v2378, 0.01
    %v2608 = vmul.f32 %v2419, 0.01
    %v2609 = vmul.f32 %v2421, 0.01
    %v2610 = vmul.f32 %v2462, 0.01
    %v2611 = vmul.f32 %v2464, 0.01
    %v2612 = vmul.f32 %v2505, 0.01
    %v2613 = vmul.f32 %v2507, 0.01
    %v2614 = vmul.f32 %v2548, 0.01
    %v2615 = vmul.f32 %v2550, 0.01
    %v2616 = vsel %vm2552, %v2243, %v2584
    %v2617 = vsel %vm2553, %v2245, %v2585
    %v2618 = vsel %vm2554, %v2286, %v2586
    %v2619 = vsel %vm2555, %v2288, %v2587
    %v2620 = vsel %vm2556, %v2329, %v2588
    %v2621 = vsel %vm2557, %v2331, %v2589
    %v2622 = vsel %vm2558, %v2372, %v2590
    %v2623 = vsel %vm2559, %v2374, %v2591
    %v2624 = vsel %vm2560, %v2415, %v2592
    %v2625 = vsel %vm2561, %v2417, %v2593
    %v2626 = vsel %vm2562, %v2458, %v2594
    %v2627 = vsel %vm2563, %v2460, %v2595
    %v2628 = vsel %vm2564, %v2501, %v2596
    %v2629 = vsel %vm2565, %v2503, %v2597
    %v2630 = vsel %vm2566, %v2544, %v2598
    %v2631 = vsel %vm2567, %v2546, %v2599
    %v2632 = vsel %vm2568, %v2247, %v2600
    %v2633 = vsel %vm2569, %v2249, %v2601
    %v2634 = vsel %vm2570, %v2290, %v2602
    %v2635 = vsel %vm2571, %v2292, %v2603
    %v2636 = vsel %vm2572, %v2333, %v2604
    %v2637 = vsel %vm2573, %v2335, %v2605
    %v2638 = vsel %vm2574, %v2376, %v2606
    %v2639 = vsel %vm2575, %v2378, %v2607
    %v2640 = vsel %vm2576, %v2419, %v2608
    %v2641 = vsel %vm2577, %v2421, %v2609
    %v2642 = vsel %vm2578, %v2462, %v2610
    %v2643 = vsel %vm2579, %v2464, %v2611
    %v2644 = vsel %vm2580, %v2505, %v2612
    %v2645 = vsel %vm2581, %v2507, %v2613
    %v2646 = vsel %vm2582, %v2548, %v2614
    %v2647 = vsel %vm2583, %v2550, %v2615
    %v2648 = vpack.c.bf16 %v2632, %v2616
    %v2649 = vpack.c.bf16 %v2633, %v2617
    %v2650 = vpack.c.bf16 %v2634, %v2618
    %v2651 = vpack.c.bf16 %v2635, %v2619
    %v2652 = vpack.c.bf16 %v2636, %v2620
    %v2653 = vpack.c.bf16 %v2637, %v2621
    %v2654 = vpack.c.bf16 %v2638, %v2622
    %v2655 = vpack.c.bf16 %v2639, %v2623
    %v2656 = vpack.c.bf16 %v2640, %v2624
    %v2657 = vpack.c.bf16 %v2641, %v2625
    %v2658 = vpack.c.bf16 %v2642, %v2626
    %v2659 = vpack.c.bf16 %v2643, %v2627
    %v2660 = vpack.c.bf16 %v2644, %v2628
    %v2661 = vpack.c.bf16 %v2645, %v2629
    %v2662 = vpack.c.bf16 %v2646, %v2630
    %v2663 = vpack.c.bf16 %v2647, %v2631
    %v2680 = vunpack.c.l.b16 %v2648
    %v2681 = vunpack.c.l.b16 %v2649
    %v2682 = vunpack.c.l.b16 %v2650
    %v2683 = vunpack.c.l.b16 %v2651
    %v2684 = vunpack.c.l.b16 %v2652
    %v2685 = vunpack.c.l.b16 %v2653
    %v2686 = vunpack.c.l.b16 %v2654
    %v2687 = vunpack.c.l.b16 %v2655
    %v2688 = vunpack.c.l.b16 %v2656
    %v2689 = vunpack.c.l.b16 %v2657
    %v2690 = vunpack.c.l.b16 %v2658
    %v2691 = vunpack.c.l.b16 %v2659
    %v2692 = vunpack.c.l.b16 %v2660
    %v2693 = vunpack.c.l.b16 %v2661
    %v2694 = vunpack.c.l.b16 %v2662
    %v2695 = vunpack.c.l.b16 %v2663
    %v2696 = vunpack.c.h.b16 %v2648
    %v2697 = vunpack.c.h.b16 %v2649
    %v2698 = vunpack.c.h.b16 %v2650
    %v2699 = vunpack.c.h.b16 %v2651
    %v2700 = vunpack.c.h.b16 %v2652
    %v2701 = vunpack.c.h.b16 %v2653
    %v2702 = vunpack.c.h.b16 %v2654
    %v2703 = vunpack.c.h.b16 %v2655
    %v2704 = vunpack.c.h.b16 %v2656
    %v2705 = vunpack.c.h.b16 %v2657
    %v2706 = vunpack.c.h.b16 %v2658
    %v2707 = vunpack.c.h.b16 %v2659
    %v2708 = vunpack.c.h.b16 %v2660
    %v2709 = vunpack.c.h.b16 %v2661
    %v2710 = vunpack.c.h.b16 %v2662
    %v2711 = vunpack.c.h.b16 %v2663
    %v2712 = vpack.c.b16 %v2681, %v2680
    %v2713 = vpack.c.b16 %v2683, %v2682
    %v2714 = vpack.c.b16 %v2685, %v2684
    %v2715 = vpack.c.b16 %v2687, %v2686
    %v2716 = vpack.c.b16 %v2689, %v2688
    %v2717 = vpack.c.b16 %v2691, %v2690
    %v2718 = vpack.c.b16 %v2693, %v2692
    %v2719 = vpack.c.b16 %v2695, %v2694
    %v2720 = vpack.c.b16 %v2697, %v2696
    %v2721 = vpack.c.b16 %v2699, %v2698
    %v2722 = vpack.c.b16 %v2701, %v2700
    %v2723 = vpack.c.b16 %v2703, %v2702
    %v2724 = vpack.c.b16 %v2705, %v2704
    %v2725 = vpack.c.b16 %v2707, %v2706
    %v2726 = vpack.c.b16 %v2709, %v2708
    %v2727 = vpack.c.b16 %v2711, %v2710
    %2744 = vst [vmem:[%s8] sm:$0xff] %v2712
    %2745 = vst [vmem:[%s8 + $0x8] sm:$0xff] %v2713
    %2746 = vst [vmem:[%s8 + $0x10] sm:$0xff] %v2714
    %2747 = vst [vmem:[%s8 + $0x18] sm:$0xff] %v2715
    %2748 = vst [vmem:[%s8 + $0x20] sm:$0xff] %v2716
    %2749 = vst [vmem:[%s8 + $0x28] sm:$0xff] %v2717
    %2750 = vst [vmem:[%s8 + $0x30] sm:$0xff] %v2718
    %2751 = vst [vmem:[%s8 + $0x38] sm:$0xff] %v2719
    %2752 = vst [vmem:[%s8 + $0x40] sm:$0xff] %v2720
    %2753 = vst [vmem:[%s8 + $0x48] sm:$0xff] %v2721
    %2754 = vst [vmem:[%s8 + $0x50] sm:$0xff] %v2722
    %2755 = vst [vmem:[%s8 + $0x58] sm:$0xff] %v2723
    %2756 = vst [vmem:[%s8 + $0x60] sm:$0xff] %v2724
    %2757 = vst [vmem:[%s8 + $0x68] sm:$0xff] %v2725
    %2758 = vst [vmem:[%s8 + $0x70] sm:$0xff] %v2726
    %2759 = vst [vmem:[%s8 + $0x78] sm:$0xff] %v2727
    // Predicated region
    $region58: #{_lambda_.5} parent=1 // pred_check
      _
    $region59: #{_lambda_.5} parent=1 // pred_check_branch
      %2761 = sbr.rel (0) target = $region61
    $region60: #{_lambda_.5} parent=1 // pred_region
      _
    $region61: #{_lambda_.5} parent=1 // pred_fallthru
      _
    // Predicated region
    $region62: #{_lambda_.5} parent=1 // pred_check
      _
    $region63: #{_lambda_.5} parent=1 // pred_check_branch
      %2763 = sbr.rel (0) target = $region65
    $region64: #{_lambda_.5} parent=1 // pred_region
      _
    $region65: #{_lambda_.5} parent=1 // pred_fallthru
      _
    %2764 = vsyncpa [#allocation3], 1
    %2765 = vsyncpa [#allocation5], 1
    %2766 = vsyncpa [#allocation8], 1
    %2767 = vsyncpa [#allocation11], 1

// kernel: _lambda_.6
$region0: #{_lambda_.6}
  #allocation0 [shape = 'u32[]', space=smem, size = 0x4, offset = 0x4, fixed_abs, tag = 'smem constant byte address 0x4 - core index']
  #allocation1 [shape = 'u32[144,128]{1,0:T(1,128)}', space=vmem, size = 0x12000, scoped, tag = 'internal scratch']
  %s0 = inlined_call_operand.vmem [shape: bf16[16,2048], index: 0, kind: input, shape index: {}]
  %s1 = inlined_call_operand.vmem [shape: bf16[2048,128], index: 1, kind: input, shape index: {}]
  %s2 = inlined_call_operand.vmem [shape: f32[1,128], index: 2, kind: input, shape index: {}]
  %s3 = inlined_call_operand.vmem [shape: bf16[16,128], index: 3, kind: output, shape index: {}]
  %s4 = sld [smem:[#allocation0]]
  $region22: #{_lambda_.6} parent=0
    _
  %s6 = ssub.s32 1, %s4
  %s7 = scalar_select 0, %s6, %s4
  // Predicated region
  $region2: #{_lambda_.6} parent=0 // pred_check
    _
  $region3: #{_lambda_.6} parent=0 // pred_check_branch
    %9 = sbr.rel (0) target = $region5
  $region4: #{_lambda_.6} parent=0 // pred_region
    _
  $region5: #{_lambda_.6} parent=0 // pred_fallthru
    _
  // Predicated region
  $region6: #{_lambda_.6} parent=0 // pred_check
    _
  $region7: #{_lambda_.6} parent=0 // pred_check_branch
    %11 = sbr.rel (0) target = $region9
  $region8: #{_lambda_.6} parent=0 // pred_region
    _
  $region9: #{_lambda_.6} parent=0 // pred_fallthru
    _
  // Predicated region
  $region10: #{_lambda_.6} parent=0 // pred_check
    _
  $region11: #{_lambda_.6} parent=0 // pred_check_branch
    %13 = sbr.rel (0) target = $region13
  $region12: #{_lambda_.6} parent=0 // pred_region
    _
  $region13: #{_lambda_.6} parent=0 // pred_fallthru
    _
  %v15 = vld [vmem:[%s0] sm:$0xff]
  %v16 = vld [vmem:[%s0 + $0x8] sm:$0xff]
  %v17 = vld [vmem:[%s0 + $0x10] sm:$0xff]
  %v18 = vld [vmem:[%s0 + $0x18] sm:$0xff]
  %v19 = vld [vmem:[%s0 + $0x20] sm:$0xff]
  %v20 = vld [vmem:[%s0 + $0x28] sm:$0xff]
  %v21 = vld [vmem:[%s0 + $0x30] sm:$0xff]
  %v22 = vld [vmem:[%s0 + $0x38] sm:$0xff]
  %v23 = vld [vmem:[%s0 + $0x40] sm:$0xff]
  %v24 = vld [vmem:[%s0 + $0x48] sm:$0xff]
  %v25 = vld [vmem:[%s0 + $0x50] sm:$0xff]
  %v26 = vld [vmem:[%s0 + $0x58] sm:$0xff]
  %v27 = vld [vmem:[%s0 + $0x60] sm:$0xff]
  %v28 = vld [vmem:[%s0 + $0x68] sm:$0xff]
  %v29 = vld [vmem:[%s0 + $0x70] sm:$0xff]
  %v30 = vld [vmem:[%s0 + $0x78] sm:$0xff]
  %v31 = vld [vmem:[%s1] sm:$0xf]
  %v32 = vld [vmem:[%s1 + $0x4] sm:$0xf]
  %v33 = vld [vmem:[%s1 + $0x8] sm:$0xf]
  %v34 = vld [vmem:[%s1 + $0xc] sm:$0xf]
  %v35 = vld [vmem:[%s1 + $0x10] sm:$0xf]
  %v36 = vld [vmem:[%s1 + $0x14] sm:$0xf]
  %v37 = vld [vmem:[%s1 + $0x18] sm:$0xf]
  %v38 = vld [vmem:[%s1 + $0x1c] sm:$0xf]
  %v39 = vld [vmem:[%s1 + $0x20] sm:$0xf]
  %v40 = vld [vmem:[%s1 + $0x24] sm:$0xf]
  %v41 = vld [vmem:[%s1 + $0x28] sm:$0xf]
  %v42 = vld [vmem:[%s1 + $0x2c] sm:$0xf]
  %v43 = vld [vmem:[%s1 + $0x30] sm:$0xf]
  %v44 = vld [vmem:[%s1 + $0x34] sm:$0xf]
  %v45 = vld [vmem:[%s1 + $0x38] sm:$0xf]
  %v46 = vld [vmem:[%s1 + $0x3c] sm:$0xf]
  %v47 = vld [vmem:[%s1 + $0x40] sm:$0xf]
  %v48 = vld [vmem:[%s1 + $0x44] sm:$0xf]
  %v49 = vld [vmem:[%s1 + $0x48] sm:$0xf]
  %v50 = vld [vmem:[%s1 + $0x4c] sm:$0xf]
  %v51 = vld [vmem:[%s1 + $0x50] sm:$0xf]
  %v52 = vld [vmem:[%s1 + $0x54] sm:$0xf]
  %v53 = vld [vmem:[%s1 + $0x58] sm:$0xf]
  %v54 = vld [vmem:[%s1 + $0x5c] sm:$0xf]
  %v55 = vld [vmem:[%s1 + $0x60] sm:$0xf]
  %v56 = vld [vmem:[%s1 + $0x64] sm:$0xf]
  %v57 = vld [vmem:[%s1 + $0x68] sm:$0xf]
  %v58 = vld [vmem:[%s1 + $0x6c] sm:$0xf]
  %v59 = vld [vmem:[%s1 + $0x70] sm:$0xf]
  %v60 = vld [vmem:[%s1 + $0x74] sm:$0xf]
  %v61 = vld [vmem:[%s1 + $0x78] sm:$0xf]
  %v62 = vld [vmem:[%s1 + $0x7c] sm:$0xf]
  %v63 = vld [vmem:[%s1 + $0x80] sm:$0xf]
  %v64 = vld [vmem:[%s1 + $0x84] sm:$0xf]
  %v65 = vld [vmem:[%s1 + $0x88] sm:$0xf]
  %v66 = vld [vmem:[%s1 + $0x8c] sm:$0xf]
  %v67 = vld [vmem:[%s1 + $0x90] sm:$0xf]
  %v68 = vld [vmem:[%s1 + $0x94] sm:$0xf]
  %v69 = vld [vmem:[%s1 + $0x98] sm:$0xf]
  %v70 = vld [vmem:[%s1 + $0x9c] sm:$0xf]
  %v71 = vld [vmem:[%s1 + $0xa0] sm:$0xf]
  %v72 = vld [vmem:[%s1 + $0xa4] sm:$0xf]
  %v73 = vld [vmem:[%s1 + $0xa8] sm:$0xf]
  %v74 = vld [vmem:[%s1 + $0xac] sm:$0xf]
  %v75 = vld [vmem:[%s1 + $0xb0] sm:$0xf]
  %v76 = vld [vmem:[%s1 + $0xb4] sm:$0xf]
  %v77 = vld [vmem:[%s1 + $0xb8] sm:$0xf]
  %v78 = vld [vmem:[%s1 + $0xbc] sm:$0xf]
  %v79 = vld [vmem:[%s1 + $0xc0] sm:$0xf]
  %v80 = vld [vmem:[%s1 + $0xc4] sm:$0xf]
  %v81 = vld [vmem:[%s1 + $0xc8] sm:$0xf]
  %v82 = vld [vmem:[%s1 + $0xcc] sm:$0xf]
  %v83 = vld [vmem:[%s1 + $0xd0] sm:$0xf]
  %v84 = vld [vmem:[%s1 + $0xd4] sm:$0xf]
  %v85 = vld [vmem:[%s1 + $0xd8] sm:$0xf]
  %v86 = vld [vmem:[%s1 + $0xdc] sm:$0xf]
  %v87 = vld [vmem:[%s1 + $0xe0] sm:$0xf]
  %v88 = vld [vmem:[%s1 + $0xe4] sm:$0xf]
  %v89 = vld [vmem:[%s1 + $0xe8] sm:$0xf]
  %v90 = vld [vmem:[%s1 + $0xec] sm:$0xf]
  %v91 = vld [vmem:[%s1 + $0xf0] sm:$0xf]
  %v92 = vld [vmem:[%s1 + $0xf4] sm:$0xf]
  %v93 = vld [vmem:[%s1 + $0xf8] sm:$0xf]
  %v94 = vld [vmem:[%s1 + $0xfc] sm:$0xf]
  %v95 = vld [vmem:[%s1 + $0x100] sm:$0xf]
  %v96 = vld [vmem:[%s1 + $0x104] sm:$0xf]
  %v97 = vld [vmem:[%s1 + $0x108] sm:$0xf]
  %v98 = vld [vmem:[%s1 + $0x10c] sm:$0xf]
  %v99 = vld [vmem:[%s1 + $0x110] sm:$0xf]
  %v100 = vld [vmem:[%s1 + $0x114] sm:$0xf]
  %v101 = vld [vmem:[%s1 + $0x118] sm:$0xf]
  %v102 = vld [vmem:[%s1 + $0x11c] sm:$0xf]
  %v103 = vld [vmem:[%s1 + $0x120] sm:$0xf]
  %v104 = vld [vmem:[%s1 + $0x124] sm:$0xf]
  %v105 = vld [vmem:[%s1 + $0x128] sm:$0xf]
  %v106 = vld [vmem:[%s1 + $0x12c] sm:$0xf]
  %v107 = vld [vmem:[%s1 + $0x130] sm:$0xf]
  %v108 = vld [vmem:[%s1 + $0x134] sm:$0xf]
  %v109 = vld [vmem:[%s1 + $0x138] sm:$0xf]
  %v110 = vld [vmem:[%s1 + $0x13c] sm:$0xf]
  %v111 = vld [vmem:[%s1 + $0x140] sm:$0xf]
  %v112 = vld [vmem:[%s1 + $0x144] sm:$0xf]
  %v113 = vld [vmem:[%s1 + $0x148] sm:$0xf]
  %v114 = vld [vmem:[%s1 + $0x14c] sm:$0xf]
  %v115 = vld [vmem:[%s1 + $0x150] sm:$0xf]
  %v116 = vld [vmem:[%s1 + $0x154] sm:$0xf]
  %v117 = vld [vmem:[%s1 + $0x158] sm:$0xf]
  %v118 = vld [vmem:[%s1 + $0x15c] sm:$0xf]
  %v119 = vld [vmem:[%s1 + $0x160] sm:$0xf]
  %v120 = vld [vmem:[%s1 + $0x164] sm:$0xf]
  %v121 = vld [vmem:[%s1 + $0x168] sm:$0xf]
  %v122 = vld [vmem:[%s1 + $0x16c] sm:$0xf]
  %v123 = vld [vmem:[%s1 + $0x170] sm:$0xf]
  %v124 = vld [vmem:[%s1 + $0x174] sm:$0xf]
  %v125 = vld [vmem:[%s1 + $0x178] sm:$0xf]
  %v126 = vld [vmem:[%s1 + $0x17c] sm:$0xf]
  %v127 = vld [vmem:[%s1 + $0x180] sm:$0xf]
  %v128 = vld [vmem:[%s1 + $0x184] sm:$0xf]
  %v129 = vld [vmem:[%s1 + $0x188] sm:$0xf]
  %v130 = vld [vmem:[%s1 + $0x18c] sm:$0xf]
  %v131 = vld [vmem:[%s1 + $0x190] sm:$0xf]
  %v132 = vld [vmem:[%s1 + $0x194] sm:$0xf]
  %v133 = vld [vmem:[%s1 + $0x198] sm:$0xf]
  %v134 = vld [vmem:[%s1 + $0x19c] sm:$0xf]
  %v135 = vld [vmem:[%s1 + $0x1a0] sm:$0xf]
  %v136 = vld [vmem:[%s1 + $0x1a4] sm:$0xf]
  %v137 = vld [vmem:[%s1 + $0x1a8] sm:$0xf]
  %v138 = vld [vmem:[%s1 + $0x1ac] sm:$0xf]
  %v139 = vld [vmem:[%s1 + $0x1b0] sm:$0xf]
  %v140 = vld [vmem:[%s1 + $0x1b4] sm:$0xf]
  %v141 = vld [vmem:[%s1 + $0x1b8] sm:$0xf]
  %v142 = vld [vmem:[%s1 + $0x1bc] sm:$0xf]
  %v143 = vld [vmem:[%s1 + $0x1c0] sm:$0xf]
  %v144 = vld [vmem:[%s1 + $0x1c4] sm:$0xf]
  %v145 = vld [vmem:[%s1 + $0x1c8] sm:$0xf]
  %v146 = vld [vmem:[%s1 + $0x1cc] sm:$0xf]
  %v147 = vld [vmem:[%s1 + $0x1d0] sm:$0xf]
  %v148 = vld [vmem:[%s1 + $0x1d4] sm:$0xf]
  %v149 = vld [vmem:[%s1 + $0x1d8] sm:$0xf]
  %v150 = vld [vmem:[%s1 + $0x1dc] sm:$0xf]
  %v151 = vld [vmem:[%s1 + $0x1e0] sm:$0xf]
  %v152 = vld [vmem:[%s1 + $0x1e4] sm:$0xf]
  %v153 = vld [vmem:[%s1 + $0x1e8] sm:$0xf]
  %v154 = vld [vmem:[%s1 + $0x1ec] sm:$0xf]
  %v155 = vld [vmem:[%s1 + $0x1f0] sm:$0xf]
  %v156 = vld [vmem:[%s1 + $0x1f4] sm:$0xf]
  %v157 = vld [vmem:[%s1 + $0x1f8] sm:$0xf]
  %v158 = vld [vmem:[%s1 + $0x1fc] sm:$0xf]
  %v159 = vld [vmem:[%s1 + $0x200] sm:$0xf]
  %v160 = vld [vmem:[%s1 + $0x204] sm:$0xf]
  %v161 = vld [vmem:[%s1 + $0x208] sm:$0xf]
  %v162 = vld [vmem:[%s1 + $0x20c] sm:$0xf]
  %v163 = vld [vmem:[%s1 + $0x210] sm:$0xf]
  %v164 = vld [vmem:[%s1 + $0x214] sm:$0xf]
  %v165 = vld [vmem:[%s1 + $0x218] sm:$0xf]
  %v166 = vld [vmem:[%s1 + $0x21c] sm:$0xf]
  %v167 = vld [vmem:[%s1 + $0x220] sm:$0xf]
  %v168 = vld [vmem:[%s1 + $0x224] sm:$0xf]
  %v169 = vld [vmem:[%s1 + $0x228] sm:$0xf]
  %v170 = vld [vmem:[%s1 + $0x22c] sm:$0xf]
  %v171 = vld [vmem:[%s1 + $0x230] sm:$0xf]
  %v172 = vld [vmem:[%s1 + $0x234] sm:$0xf]
  %v173 = vld [vmem:[%s1 + $0x238] sm:$0xf]
  %v174 = vld [vmem:[%s1 + $0x23c] sm:$0xf]
  %v175 = vld [vmem:[%s1 + $0x240] sm:$0xf]
  %v176 = vld [vmem:[%s1 + $0x244] sm:$0xf]
  %v177 = vld [vmem:[%s1 + $0x248] sm:$0xf]
  %v178 = vld [vmem:[%s1 + $0x24c] sm:$0xf]
  %v179 = vld [vmem:[%s1 + $0x250] sm:$0xf]
  %v180 = vld [vmem:[%s1 + $0x254] sm:$0xf]
  %v181 = vld [vmem:[%s1 + $0x258] sm:$0xf]
  %v182 = vld [vmem:[%s1 + $0x25c] sm:$0xf]
  %v183 = vld [vmem:[%s1 + $0x260] sm:$0xf]
  %v184 = vld [vmem:[%s1 + $0x264] sm:$0xf]
  %v185 = vld [vmem:[%s1 + $0x268] sm:$0xf]
  %v186 = vld [vmem:[%s1 + $0x26c] sm:$0xf]
  %v187 = vld [vmem:[%s1 + $0x270] sm:$0xf]
  %v188 = vld [vmem:[%s1 + $0x274] sm:$0xf]
  %v189 = vld [vmem:[%s1 + $0x278] sm:$0xf]
  %v190 = vld [vmem:[%s1 + $0x27c] sm:$0xf]
  %v191 = vld [vmem:[%s1 + $0x280] sm:$0xf]
  %v192 = vld [vmem:[%s1 + $0x284] sm:$0xf]
  %v193 = vld [vmem:[%s1 + $0x288] sm:$0xf]
  %v194 = vld [vmem:[%s1 + $0x28c] sm:$0xf]
  %v195 = vld [vmem:[%s1 + $0x290] sm:$0xf]
  %v196 = vld [vmem:[%s1 + $0x294] sm:$0xf]
  %v197 = vld [vmem:[%s1 + $0x298] sm:$0xf]
  %v198 = vld [vmem:[%s1 + $0x29c] sm:$0xf]
  %v199 = vld [vmem:[%s1 + $0x2a0] sm:$0xf]
  %v200 = vld [vmem:[%s1 + $0x2a4] sm:$0xf]
  %v201 = vld [vmem:[%s1 + $0x2a8] sm:$0xf]
  %v202 = vld [vmem:[%s1 + $0x2ac] sm:$0xf]
  %v203 = vld [vmem:[%s1 + $0x2b0] sm:$0xf]
  %v204 = vld [vmem:[%s1 + $0x2b4] sm:$0xf]
  %v205 = vld [vmem:[%s1 + $0x2b8] sm:$0xf]
  %v206 = vld [vmem:[%s1 + $0x2bc] sm:$0xf]
  %v207 = vld [vmem:[%s1 + $0x2c0] sm:$0xf]
  %v208 = vld [vmem:[%s1 + $0x2c4] sm:$0xf]
  %v209 = vld [vmem:[%s1 + $0x2c8] sm:$0xf]
  %v210 = vld [vmem:[%s1 + $0x2cc] sm:$0xf]
  %v211 = vld [vmem:[%s1 + $0x2d0] sm:$0xf]
  %v212 = vld [vmem:[%s1 + $0x2d4] sm:$0xf]
  %v213 = vld [vmem:[%s1 + $0x2d8] sm:$0xf]
  %v214 = vld [vmem:[%s1 + $0x2dc] sm:$0xf]
  %v215 = vld [vmem:[%s1 + $0x2e0] sm:$0xf]
  %v216 = vld [vmem:[%s1 + $0x2e4] sm:$0xf]
  %v217 = vld [vmem:[%s1 + $0x2e8] sm:$0xf]
  %v218 = vld [vmem:[%s1 + $0x2ec] sm:$0xf]
  %v219 = vld [vmem:[%s1 + $0x2f0] sm:$0xf]
  %v220 = vld [vmem:[%s1 + $0x2f4] sm:$0xf]
  %v221 = vld [vmem:[%s1 + $0x2f8] sm:$0xf]
  %v222 = vld [vmem:[%s1 + $0x2fc] sm:$0xf]
  %v223 = vld [vmem:[%s1 + $0x300] sm:$0xf]
  %v224 = vld [vmem:[%s1 + $0x304] sm:$0xf]
  %v225 = vld [vmem:[%s1 + $0x308] sm:$0xf]
  %v226 = vld [vmem:[%s1 + $0x30c] sm:$0xf]
  %v227 = vld [vmem:[%s1 + $0x310] sm:$0xf]
  %v228 = vld [vmem:[%s1 + $0x314] sm:$0xf]
  %v229 = vld [vmem:[%s1 + $0x318] sm:$0xf]
  %v230 = vld [vmem:[%s1 + $0x31c] sm:$0xf]
  %v231 = vld [vmem:[%s1 + $0x320] sm:$0xf]
  %v232 = vld [vmem:[%s1 + $0x324] sm:$0xf]
  %v233 = vld [vmem:[%s1 + $0x328] sm:$0xf]
  %v234 = vld [vmem:[%s1 + $0x32c] sm:$0xf]
  %v235 = vld [vmem:[%s1 + $0x330] sm:$0xf]
  %v236 = vld [vmem:[%s1 + $0x334] sm:$0xf]
  %v237 = vld [vmem:[%s1 + $0x338] sm:$0xf]
  %v238 = vld [vmem:[%s1 + $0x33c] sm:$0xf]
  %v239 = vld [vmem:[%s1 + $0x340] sm:$0xf]
  %v240 = vld [vmem:[%s1 + $0x344] sm:$0xf]
  %v241 = vld [vmem:[%s1 + $0x348] sm:$0xf]
  %v242 = vld [vmem:[%s1 + $0x34c] sm:$0xf]
  %v243 = vld [vmem:[%s1 + $0x350] sm:$0xf]
  %v244 = vld [vmem:[%s1 + $0x354] sm:$0xf]
  %v245 = vld [vmem:[%s1 + $0x358] sm:$0xf]
  %v246 = vld [vmem:[%s1 + $0x35c] sm:$0xf]
  %v247 = vld [vmem:[%s1 + $0x360] sm:$0xf]
  %v248 = vld [vmem:[%s1 + $0x364] sm:$0xf]
  %v249 = vld [vmem:[%s1 + $0x368] sm:$0xf]
  %v250 = vld [vmem:[%s1 + $0x36c] sm:$0xf]
  %v251 = vld [vmem:[%s1 + $0x370] sm:$0xf]
  %v252 = vld [vmem:[%s1 + $0x374] sm:$0xf]
  %v253 = vld [vmem:[%s1 + $0x378] sm:$0xf]
  %v254 = vld [vmem:[%s1 + $0x37c] sm:$0xf]
  %v255 = vld [vmem:[%s1 + $0x380] sm:$0xf]
  %v256 = vld [vmem:[%s1 + $0x384] sm:$0xf]
  %v257 = vld [vmem:[%s1 + $0x388] sm:$0xf]
  %v258 = vld [vmem:[%s1 + $0x38c] sm:$0xf]
  %v259 = vld [vmem:[%s1 + $0x390] sm:$0xf]
  %v260 = vld [vmem:[%s1 + $0x394] sm:$0xf]
  %v261 = vld [vmem:[%s1 + $0x398] sm:$0xf]
  %v262 = vld [vmem:[%s1 + $0x39c] sm:$0xf]
  %v263 = vld [vmem:[%s1 + $0x3a0] sm:$0xf]
  %v264 = vld [vmem:[%s1 + $0x3a4] sm:$0xf]
  %v265 = vld [vmem:[%s1 + $0x3a8] sm:$0xf]
  %v266 = vld [vmem:[%s1 + $0x3ac] sm:$0xf]
  %v267 = vld [vmem:[%s1 + $0x3b0] sm:$0xf]
  %v268 = vld [vmem:[%s1 + $0x3b4] sm:$0xf]
  %v269 = vld [vmem:[%s1 + $0x3b8] sm:$0xf]
  %v270 = vld [vmem:[%s1 + $0x3bc] sm:$0xf]
  %v271 = vld [vmem:[%s1 + $0x3c0] sm:$0xf]
  %v272 = vld [vmem:[%s1 + $0x3c4] sm:$0xf]
  %v273 = vld [vmem:[%s1 + $0x3c8] sm:$0xf]
  %v274 = vld [vmem:[%s1 + $0x3cc] sm:$0xf]
  %v275 = vld [vmem:[%s1 + $0x3d0] sm:$0xf]
  %v276 = vld [vmem:[%s1 + $0x3d4] sm:$0xf]
  %v277 = vld [vmem:[%s1 + $0x3d8] sm:$0xf]
  %v278 = vld [vmem:[%s1 + $0x3dc] sm:$0xf]
  %v279 = vld [vmem:[%s1 + $0x3e0] sm:$0xf]
  %v280 = vld [vmem:[%s1 + $0x3e4] sm:$0xf]
  %v281 = vld [vmem:[%s1 + $0x3e8] sm:$0xf]
  %v282 = vld [vmem:[%s1 + $0x3ec] sm:$0xf]
  %v283 = vld [vmem:[%s1 + $0x3f0] sm:$0xf]
  %v284 = vld [vmem:[%s1 + $0x3f4] sm:$0xf]
  %v285 = vld [vmem:[%s1 + $0x3f8] sm:$0xf]
  %v286 = vld [vmem:[%s1 + $0x3fc] sm:$0xf]
  %v287 = vld [vmem:[%s2] sm:$0x1]
  %v289 = vlaneseq
  %v290 = vshrl.u32 %v289, 7
  %v291 = vsub.s32 0, %v290
  %v292 = vrot.slane %v287, %v291
  %v310 = vunpack.c.l.b16 %v15
  %v311 = vunpack.c.h.b16 %v15
  %v312 = vunpack.c.l.b16 %v16
  %v313 = vunpack.c.h.b16 %v16
  %v314 = vunpack.c.l.b16 %v17
  %v315 = vunpack.c.h.b16 %v17
  %v316 = vunpack.c.l.b16 %v18
  %v317 = vunpack.c.h.b16 %v18
  %v318 = vunpack.c.l.b16 %v19
  %v319 = vunpack.c.h.b16 %v19
  %v320 = vunpack.c.l.b16 %v20
  %v321 = vunpack.c.h.b16 %v20
  %v322 = vunpack.c.l.b16 %v21
  %v323 = vunpack.c.h.b16 %v21
  %v324 = vunpack.c.l.b16 %v22
  %v325 = vunpack.c.h.b16 %v22
  %v326 = vunpack.c.l.b16 %v23
  %v327 = vunpack.c.h.b16 %v23
  %v328 = vunpack.c.l.b16 %v24
  %v329 = vunpack.c.h.b16 %v24
  %v330 = vunpack.c.l.b16 %v25
  %v331 = vunpack.c.h.b16 %v25
  %v332 = vunpack.c.l.b16 %v26
  %v333 = vunpack.c.h.b16 %v26
  %v334 = vunpack.c.l.b16 %v27
  %v335 = vunpack.c.h.b16 %v27
  %v336 = vunpack.c.l.b16 %v28
  %v337 = vunpack.c.h.b16 %v28
  %v338 = vunpack.c.l.b16 %v29
  %v339 = vunpack.c.h.b16 %v29
  %v340 = vunpack.c.l.b16 %v30
  %v341 = vunpack.c.h.b16 %v30
  %v342 = vpack.c.b16 %v326, %v310
  %v343 = vpack.c.b16 %v327, %v311
  %v344 = vpack.c.b16 %v328, %v312
  %v345 = vpack.c.b16 %v329, %v313
  %v346 = vpack.c.b16 %v330, %v314
  %v347 = vpack.c.b16 %v331, %v315
  %v348 = vpack.c.b16 %v332, %v316
  %v349 = vpack.c.b16 %v333, %v317
  %v350 = vpack.c.b16 %v334, %v318
  %v351 = vpack.c.b16 %v335, %v319
  %v352 = vpack.c.b16 %v336, %v320
  %v353 = vpack.c.b16 %v337, %v321
  %v354 = vpack.c.b16 %v338, %v322
  %v355 = vpack.c.b16 %v339, %v323
  %v356 = vpack.c.b16 %v340, %v324
  %v357 = vpack.c.b16 %v341, %v325
  %v630 = vunpack.c.l.b16 %v31
  %v631 = vunpack.c.l.b16 %v32
  %v632 = vunpack.c.l.b16 %v33
  %v633 = vunpack.c.l.b16 %v34
  %v634 = vunpack.c.l.b16 %v35
  %v635 = vunpack.c.l.b16 %v36
  %v636 = vunpack.c.l.b16 %v37
  %v637 = vunpack.c.l.b16 %v38
  %v638 = vunpack.c.l.b16 %v39
  %v639 = vunpack.c.l.b16 %v40
  %v640 = vunpack.c.l.b16 %v41
  %v641 = vunpack.c.l.b16 %v42
  %v642 = vunpack.c.l.b16 %v43
  %v643 = vunpack.c.l.b16 %v44
  %v644 = vunpack.c.l.b16 %v45
  %v645 = vunpack.c.l.b16 %v46
  %v646 = vunpack.c.l.b16 %v47
  %v647 = vunpack.c.l.b16 %v48
  %v648 = vunpack.c.l.b16 %v49
  %v649 = vunpack.c.l.b16 %v50
  %v650 = vunpack.c.l.b16 %v51
  %v651 = vunpack.c.l.b16 %v52
  %v652 = vunpack.c.l.b16 %v53
  %v653 = vunpack.c.l.b16 %v54
  %v654 = vunpack.c.l.b16 %v55
  %v655 = vunpack.c.l.b16 %v56
  %v656 = vunpack.c.l.b16 %v57
  %v657 = vunpack.c.l.b16 %v58
  %v658 = vunpack.c.l.b16 %v59
  %v659 = vunpack.c.l.b16 %v60
  %v660 = vunpack.c.l.b16 %v61
  %v661 = vunpack.c.l.b16 %v62
  %v662 = vunpack.c.l.b16 %v63
  %v663 = vunpack.c.l.b16 %v64
  %v664 = vunpack.c.l.b16 %v65
  %v665 = vunpack.c.l.b16 %v66
  %v666 = vunpack.c.l.b16 %v67
  %v667 = vunpack.c.l.b16 %v68
  %v668 = vunpack.c.l.b16 %v69
  %v669 = vunpack.c.l.b16 %v70
  %v670 = vunpack.c.l.b16 %v71
  %v671 = vunpack.c.l.b16 %v72
  %v672 = vunpack.c.l.b16 %v73
  %v673 = vunpack.c.l.b16 %v74
  %v674 = vunpack.c.l.b16 %v75
  %v675 = vunpack.c.l.b16 %v76
  %v676 = vunpack.c.l.b16 %v77
  %v677 = vunpack.c.l.b16 %v78
  %v678 = vunpack.c.l.b16 %v79
  %v679 = vunpack.c.l.b16 %v80
  %v680 = vunpack.c.l.b16 %v81
  %v681 = vunpack.c.l.b16 %v82
  %v682 = vunpack.c.l.b16 %v83
  %v683 = vunpack.c.l.b16 %v84
  %v684 = vunpack.c.l.b16 %v85
  %v685 = vunpack.c.l.b16 %v86
  %v686 = vunpack.c.l.b16 %v87
  %v687 = vunpack.c.l.b16 %v88
  %v688 = vunpack.c.l.b16 %v89
  %v689 = vunpack.c.l.b16 %v90
  %v690 = vunpack.c.l.b16 %v91
  %v691 = vunpack.c.l.b16 %v92
  %v692 = vunpack.c.l.b16 %v93
  %v693 = vunpack.c.l.b16 %v94
  %v694 = vunpack.c.l.b16 %v95
  %v695 = vunpack.c.l.b16 %v96
  %v696 = vunpack.c.l.b16 %v97
  %v697 = vunpack.c.l.b16 %v98
  %v698 = vunpack.c.l.b16 %v99
  %v699 = vunpack.c.l.b16 %v100
  %v700 = vunpack.c.l.b16 %v101
  %v701 = vunpack.c.l.b16 %v102
  %v702 = vunpack.c.l.b16 %v103
  %v703 = vunpack.c.l.b16 %v104
  %v704 = vunpack.c.l.b16 %v105
  %v705 = vunpack.c.l.b16 %v106
  %v706 = vunpack.c.l.b16 %v107
  %v707 = vunpack.c.l.b16 %v108
  %v708 = vunpack.c.l.b16 %v109
  %v709 = vunpack.c.l.b16 %v110
  %v710 = vunpack.c.l.b16 %v111
  %v711 = vunpack.c.l.b16 %v112
  %v712 = vunpack.c.l.b16 %v113
  %v713 = vunpack.c.l.b16 %v114
  %v714 = vunpack.c.l.b16 %v115
  %v715 = vunpack.c.l.b16 %v116
  %v716 = vunpack.c.l.b16 %v117
  %v717 = vunpack.c.l.b16 %v118
  %v718 = vunpack.c.l.b16 %v119
  %v719 = vunpack.c.l.b16 %v120
  %v720 = vunpack.c.l.b16 %v121
  %v721 = vunpack.c.l.b16 %v122
  %v722 = vunpack.c.l.b16 %v123
  %v723 = vunpack.c.l.b16 %v124
  %v724 = vunpack.c.l.b16 %v125
  %v725 = vunpack.c.l.b16 %v126
  %v726 = vunpack.c.l.b16 %v127
  %v727 = vunpack.c.l.b16 %v128
  %v728 = vunpack.c.l.b16 %v129
  %v729 = vunpack.c.l.b16 %v130
  %v730 = vunpack.c.l.b16 %v131
  %v731 = vunpack.c.l.b16 %v132
  %v732 = vunpack.c.l.b16 %v133
  %v733 = vunpack.c.l.b16 %v134
  %v734 = vunpack.c.l.b16 %v135
  %v735 = vunpack.c.l.b16 %v136
  %v736 = vunpack.c.l.b16 %v137
  %v737 = vunpack.c.l.b16 %v138
  %v738 = vunpack.c.l.b16 %v139
  %v739 = vunpack.c.l.b16 %v140
  %v740 = vunpack.c.l.b16 %v141
  %v741 = vunpack.c.l.b16 %v142
  %v742 = vunpack.c.l.b16 %v143
  %v743 = vunpack.c.l.b16 %v144
  %v744 = vunpack.c.l.b16 %v145
  %v745 = vunpack.c.l.b16 %v146
  %v746 = vunpack.c.l.b16 %v147
  %v747 = vunpack.c.l.b16 %v148
  %v748 = vunpack.c.l.b16 %v149
  %v749 = vunpack.c.l.b16 %v150
  %v750 = vunpack.c.l.b16 %v151
  %v751 = vunpack.c.l.b16 %v152
  %v752 = vunpack.c.l.b16 %v153
  %v753 = vunpack.c.l.b16 %v154
  %v754 = vunpack.c.l.b16 %v155
  %v755 = vunpack.c.l.b16 %v156
  %v756 = vunpack.c.l.b16 %v157
  %v757 = vunpack.c.l.b16 %v158
  %v758 = vunpack.c.l.b16 %v159
  %v759 = vunpack.c.l.b16 %v160
  %v760 = vunpack.c.l.b16 %v161
  %v761 = vunpack.c.l.b16 %v162
  %v762 = vunpack.c.l.b16 %v163
  %v763 = vunpack.c.l.b16 %v164
  %v764 = vunpack.c.l.b16 %v165
  %v765 = vunpack.c.l.b16 %v166
  %v766 = vunpack.c.l.b16 %v167
  %v767 = vunpack.c.l.b16 %v168
  %v768 = vunpack.c.l.b16 %v169
  %v769 = vunpack.c.l.b16 %v170
  %v770 = vunpack.c.l.b16 %v171
  %v771 = vunpack.c.l.b16 %v172
  %v772 = vunpack.c.l.b16 %v173
  %v773 = vunpack.c.l.b16 %v174
  %v774 = vunpack.c.l.b16 %v175
  %v775 = vunpack.c.l.b16 %v176
  %v776 = vunpack.c.l.b16 %v177
  %v777 = vunpack.c.l.b16 %v178
  %v778 = vunpack.c.l.b16 %v179
  %v779 = vunpack.c.l.b16 %v180
  %v780 = vunpack.c.l.b16 %v181
  %v781 = vunpack.c.l.b16 %v182
  %v782 = vunpack.c.l.b16 %v183
  %v783 = vunpack.c.l.b16 %v184
  %v784 = vunpack.c.l.b16 %v185
  %v785 = vunpack.c.l.b16 %v186
  %v786 = vunpack.c.l.b16 %v187
  %v787 = vunpack.c.l.b16 %v188
  %v788 = vunpack.c.l.b16 %v189
  %v789 = vunpack.c.l.b16 %v190
  %v790 = vunpack.c.l.b16 %v191
  %v791 = vunpack.c.l.b16 %v192
  %v792 = vunpack.c.l.b16 %v193
  %v793 = vunpack.c.l.b16 %v194
  %v794 = vunpack.c.l.b16 %v195
  %v795 = vunpack.c.l.b16 %v196
  %v796 = vunpack.c.l.b16 %v197
  %v797 = vunpack.c.l.b16 %v198
  %v798 = vunpack.c.l.b16 %v199
  %v799 = vunpack.c.l.b16 %v200
  %v800 = vunpack.c.l.b16 %v201
  %v801 = vunpack.c.l.b16 %v202
  %v802 = vunpack.c.l.b16 %v203
  %v803 = vunpack.c.l.b16 %v204
  %v804 = vunpack.c.l.b16 %v205
  %v805 = vunpack.c.l.b16 %v206
  %v806 = vunpack.c.l.b16 %v207
  %v807 = vunpack.c.l.b16 %v208
  %v808 = vunpack.c.l.b16 %v209
  %v809 = vunpack.c.l.b16 %v210
  %v810 = vunpack.c.l.b16 %v211
  %v811 = vunpack.c.l.b16 %v212
  %v812 = vunpack.c.l.b16 %v213
  %v813 = vunpack.c.l.b16 %v214
  %v814 = vunpack.c.l.b16 %v215
  %v815 = vunpack.c.l.b16 %v216
  %v816 = vunpack.c.l.b16 %v217
  %v817 = vunpack.c.l.b16 %v218
  %v818 = vunpack.c.l.b16 %v219
  %v819 = vunpack.c.l.b16 %v220
  %v820 = vunpack.c.l.b16 %v221
  %v821 = vunpack.c.l.b16 %v222
  %v822 = vunpack.c.l.b16 %v223
  %v823 = vunpack.c.l.b16 %v224
  %v824 = vunpack.c.l.b16 %v225
  %v825 = vunpack.c.l.b16 %v226
  %v826 = vunpack.c.l.b16 %v227
  %v827 = vunpack.c.l.b16 %v228
  %v828 = vunpack.c.l.b16 %v229
  %v829 = vunpack.c.l.b16 %v230
  %v830 = vunpack.c.l.b16 %v231
  %v831 = vunpack.c.l.b16 %v232
  %v832 = vunpack.c.l.b16 %v233
  %v833 = vunpack.c.l.b16 %v234
  %v834 = vunpack.c.l.b16 %v235
  %v835 = vunpack.c.l.b16 %v236
  %v836 = vunpack.c.l.b16 %v237
  %v837 = vunpack.c.l.b16 %v238
  %v838 = vunpack.c.l.b16 %v239
  %v839 = vunpack.c.l.b16 %v240
  %v840 = vunpack.c.l.b16 %v241
  %v841 = vunpack.c.l.b16 %v242
  %v842 = vunpack.c.l.b16 %v243
  %v843 = vunpack.c.l.b16 %v244
  %v844 = vunpack.c.l.b16 %v245
  %v845 = vunpack.c.l.b16 %v246
  %v846 = vunpack.c.l.b16 %v247
  %v847 = vunpack.c.l.b16 %v248
  %v848 = vunpack.c.l.b16 %v249
  %v849 = vunpack.c.l.b16 %v250
  %v850 = vunpack.c.l.b16 %v251
  %v851 = vunpack.c.l.b16 %v252
  %v852 = vunpack.c.l.b16 %v253
  %v853 = vunpack.c.l.b16 %v254
  %v854 = vunpack.c.l.b16 %v255
  %v855 = vunpack.c.l.b16 %v256
  %v856 = vunpack.c.l.b16 %v257
  %v857 = vunpack.c.l.b16 %v258
  %v858 = vunpack.c.l.b16 %v259
  %v859 = vunpack.c.l.b16 %v260
  %v860 = vunpack.c.l.b16 %v261
  %v861 = vunpack.c.l.b16 %v262
  %v862 = vunpack.c.l.b16 %v263
  %v863 = vunpack.c.l.b16 %v264
  %v864 = vunpack.c.l.b16 %v265
  %v865 = vunpack.c.l.b16 %v266
  %v866 = vunpack.c.l.b16 %v267
  %v867 = vunpack.c.l.b16 %v268
  %v868 = vunpack.c.l.b16 %v269
  %v869 = vunpack.c.l.b16 %v270
  %v870 = vunpack.c.l.b16 %v271
  %v871 = vunpack.c.l.b16 %v272
  %v872 = vunpack.c.l.b16 %v273
  %v873 = vunpack.c.l.b16 %v274
  %v874 = vunpack.c.l.b16 %v275
  %v875 = vunpack.c.l.b16 %v276
  %v876 = vunpack.c.l.b16 %v277
  %v877 = vunpack.c.l.b16 %v278
  %v878 = vunpack.c.l.b16 %v279
  %v879 = vunpack.c.l.b16 %v280
  %v880 = vunpack.c.l.b16 %v281
  %v881 = vunpack.c.l.b16 %v282
  %v882 = vunpack.c.l.b16 %v283
  %v883 = vunpack.c.l.b16 %v284
  %v884 = vunpack.c.l.b16 %v285
  %v885 = vunpack.c.l.b16 %v286
  %v886 = vpack.c.b16 %v631, %v630
  %v887 = vpack.c.b16 %v633, %v632
  %v888 = vpack.c.b16 %v635, %v634
  %v889 = vpack.c.b16 %v637, %v636
  %v890 = vpack.c.b16 %v639, %v638
  %v891 = vpack.c.b16 %v641, %v640
  %v892 = vpack.c.b16 %v643, %v642
  %v893 = vpack.c.b16 %v645, %v644
  %v894 = vpack.c.b16 %v647, %v646
  %v895 = vpack.c.b16 %v649, %v648
  %v896 = vpack.c.b16 %v651, %v650
  %v897 = vpack.c.b16 %v653, %v652
  %v898 = vpack.c.b16 %v655, %v654
  %v899 = vpack.c.b16 %v657, %v656
  %v900 = vpack.c.b16 %v659, %v658
  %v901 = vpack.c.b16 %v661, %v660
  %v902 = vpack.c.b16 %v663, %v662
  %v903 = vpack.c.b16 %v665, %v664
  %v904 = vpack.c.b16 %v667, %v666
  %v905 = vpack.c.b16 %v669, %v668
  %v906 = vpack.c.b16 %v671, %v670
  %v907 = vpack.c.b16 %v673, %v672
  %v908 = vpack.c.b16 %v675, %v674
  %v909 = vpack.c.b16 %v677, %v676
  %v910 = vpack.c.b16 %v679, %v678
  %v911 = vpack.c.b16 %v681, %v680
  %v912 = vpack.c.b16 %v683, %v682
  %v913 = vpack.c.b16 %v685, %v684
  %v914 = vpack.c.b16 %v687, %v686
  %v915 = vpack.c.b16 %v689, %v688
  %v916 = vpack.c.b16 %v691, %v690
  %v917 = vpack.c.b16 %v693, %v692
  %v918 = vpack.c.b16 %v695, %v694
  %v919 = vpack.c.b16 %v697, %v696
  %v920 = vpack.c.b16 %v699, %v698
  %v921 = vpack.c.b16 %v701, %v700
  %v922 = vpack.c.b16 %v703, %v702
  %v923 = vpack.c.b16 %v705, %v704
  %v924 = vpack.c.b16 %v707, %v706
  %v925 = vpack.c.b16 %v709, %v708
  %v926 = vpack.c.b16 %v711, %v710
  %v927 = vpack.c.b16 %v713, %v712
  %v928 = vpack.c.b16 %v715, %v714
  %v929 = vpack.c.b16 %v717, %v716
  %v930 = vpack.c.b16 %v719, %v718
  %v931 = vpack.c.b16 %v721, %v720
  %v932 = vpack.c.b16 %v723, %v722
  %v933 = vpack.c.b16 %v725, %v724
  %v934 = vpack.c.b16 %v727, %v726
  %v935 = vpack.c.b16 %v729, %v728
  %v936 = vpack.c.b16 %v731, %v730
  %v937 = vpack.c.b16 %v733, %v732
  %v938 = vpack.c.b16 %v735, %v734
  %v939 = vpack.c.b16 %v737, %v736
  %v940 = vpack.c.b16 %v739, %v738
  %v941 = vpack.c.b16 %v741, %v740
  %v942 = vpack.c.b16 %v743, %v742
  %v943 = vpack.c.b16 %v745, %v744
  %v944 = vpack.c.b16 %v747, %v746
  %v945 = vpack.c.b16 %v749, %v748
  %v946 = vpack.c.b16 %v751, %v750
  %v947 = vpack.c.b16 %v753, %v752
  %v948 = vpack.c.b16 %v755, %v754
  %v949 = vpack.c.b16 %v757, %v756
  %v950 = vpack.c.b16 %v759, %v758
  %v951 = vpack.c.b16 %v761, %v760
  %v952 = vpack.c.b16 %v763, %v762
  %v953 = vpack.c.b16 %v765, %v764
  %v954 = vpack.c.b16 %v767, %v766
  %v955 = vpack.c.b16 %v769, %v768
  %v956 = vpack.c.b16 %v771, %v770
  %v957 = vpack.c.b16 %v773, %v772
  %v958 = vpack.c.b16 %v775, %v774
  %v959 = vpack.c.b16 %v777, %v776
  %v960 = vpack.c.b16 %v779, %v778
  %v961 = vpack.c.b16 %v781, %v780
  %v962 = vpack.c.b16 %v783, %v782
  %v963 = vpack.c.b16 %v785, %v784
  %v964 = vpack.c.b16 %v787, %v786
  %v965 = vpack.c.b16 %v789, %v788
  %v966 = vpack.c.b16 %v791, %v790
  %v967 = vpack.c.b16 %v793, %v792
  %v968 = vpack.c.b16 %v795, %v794
  %v969 = vpack.c.b16 %v797, %v796
  %v970 = vpack.c.b16 %v799, %v798
  %v971 = vpack.c.b16 %v801, %v800
  %v972 = vpack.c.b16 %v803, %v802
  %v973 = vpack.c.b16 %v805, %v804
  %v974 = vpack.c.b16 %v807, %v806
  %v975 = vpack.c.b16 %v809, %v808
  %v976 = vpack.c.b16 %v811, %v810
  %v977 = vpack.c.b16 %v813, %v812
  %v978 = vpack.c.b16 %v815, %v814
  %v979 = vpack.c.b16 %v817, %v816
  %v980 = vpack.c.b16 %v819, %v818
  %v981 = vpack.c.b16 %v821, %v820
  %v982 = vpack.c.b16 %v823, %v822
  %v983 = vpack.c.b16 %v825, %v824
  %v984 = vpack.c.b16 %v827, %v826
  %v985 = vpack.c.b16 %v829, %v828
  %v986 = vpack.c.b16 %v831, %v830
  %v987 = vpack.c.b16 %v833, %v832
  %v988 = vpack.c.b16 %v835, %v834
  %v989 = vpack.c.b16 %v837, %v836
  %v990 = vpack.c.b16 %v839, %v838
  %v991 = vpack.c.b16 %v841, %v840
  %v992 = vpack.c.b16 %v843, %v842
  %v993 = vpack.c.b16 %v845, %v844
  %v994 = vpack.c.b16 %v847, %v846
  %v995 = vpack.c.b16 %v849, %v848
  %v996 = vpack.c.b16 %v851, %v850
  %v997 = vpack.c.b16 %v853, %v852
  %v998 = vpack.c.b16 %v855, %v854
  %v999 = vpack.c.b16 %v857, %v856
  %v1000 = vpack.c.b16 %v859, %v858
  %v1001 = vpack.c.b16 %v861, %v860
  %v1002 = vpack.c.b16 %v863, %v862
  %v1003 = vpack.c.b16 %v865, %v864
  %v1004 = vpack.c.b16 %v867, %v866
  %v1005 = vpack.c.b16 %v869, %v868
  %v1006 = vpack.c.b16 %v871, %v870
  %v1007 = vpack.c.b16 %v873, %v872
  %v1008 = vpack.c.b16 %v875, %v874
  %v1009 = vpack.c.b16 %v877, %v876
  %v1010 = vpack.c.b16 %v879, %v878
  %v1011 = vpack.c.b16 %v881, %v880
  %v1012 = vpack.c.b16 %v883, %v882
  %v1013 = vpack.c.b16 %v885, %v884
  %1142 = vmatprep.subr.bf16.mxu0 0
  %1143 = vmatpush1.bf16.msra.mxu0 %v886
  %1144 = vmatprep.subr.bf16.mxu0 0
  %1145 = vmatpush1.bf16.msra.mxu0 %v887
  %1146 = vmatprep.subr.bf16.mxu0 0
  %1147 = vmatpush1.bf16.msra.mxu0 %v888
  %1148 = vmatprep.subr.bf16.mxu0 0
  %1149 = vmatpush1.bf16.msra.mxu0 %v889
  %1150 = vmatprep.subr.bf16.mxu0 0
  %1151 = vmatpush1.bf16.msra.mxu0 %v890
  %1152 = vmatprep.subr.bf16.mxu0 0
  %1153 = vmatpush1.bf16.msra.mxu0 %v891
  %1154 = vmatprep.subr.bf16.mxu0 0
  %1155 = vmatpush1.bf16.msra.mxu0 %v892
  %1156 = vmatprep.subr.bf16.mxu0 0
  %1157 = vmatpush1.bf16.msra.mxu0 %v893
  %1158 = vmatprep.subr.bf16.mxu0 0
  %1159 = vmatpush1.bf16.msra.mxu0 %v894
  %1160 = vmatprep.subr.bf16.mxu0 0
  %1161 = vmatpush1.bf16.msra.mxu0 %v895
  %1162 = vmatprep.subr.bf16.mxu0 0
  %1163 = vmatpush1.bf16.msra.mxu0 %v896
  %1164 = vmatprep.subr.bf16.mxu0 0
  %1165 = vmatpush1.bf16.msra.mxu0 %v897
  %1166 = vmatprep.subr.bf16.mxu0 0
  %1167 = vmatpush1.bf16.msra.mxu0 %v898
  %1168 = vmatprep.subr.bf16.mxu0 0
  %1169 = vmatpush1.bf16.msra.mxu0 %v899
  %1170 = vmatprep.subr.bf16.mxu0 0
  %1171 = vmatpush1.bf16.msra.mxu0 %v900
  %1172 = vmatprep.subr.bf16.mxu0 0
  %1173 = vmatpush1.bf16.msra.mxu0 %v901
  %1174 = vmatprep.mubr.bf16.mxu0 %v343
  %1175 = vmatmul.mubr.bf16.gmra.mrb[0].mxu0 %v342
  %v1176 = vpop.f32.mrb[0].mxu0
  %v1177 = vadd.f32 %v292, %v1176
  %v1178 = vpop.f32.mrb[0].mxu0
  %v1179 = vpop.f32.mrb[0].mxu0
  %v1180 = vadd.f32 %v292, %v1179
  %v1181 = vpop.f32.mrb[0].mxu0
  %1182 = vdwg.mxu0
  %1183 = vmatprep.subr.bf16.mxu0 0
  %1184 = vmatpush1.bf16.msra.mxu0 %v902
  %1185 = vmatprep.subr.bf16.mxu0 0
  %1186 = vmatpush1.bf16.msra.mxu0 %v903
  %1187 = vmatprep.subr.bf16.mxu0 0
  %1188 = vmatpush1.bf16.msra.mxu0 %v904
  %1189 = vmatprep.subr.bf16.mxu0 0
  %1190 = vmatpush1.bf16.msra.mxu0 %v905
  %1191 = vmatprep.subr.bf16.mxu0 0
  %1192 = vmatpush1.bf16.msra.mxu0 %v906
  %1193 = vmatprep.subr.bf16.mxu0 0
  %1194 = vmatpush1.bf16.msra.mxu0 %v907
  %1195 = vmatprep.subr.bf16.mxu0 0
  %1196 = vmatpush1.bf16.msra.mxu0 %v908
  %1197 = vmatprep.subr.bf16.mxu0 0
  %1198 = vmatpush1.bf16.msra.mxu0 %v909
  %1199 = vmatprep.subr.bf16.mxu0 0
  %1200 = vmatpush1.bf16.msra.mxu0 %v910
  %1201 = vmatprep.subr.bf16.mxu0 0
  %1202 = vmatpush1.bf16.msra.mxu0 %v911
  %1203 = vmatprep.subr.bf16.mxu0 0
  %1204 = vmatpush1.bf16.msra.mxu0 %v912
  %1205 = vmatprep.subr.bf16.mxu0 0
  %1206 = vmatpush1.bf16.msra.mxu0 %v913
  %1207 = vmatprep.subr.bf16.mxu0 0
  %1208 = vmatpush1.bf16.msra.mxu0 %v914
  %1209 = vmatprep.subr.bf16.mxu0 0
  %1210 = vmatpush1.bf16.msra.mxu0 %v915
  %1211 = vmatprep.subr.bf16.mxu0 0
  %1212 = vmatpush1.bf16.msra.mxu0 %v916
  %1213 = vmatprep.subr.bf16.mxu0 0
  %1214 = vmatpush1.bf16.msra.mxu0 %v917
  %1215 = vmatprep.mubr.bf16.mxu0 %v345
  %1216 = vmatmul.mubr.bf16.gmra.mrb[0].mxu0 %v344
  %v1217 = vpop.f32.mrb[0].mxu0
  %v1218 = vadd.f32 %v1177, %v1217
  %v1219 = vpop.f32.mrb[0].mxu0
  %v1220 = vpop.f32.mrb[0].mxu0
  %v1221 = vadd.f32 %v1180, %v1220
  %v1222 = vpop.f32.mrb[0].mxu0
  %1223 = vdwg.mxu0
  %1224 = vmatprep.subr.bf16.mxu0 0
  %1225 = vmatpush1.bf16.msra.mxu0 %v918
  %1226 = vmatprep.subr.bf16.mxu0 0
  %1227 = vmatpush1.bf16.msra.mxu0 %v919
  %1228 = vmatprep.subr.bf16.mxu0 0
  %1229 = vmatpush1.bf16.msra.mxu0 %v920
  %1230 = vmatprep.subr.bf16.mxu0 0
  %1231 = vmatpush1.bf16.msra.mxu0 %v921
  %1232 = vmatprep.subr.bf16.mxu0 0
  %1233 = vmatpush1.bf16.msra.mxu0 %v922
  %1234 = vmatprep.subr.bf16.mxu0 0
  %1235 = vmatpush1.bf16.msra.mxu0 %v923
  %1236 = vmatprep.subr.bf16.mxu0 0
  %1237 = vmatpush1.bf16.msra.mxu0 %v924
  %1238 = vmatprep.subr.bf16.mxu0 0
  %1239 = vmatpush1.bf16.msra.mxu0 %v925
  %1240 = vmatprep.subr.bf16.mxu0 0
  %1241 = vmatpush1.bf16.msra.mxu0 %v926
  %1242 = vmatprep.subr.bf16.mxu0 0
  %1243 = vmatpush1.bf16.msra.mxu0 %v927
  %1244 = vmatprep.subr.bf16.mxu0 0
  %1245 = vmatpush1.bf16.msra.mxu0 %v928
  %1246 = vmatprep.subr.bf16.mxu0 0
  %1247 = vmatpush1.bf16.msra.mxu0 %v929
  %1248 = vmatprep.subr.bf16.mxu0 0
  %1249 = vmatpush1.bf16.msra.mxu0 %v930
  %1250 = vmatprep.subr.bf16.mxu0 0
  %1251 = vmatpush1.bf16.msra.mxu0 %v931
  %1252 = vmatprep.subr.bf16.mxu0 0
  %1253 = vmatpush1.bf16.msra.mxu0 %v932
  %1254 = vmatprep.subr.bf16.mxu0 0
  %1255 = vmatpush1.bf16.msra.mxu0 %v933
  %1256 = vmatprep.mubr.bf16.mxu0 %v347
  %1257 = vmatmul.mubr.bf16.gmra.mrb[0].mxu0 %v346
  %v1258 = vpop.f32.mrb[0].mxu0
  %v1259 = vadd.f32 %v1218, %v1258
  %v1260 = vpop.f32.mrb[0].mxu0
  %v1261 = vpop.f32.mrb[0].mxu0
  %v1262 = vadd.f32 %v1221, %v1261
  %v1263 = vpop.f32.mrb[0].mxu0
  %1264 = vdwg.mxu0
  %1265 = vmatprep.subr.bf16.mxu0 0
  %1266 = vmatpush1.bf16.msra.mxu0 %v934
  %1267 = vmatprep.subr.bf16.mxu0 0
  %1268 = vmatpush1.bf16.msra.mxu0 %v935
  %1269 = vmatprep.subr.bf16.mxu0 0
  %1270 = vmatpush1.bf16.msra.mxu0 %v936
  %1271 = vmatprep.subr.bf16.mxu0 0
  %1272 = vmatpush1.bf16.msra.mxu0 %v937
  %1273 = vmatprep.subr.bf16.mxu0 0
  %1274 = vmatpush1.bf16.msra.mxu0 %v938
  %1275 = vmatprep.subr.bf16.mxu0 0
  %1276 = vmatpush1.bf16.msra.mxu0 %v939
  %1277 = vmatprep.subr.bf16.mxu0 0
  %1278 = vmatpush1.bf16.msra.mxu0 %v940
  %1279 = vmatprep.subr.bf16.mxu0 0
  %1280 = vmatpush1.bf16.msra.mxu0 %v941
  %1281 = vmatprep.subr.bf16.mxu0 0
  %1282 = vmatpush1.bf16.msra.mxu0 %v942
  %1283 = vmatprep.subr.bf16.mxu0 0
  %1284 = vmatpush1.bf16.msra.mxu0 %v943
  %1285 = vmatprep.subr.bf16.mxu0 0
  %1286 = vmatpush1.bf16.msra.mxu0 %v944
  %1287 = vmatprep.subr.bf16.mxu0 0
  %1288 = vmatpush1.bf16.msra.mxu0 %v945
  %1289 = vmatprep.subr.bf16.mxu0 0
  %1290 = vmatpush1.bf16.msra.mxu0 %v946
  %1291 = vmatprep.subr.bf16.mxu0 0
  %1292 = vmatpush1.bf16.msra.mxu0 %v947
  %1293 = vmatprep.subr.bf16.mxu0 0
  %1294 = vmatpush1.bf16.msra.mxu0 %v948
  %1295 = vmatprep.subr.bf16.mxu0 0
  %1296 = vmatpush1.bf16.msra.mxu0 %v949
  %1297 = vmatprep.mubr.bf16.mxu0 %v349
  %1298 = vmatmul.mubr.bf16.gmra.mrb[0].mxu0 %v348
  %v1299 = vpop.f32.mrb[0].mxu0
  %v1300 = vadd.f32 %v1259, %v1299
  %v1301 = vpop.f32.mrb[0].mxu0
  %v1302 = vpop.f32.mrb[0].mxu0
  %v1303 = vadd.f32 %v1262, %v1302
  %v1304 = vpop.f32.mrb[0].mxu0
  %1305 = vdwg.mxu0
  %1306 = vmatprep.subr.bf16.mxu0 0
  %1307 = vmatpush1.bf16.msra.mxu0 %v950
  %1308 = vmatprep.subr.bf16.mxu0 0
  %1309 = vmatpush1.bf16.msra.mxu0 %v951
  %1310 = vmatprep.subr.bf16.mxu0 0
  %1311 = vmatpush1.bf16.msra.mxu0 %v952
  %1312 = vmatprep.subr.bf16.mxu0 0
  %1313 = vmatpush1.bf16.msra.mxu0 %v953
  %1314 = vmatprep.subr.bf16.mxu0 0
  %1315 = vmatpush1.bf16.msra.mxu0 %v954
  %1316 = vmatprep.subr.bf16.mxu0 0
  %1317 = vmatpush1.bf16.msra.mxu0 %v955
  %1318 = vmatprep.subr.bf16.mxu0 0
  %1319 = vmatpush1.bf16.msra.mxu0 %v956
  %1320 = vmatprep.subr.bf16.mxu0 0
  %1321 = vmatpush1.bf16.msra.mxu0 %v957
  %1322 = vmatprep.subr.bf16.mxu0 0
  %1323 = vmatpush1.bf16.msra.mxu0 %v958
  %1324 = vmatprep.subr.bf16.mxu0 0
  %1325 = vmatpush1.bf16.msra.mxu0 %v959
  %1326 = vmatprep.subr.bf16.mxu0 0
  %1327 = vmatpush1.bf16.msra.mxu0 %v960
  %1328 = vmatprep.subr.bf16.mxu0 0
  %1329 = vmatpush1.bf16.msra.mxu0 %v961
  %1330 = vmatprep.subr.bf16.mxu0 0
  %1331 = vmatpush1.bf16.msra.mxu0 %v962
  %1332 = vmatprep.subr.bf16.mxu0 0
  %1333 = vmatpush1.bf16.msra.mxu0 %v963
  %1334 = vmatprep.subr.bf16.mxu0 0
  %1335 = vmatpush1.bf16.msra.mxu0 %v964
  %1336 = vmatprep.subr.bf16.mxu0 0
  %1337 = vmatpush1.bf16.msra.mxu0 %v965
  %1338 = vmatprep.mubr.bf16.mxu0 %v351
  %1339 = vmatmul.mubr.bf16.gmra.mrb[0].mxu0 %v350
  %v1340 = vpop.f32.mrb[0].mxu0
  %v1341 = vadd.f32 %v1300, %v1340
  %v1342 = vpop.f32.mrb[0].mxu0
  %v1343 = vpop.f32.mrb[0].mxu0
  %v1344 = vadd.f32 %v1303, %v1343
  %v1345 = vpop.f32.mrb[0].mxu0
  %1346 = vdwg.mxu0
  %1347 = vmatprep.subr.bf16.mxu0 0
  %1348 = vmatpush1.bf16.msra.mxu0 %v966
  %1349 = vmatprep.subr.bf16.mxu0 0
  %1350 = vmatpush1.bf16.msra.mxu0 %v967
  %1351 = vmatprep.subr.bf16.mxu0 0
  %1352 = vmatpush1.bf16.msra.mxu0 %v968
  %1353 = vmatprep.subr.bf16.mxu0 0
  %1354 = vmatpush1.bf16.msra.mxu0 %v969
  %1355 = vmatprep.subr.bf16.mxu0 0
  %1356 = vmatpush1.bf16.msra.mxu0 %v970
  %1357 = vmatprep.subr.bf16.mxu0 0
  %1358 = vmatpush1.bf16.msra.mxu0 %v971
  %1359 = vmatprep.subr.bf16.mxu0 0
  %1360 = vmatpush1.bf16.msra.mxu0 %v972
  %1361 = vmatprep.subr.bf16.mxu0 0
  %1362 = vmatpush1.bf16.msra.mxu0 %v973
  %1363 = vmatprep.subr.bf16.mxu0 0
  %1364 = vmatpush1.bf16.msra.mxu0 %v974
  %1365 = vmatprep.subr.bf16.mxu0 0
  %1366 = vmatpush1.bf16.msra.mxu0 %v975
  %1367 = vmatprep.subr.bf16.mxu0 0
  %1368 = vmatpush1.bf16.msra.mxu0 %v976
  %1369 = vmatprep.subr.bf16.mxu0 0
  %1370 = vmatpush1.bf16.msra.mxu0 %v977
  %1371 = vmatprep.subr.bf16.mxu0 0
  %1372 = vmatpush1.bf16.msra.mxu0 %v978
  %1373 = vmatprep.subr.bf16.mxu0 0
  %1374 = vmatpush1.bf16.msra.mxu0 %v979
  %1375 = vmatprep.subr.bf16.mxu0 0
  %1376 = vmatpush1.bf16.msra.mxu0 %v980
  %1377 = vmatprep.subr.bf16.mxu0 0
  %1378 = vmatpush1.bf16.msra.mxu0 %v981
  %1379 = vmatprep.mubr.bf16.mxu0 %v353
  %1380 = vmatmul.mubr.bf16.gmra.mrb[0].mxu0 %v352
  %v1381 = vpop.f32.mrb[0].mxu0
  %v1382 = vadd.f32 %v1341, %v1381
  %v1383 = vpop.f32.mrb[0].mxu0
  %v1384 = vpop.f32.mrb[0].mxu0
  %v1385 = vadd.f32 %v1344, %v1384
  %v1386 = vpop.f32.mrb[0].mxu0
  %1387 = vdwg.mxu0
  %1388 = vmatprep.subr.bf16.mxu0 0
  %1389 = vmatpush1.bf16.msra.mxu0 %v982
  %1390 = vmatprep.subr.bf16.mxu0 0
  %1391 = vmatpush1.bf16.msra.mxu0 %v983
  %1392 = vmatprep.subr.bf16.mxu0 0
  %1393 = vmatpush1.bf16.msra.mxu0 %v984
  %1394 = vmatprep.subr.bf16.mxu0 0
  %1395 = vmatpush1.bf16.msra.mxu0 %v985
  %1396 = vmatprep.subr.bf16.mxu0 0
  %1397 = vmatpush1.bf16.msra.mxu0 %v986
  %1398 = vmatprep.subr.bf16.mxu0 0
  %1399 = vmatpush1.bf16.msra.mxu0 %v987
  %1400 = vmatprep.subr.bf16.mxu0 0
  %1401 = vmatpush1.bf16.msra.mxu0 %v988
  %1402 = vmatprep.subr.bf16.mxu0 0
  %1403 = vmatpush1.bf16.msra.mxu0 %v989
  %1404 = vmatprep.subr.bf16.mxu0 0
  %1405 = vmatpush1.bf16.msra.mxu0 %v990
  %1406 = vmatprep.subr.bf16.mxu0 0
  %1407 = vmatpush1.bf16.msra.mxu0 %v991
  %1408 = vmatprep.subr.bf16.mxu0 0
  %1409 = vmatpush1.bf16.msra.mxu0 %v992
  %1410 = vmatprep.subr.bf16.mxu0 0
  %1411 = vmatpush1.bf16.msra.mxu0 %v993
  %1412 = vmatprep.subr.bf16.mxu0 0
  %1413 = vmatpush1.bf16.msra.mxu0 %v994
  %1414 = vmatprep.subr.bf16.mxu0 0
  %1415 = vmatpush1.bf16.msra.mxu0 %v995
  %1416 = vmatprep.subr.bf16.mxu0 0
  %1417 = vmatpush1.bf16.msra.mxu0 %v996
  %1418 = vmatprep.subr.bf16.mxu0 0
  %1419 = vmatpush1.bf16.msra.mxu0 %v997
  %1420 = vmatprep.mubr.bf16.mxu0 %v355
  %1421 = vmatmul.mubr.bf16.gmra.mrb[0].mxu0 %v354
  %v1422 = vpop.f32.mrb[0].mxu0
  %v1423 = vadd.f32 %v1382, %v1422
  %v1424 = vpop.f32.mrb[0].mxu0
  %v1425 = vpop.f32.mrb[0].mxu0
  %v1426 = vadd.f32 %v1385, %v1425
  %v1427 = vpop.f32.mrb[0].mxu0
  %1428 = vdwg.mxu0
  %1429 = vmatprep.subr.bf16.mxu0 0
  %1430 = vmatpush1.bf16.msra.mxu0 %v998
  %1431 = vmatprep.subr.bf16.mxu0 0
  %1432 = vmatpush1.bf16.msra.mxu0 %v999
  %1433 = vmatprep.subr.bf16.mxu0 0
  %1434 = vmatpush1.bf16.msra.mxu0 %v1000
  %1435 = vmatprep.subr.bf16.mxu0 0
  %1436 = vmatpush1.bf16.msra.mxu0 %v1001
  %1437 = vmatprep.subr.bf16.mxu0 0
  %1438 = vmatpush1.bf16.msra.mxu0 %v1002
  %1439 = vmatprep.subr.bf16.mxu0 0
  %1440 = vmatpush1.bf16.msra.mxu0 %v1003
  %1441 = vmatprep.subr.bf16.mxu0 0
  %1442 = vmatpush1.bf16.msra.mxu0 %v1004
  %1443 = vmatprep.subr.bf16.mxu0 0
  %1444 = vmatpush1.bf16.msra.mxu0 %v1005
  %1445 = vmatprep.subr.bf16.mxu0 0
  %1446 = vmatpush1.bf16.msra.mxu0 %v1006
  %1447 = vmatprep.subr.bf16.mxu0 0
  %1448 = vmatpush1.bf16.msra.mxu0 %v1007
  %1449 = vmatprep.subr.bf16.mxu0 0
  %1450 = vmatpush1.bf16.msra.mxu0 %v1008
  %1451 = vmatprep.subr.bf16.mxu0 0
  %1452 = vmatpush1.bf16.msra.mxu0 %v1009
  %1453 = vmatprep.subr.bf16.mxu0 0
  %1454 = vmatpush1.bf16.msra.mxu0 %v1010
  %1455 = vmatprep.subr.bf16.mxu0 0
  %1456 = vmatpush1.bf16.msra.mxu0 %v1011
  %1457 = vmatprep.subr.bf16.mxu0 0
  %1458 = vmatpush1.bf16.msra.mxu0 %v1012
  %1459 = vmatprep.subr.bf16.mxu0 0
  %1460 = vmatpush1.bf16.msra.mxu0 %v1013
  %1461 = vmatprep.mubr.bf16.mxu0 %v357
  %1462 = vmatmul.mubr.bf16.gmra.mrb[0].mxu0 %v356
  %v1463 = vpop.f32.mrb[0].mxu0
  %v1464 = vadd.f32 %v1423, %v1463
  %v1465 = vpop.f32.mrb[0].mxu0
  %v1466 = vpop.f32.mrb[0].mxu0
  %v1467 = vadd.f32 %v1426, %v1466
  %v1468 = vpop.f32.mrb[0].mxu0
  %1469 = vdwg.mxu0
  %vm1470 = vcmp.gt.f32.partialorder %v1464, 0.0
  %vm1471 = vcmp.gt.f32.partialorder %v1467, 0.0
  %v1472 = vmul.f32 %v1464, 0.01
  %v1473 = vmul.f32 %v1467, 0.01
  %v1474 = vsel %vm1470, %v1464, %v1472
  %v1475 = vsel %vm1471, %v1467, %v1473
  %v1476 = vpack.c.bf16 %v1475, %v1474
  %v1478 = vunpack.c.l.b16 %v1476
  %v1479 = vunpack.c.h.b16 %v1476
  %v1480 = vpack.c.b16 %v1478, %v1478
  %v1481 = vpack.c.b16 %v1479, %v1479
  %1484 = vst [vmem:[%s3] sm:$0xf] %v1480
  %1485 = vst [vmem:[%s3 + $0x4] sm:$0xf] %v1481
  // Predicated region
  $region14: #{_lambda_.6} parent=0 // pred_check
    _
  $region15: #{_lambda_.6} parent=0 // pred_check_branch
    %1487 = sbr.rel (0) target = $region17
  $region16: #{_lambda_.6} parent=0 // pred_region
    _
  $region17: #{_lambda_.6} parent=0 // pred_fallthru
    _
  // Predicated region
  $region18: #{_lambda_.6} parent=0 // pred_check
    _
  $region19: #{_lambda_.6} parent=0 // pred_check_branch
    %1489 = sbr.rel (0) target = $region21
  $region20: #{_lambda_.6} parent=0 // pred_region
    _
  $region21: #{_lambda_.6} parent=0 // pred_fallthru
    _

// kernel: _lambda_.9
$region0: #{_lambda_.9}
  #allocation0 [shape = 'u32[]', space=smem, size = 0x4, offset = 0x4, fixed_abs, tag = 'smem constant byte address 0x4 - core index']
  #allocation1 [shape = 'u32[144,128]{1,0:T(1,128)}', space=vmem, size = 0x12000, scoped, tag = 'internal scratch']
  %s0 = inlined_call_operand.vmem [shape: bf16[16,512], index: 0, kind: input, shape index: {}]
  %s1 = inlined_call_operand.vmem [shape: bf16[512,256], index: 1, kind: input, shape index: {}]
  %s2 = inlined_call_operand.vmem [shape: f32[1,256], index: 2, kind: input, shape index: {}]
  %s3 = inlined_call_operand.vmem [shape: f32[16,256], index: 3, kind: output, shape index: {}]
  %s4 = sld [smem:[#allocation0]]
  $region22: #{_lambda_.9} parent=0
    _
  %s6 = ssub.s32 1, %s4
  %s7 = scalar_select 0, %s6, %s4
  // Predicated region
  $region2: #{_lambda_.9} parent=0 // pred_check
    _
  $region3: #{_lambda_.9} parent=0 // pred_check_branch
    %9 = sbr.rel (0) target = $region5
  $region4: #{_lambda_.9} parent=0 // pred_region
    _
  $region5: #{_lambda_.9} parent=0 // pred_fallthru
    _
  // Predicated region
  $region6: #{_lambda_.9} parent=0 // pred_check
    _
  $region7: #{_lambda_.9} parent=0 // pred_check_branch
    %11 = sbr.rel (0) target = $region9
  $region8: #{_lambda_.9} parent=0 // pred_region
    _
  $region9: #{_lambda_.9} parent=0 // pred_fallthru
    _
  // Predicated region
  $region10: #{_lambda_.9} parent=0 // pred_check
    _
  $region11: #{_lambda_.9} parent=0 // pred_check_branch
    %13 = sbr.rel (0) target = $region13
  $region12: #{_lambda_.9} parent=0 // pred_region
    _
  $region13: #{_lambda_.9} parent=0 // pred_fallthru
    _
  %v14 = vld [vmem:[%s0] sm:$0xff]
  %v15 = vld [vmem:[%s0 + $0x8] sm:$0xff]
  %v16 = vld [vmem:[%s0 + $0x10] sm:$0xff]
  %v17 = vld [vmem:[%s0 + $0x18] sm:$0xff]
  %v18 = vld [vmem:[%s1] sm:$0xff]
  %v19 = vld [vmem:[%s1 + $0x8] sm:$0xff]
  %v20 = vld [vmem:[%s1 + $0x10] sm:$0xff]
  %v21 = vld [vmem:[%s1 + $0x18] sm:$0xff]
  %v22 = vld [vmem:[%s1 + $0x20] sm:$0xff]
  %v23 = vld [vmem:[%s1 + $0x28] sm:$0xff]
  %v24 = vld [vmem:[%s1 + $0x30] sm:$0xff]
  %v25 = vld [vmem:[%s1 + $0x38] sm:$0xff]
  %v26 = vld [vmem:[%s1 + $0x40] sm:$0xff]
  %v27 = vld [vmem:[%s1 + $0x48] sm:$0xff]
  %v28 = vld [vmem:[%s1 + $0x50] sm:$0xff]
  %v29 = vld [vmem:[%s1 + $0x58] sm:$0xff]
  %v30 = vld [vmem:[%s1 + $0x60] sm:$0xff]
  %v31 = vld [vmem:[%s1 + $0x68] sm:$0xff]
  %v32 = vld [vmem:[%s1 + $0x70] sm:$0xff]
  %v33 = vld [vmem:[%s1 + $0x78] sm:$0xff]
  %v34 = vld [vmem:[%s1 + $0x80] sm:$0xff]
  %v35 = vld [vmem:[%s1 + $0x88] sm:$0xff]
  %v36 = vld [vmem:[%s1 + $0x90] sm:$0xff]
  %v37 = vld [vmem:[%s1 + $0x98] sm:$0xff]
  %v38 = vld [vmem:[%s1 + $0xa0] sm:$0xff]
  %v39 = vld [vmem:[%s1 + $0xa8] sm:$0xff]
  %v40 = vld [vmem:[%s1 + $0xb0] sm:$0xff]
  %v41 = vld [vmem:[%s1 + $0xb8] sm:$0xff]
  %v42 = vld [vmem:[%s1 + $0xc0] sm:$0xff]
  %v43 = vld [vmem:[%s1 + $0xc8] sm:$0xff]
  %v44 = vld [vmem:[%s1 + $0xd0] sm:$0xff]
  %v45 = vld [vmem:[%s1 + $0xd8] sm:$0xff]
  %v46 = vld [vmem:[%s1 + $0xe0] sm:$0xff]
  %v47 = vld [vmem:[%s1 + $0xe8] sm:$0xff]
  %v48 = vld [vmem:[%s1 + $0xf0] sm:$0xff]
  %v49 = vld [vmem:[%s1 + $0xf8] sm:$0xff]
  %v50 = vld [vmem:[%s1 + $0x100] sm:$0xff]
  %v51 = vld [vmem:[%s1 + $0x108] sm:$0xff]
  %v52 = vld [vmem:[%s1 + $0x110] sm:$0xff]
  %v53 = vld [vmem:[%s1 + $0x118] sm:$0xff]
  %v54 = vld [vmem:[%s1 + $0x120] sm:$0xff]
  %v55 = vld [vmem:[%s1 + $0x128] sm:$0xff]
  %v56 = vld [vmem:[%s1 + $0x130] sm:$0xff]
  %v57 = vld [vmem:[%s1 + $0x138] sm:$0xff]
  %v58 = vld [vmem:[%s1 + $0x140] sm:$0xff]
  %v59 = vld [vmem:[%s1 + $0x148] sm:$0xff]
  %v60 = vld [vmem:[%s1 + $0x150] sm:$0xff]
  %v61 = vld [vmem:[%s1 + $0x158] sm:$0xff]
  %v62 = vld [vmem:[%s1 + $0x160] sm:$0xff]
  %v63 = vld [vmem:[%s1 + $0x168] sm:$0xff]
  %v64 = vld [vmem:[%s1 + $0x170] sm:$0xff]
  %v65 = vld [vmem:[%s1 + $0x178] sm:$0xff]
  %v66 = vld [vmem:[%s1 + $0x180] sm:$0xff]
  %v67 = vld [vmem:[%s1 + $0x188] sm:$0xff]
  %v68 = vld [vmem:[%s1 + $0x190] sm:$0xff]
  %v69 = vld [vmem:[%s1 + $0x198] sm:$0xff]
  %v70 = vld [vmem:[%s1 + $0x1a0] sm:$0xff]
  %v71 = vld [vmem:[%s1 + $0x1a8] sm:$0xff]
  %v72 = vld [vmem:[%s1 + $0x1b0] sm:$0xff]
  %v73 = vld [vmem:[%s1 + $0x1b8] sm:$0xff]
  %v74 = vld [vmem:[%s1 + $0x1c0] sm:$0xff]
  %v75 = vld [vmem:[%s1 + $0x1c8] sm:$0xff]
  %v76 = vld [vmem:[%s1 + $0x1d0] sm:$0xff]
  %v77 = vld [vmem:[%s1 + $0x1d8] sm:$0xff]
  %v78 = vld [vmem:[%s1 + $0x1e0] sm:$0xff]
  %v79 = vld [vmem:[%s1 + $0x1e8] sm:$0xff]
  %v80 = vld [vmem:[%s1 + $0x1f0] sm:$0xff]
  %v81 = vld [vmem:[%s1 + $0x1f8] sm:$0xff]
  %v82 = vld [vmem:[%s2] sm:$0x3]
  %v84 = vlaneseq
  %v85 = vshrl.u32 %v84, 7
  %v86 = vsub.s32 0, %v85
  %v87 = vrot.slane %v82, %v86
  %v88 = vlaneseq
  %v89 = vshrl.u32 %v88, 7
  %v90 = vsub.s32 1, %v89
  %v91 = vrot.slane %v82, %v90
  %v98 = vunpack.c.l.b16 %v14
  %v99 = vunpack.c.h.b16 %v14
  %v100 = vunpack.c.l.b16 %v15
  %v101 = vunpack.c.h.b16 %v15
  %v102 = vunpack.c.l.b16 %v16
  %v103 = vunpack.c.h.b16 %v16
  %v104 = vunpack.c.l.b16 %v17
  %v105 = vunpack.c.h.b16 %v17
  %v106 = vpack.c.b16 %v102, %v98
  %v107 = vpack.c.b16 %v103, %v99
  %v108 = vpack.c.b16 %v104, %v100
  %v109 = vpack.c.b16 %v105, %v101
  %v178 = vunpack.c.l.b16 %v18
  %v179 = vunpack.c.h.b16 %v18
  %v180 = vunpack.c.l.b16 %v19
  %v181 = vunpack.c.h.b16 %v19
  %v182 = vunpack.c.l.b16 %v20
  %v183 = vunpack.c.h.b16 %v20
  %v184 = vunpack.c.l.b16 %v21
  %v185 = vunpack.c.h.b16 %v21
  %v186 = vunpack.c.l.b16 %v22
  %v187 = vunpack.c.h.b16 %v22
  %v188 = vunpack.c.l.b16 %v23
  %v189 = vunpack.c.h.b16 %v23
  %v190 = vunpack.c.l.b16 %v24
  %v191 = vunpack.c.h.b16 %v24
  %v192 = vunpack.c.l.b16 %v25
  %v193 = vunpack.c.h.b16 %v25
  %v194 = vunpack.c.l.b16 %v26
  %v195 = vunpack.c.h.b16 %v26
  %v196 = vunpack.c.l.b16 %v27
  %v197 = vunpack.c.h.b16 %v27
  %v198 = vunpack.c.l.b16 %v28
  %v199 = vunpack.c.h.b16 %v28
  %v200 = vunpack.c.l.b16 %v29
  %v201 = vunpack.c.h.b16 %v29
  %v202 = vunpack.c.l.b16 %v30
  %v203 = vunpack.c.h.b16 %v30
  %v204 = vunpack.c.l.b16 %v31
  %v205 = vunpack.c.h.b16 %v31
  %v206 = vunpack.c.l.b16 %v32
  %v207 = vunpack.c.h.b16 %v32
  %v208 = vunpack.c.l.b16 %v33
  %v209 = vunpack.c.h.b16 %v33
  %v210 = vunpack.c.l.b16 %v34
  %v211 = vunpack.c.h.b16 %v34
  %v212 = vunpack.c.l.b16 %v35
  %v213 = vunpack.c.h.b16 %v35
  %v214 = vunpack.c.l.b16 %v36
  %v215 = vunpack.c.h.b16 %v36
  %v216 = vunpack.c.l.b16 %v37
  %v217 = vunpack.c.h.b16 %v37
  %v218 = vunpack.c.l.b16 %v38
  %v219 = vunpack.c.h.b16 %v38
  %v220 = vunpack.c.l.b16 %v39
  %v221 = vunpack.c.h.b16 %v39
  %v222 = vunpack.c.l.b16 %v40
  %v223 = vunpack.c.h.b16 %v40
  %v224 = vunpack.c.l.b16 %v41
  %v225 = vunpack.c.h.b16 %v41
  %v226 = vunpack.c.l.b16 %v42
  %v227 = vunpack.c.h.b16 %v42
  %v228 = vunpack.c.l.b16 %v43
  %v229 = vunpack.c.h.b16 %v43
  %v230 = vunpack.c.l.b16 %v44
  %v231 = vunpack.c.h.b16 %v44
  %v232 = vunpack.c.l.b16 %v45
  %v233 = vunpack.c.h.b16 %v45
  %v234 = vunpack.c.l.b16 %v46
  %v235 = vunpack.c.h.b16 %v46
  %v236 = vunpack.c.l.b16 %v47
  %v237 = vunpack.c.h.b16 %v47
  %v238 = vunpack.c.l.b16 %v48
  %v239 = vunpack.c.h.b16 %v48
  %v240 = vunpack.c.l.b16 %v49
  %v241 = vunpack.c.h.b16 %v49
  %v242 = vunpack.c.l.b16 %v50
  %v243 = vunpack.c.h.b16 %v50
  %v244 = vunpack.c.l.b16 %v51
  %v245 = vunpack.c.h.b16 %v51
  %v246 = vunpack.c.l.b16 %v52
  %v247 = vunpack.c.h.b16 %v52
  %v248 = vunpack.c.l.b16 %v53
  %v249 = vunpack.c.h.b16 %v53
  %v250 = vunpack.c.l.b16 %v54
  %v251 = vunpack.c.h.b16 %v54
  %v252 = vunpack.c.l.b16 %v55
  %v253 = vunpack.c.h.b16 %v55
  %v254 = vunpack.c.l.b16 %v56
  %v255 = vunpack.c.h.b16 %v56
  %v256 = vunpack.c.l.b16 %v57
  %v257 = vunpack.c.h.b16 %v57
  %v258 = vunpack.c.l.b16 %v58
  %v259 = vunpack.c.h.b16 %v58
  %v260 = vunpack.c.l.b16 %v59
  %v261 = vunpack.c.h.b16 %v59
  %v262 = vunpack.c.l.b16 %v60
  %v263 = vunpack.c.h.b16 %v60
  %v264 = vunpack.c.l.b16 %v61
  %v265 = vunpack.c.h.b16 %v61
  %v266 = vunpack.c.l.b16 %v62
  %v267 = vunpack.c.h.b16 %v62
  %v268 = vunpack.c.l.b16 %v63
  %v269 = vunpack.c.h.b16 %v63
  %v270 = vunpack.c.l.b16 %v64
  %v271 = vunpack.c.h.b16 %v64
  %v272 = vunpack.c.l.b16 %v65
  %v273 = vunpack.c.h.b16 %v65
  %v274 = vunpack.c.l.b16 %v66
  %v275 = vunpack.c.h.b16 %v66
  %v276 = vunpack.c.l.b16 %v67
  %v277 = vunpack.c.h.b16 %v67
  %v278 = vunpack.c.l.b16 %v68
  %v279 = vunpack.c.h.b16 %v68
  %v280 = vunpack.c.l.b16 %v69
  %v281 = vunpack.c.h.b16 %v69
  %v282 = vunpack.c.l.b16 %v70
  %v283 = vunpack.c.h.b16 %v70
  %v284 = vunpack.c.l.b16 %v71
  %v285 = vunpack.c.h.b16 %v71
  %v286 = vunpack.c.l.b16 %v72
  %v287 = vunpack.c.h.b16 %v72
  %v288 = vunpack.c.l.b16 %v73
  %v289 = vunpack.c.h.b16 %v73
  %v290 = vunpack.c.l.b16 %v74
  %v291 = vunpack.c.h.b16 %v74
  %v292 = vunpack.c.l.b16 %v75
  %v293 = vunpack.c.h.b16 %v75
  %v294 = vunpack.c.l.b16 %v76
  %v295 = vunpack.c.h.b16 %v76
  %v296 = vunpack.c.l.b16 %v77
  %v297 = vunpack.c.h.b16 %v77
  %v298 = vunpack.c.l.b16 %v78
  %v299 = vunpack.c.h.b16 %v78
  %v300 = vunpack.c.l.b16 %v79
  %v301 = vunpack.c.h.b16 %v79
  %v302 = vunpack.c.l.b16 %v80
  %v303 = vunpack.c.h.b16 %v80
  %v304 = vunpack.c.l.b16 %v81
  %v305 = vunpack.c.h.b16 %v81
  %v306 = vpack.c.b16 %v180, %v178
  %v307 = vpack.c.b16 %v181, %v179
  %v308 = vpack.c.b16 %v184, %v182
  %v309 = vpack.c.b16 %v185, %v183
  %v310 = vpack.c.b16 %v188, %v186
  %v311 = vpack.c.b16 %v189, %v187
  %v312 = vpack.c.b16 %v192, %v190
  %v313 = vpack.c.b16 %v193, %v191
  %v314 = vpack.c.b16 %v196, %v194
  %v315 = vpack.c.b16 %v197, %v195
  %v316 = vpack.c.b16 %v200, %v198
  %v317 = vpack.c.b16 %v201, %v199
  %v318 = vpack.c.b16 %v204, %v202
  %v319 = vpack.c.b16 %v205, %v203
  %v320 = vpack.c.b16 %v208, %v206
  %v321 = vpack.c.b16 %v209, %v207
  %v322 = vpack.c.b16 %v212, %v210
  %v323 = vpack.c.b16 %v213, %v211
  %v324 = vpack.c.b16 %v216, %v214
  %v325 = vpack.c.b16 %v217, %v215
  %v326 = vpack.c.b16 %v220, %v218
  %v327 = vpack.c.b16 %v221, %v219
  %v328 = vpack.c.b16 %v224, %v222
  %v329 = vpack.c.b16 %v225, %v223
  %v330 = vpack.c.b16 %v228, %v226
  %v331 = vpack.c.b16 %v229, %v227
  %v332 = vpack.c.b16 %v232, %v230
  %v333 = vpack.c.b16 %v233, %v231
  %v334 = vpack.c.b16 %v236, %v234
  %v335 = vpack.c.b16 %v237, %v235
  %v336 = vpack.c.b16 %v240, %v238
  %v337 = vpack.c.b16 %v241, %v239
  %v338 = vpack.c.b16 %v244, %v242
  %v339 = vpack.c.b16 %v245, %v243
  %v340 = vpack.c.b16 %v248, %v246
  %v341 = vpack.c.b16 %v249, %v247
  %v342 = vpack.c.b16 %v252, %v250
  %v343 = vpack.c.b16 %v253, %v251
  %v344 = vpack.c.b16 %v256, %v254
  %v345 = vpack.c.b16 %v257, %v255
  %v346 = vpack.c.b16 %v260, %v258
  %v347 = vpack.c.b16 %v261, %v259
  %v348 = vpack.c.b16 %v264, %v262
  %v349 = vpack.c.b16 %v265, %v263
  %v350 = vpack.c.b16 %v268, %v266
  %v351 = vpack.c.b16 %v269, %v267
  %v352 = vpack.c.b16 %v272, %v270
  %v353 = vpack.c.b16 %v273, %v271
  %v354 = vpack.c.b16 %v276, %v274
  %v355 = vpack.c.b16 %v277, %v275
  %v356 = vpack.c.b16 %v280, %v278
  %v357 = vpack.c.b16 %v281, %v279
  %v358 = vpack.c.b16 %v284, %v282
  %v359 = vpack.c.b16 %v285, %v283
  %v360 = vpack.c.b16 %v288, %v286
  %v361 = vpack.c.b16 %v289, %v287
  %v362 = vpack.c.b16 %v292, %v290
  %v363 = vpack.c.b16 %v293, %v291
  %v364 = vpack.c.b16 %v296, %v294
  %v365 = vpack.c.b16 %v297, %v295
  %v366 = vpack.c.b16 %v300, %v298
  %v367 = vpack.c.b16 %v301, %v299
  %v368 = vpack.c.b16 %v304, %v302
  %v369 = vpack.c.b16 %v305, %v303
  %434 = vmatprep.subr.bf16.mxu0 %v307
  %435 = vmatpush1.bf16.msra.mxu0 %v306
  %436 = vmatprep.subr.bf16.mxu0 %v309
  %437 = vmatpush1.bf16.msra.mxu0 %v308
  %438 = vmatprep.subr.bf16.mxu0 %v311
  %439 = vmatpush1.bf16.msra.mxu0 %v310
  %440 = vmatprep.subr.bf16.mxu0 %v313
  %441 = vmatpush1.bf16.msra.mxu0 %v312
  %442 = vmatprep.subr.bf16.mxu0 %v315
  %443 = vmatpush1.bf16.msra.mxu0 %v314
  %444 = vmatprep.subr.bf16.mxu0 %v317
  %445 = vmatpush1.bf16.msra.mxu0 %v316
  %446 = vmatprep.subr.bf16.mxu0 %v319
  %447 = vmatpush1.bf16.msra.mxu0 %v318
  %448 = vmatprep.subr.bf16.mxu0 %v321
  %449 = vmatpush1.bf16.msra.mxu0 %v320
  %450 = vmatprep.subr.bf16.mxu0 %v323
  %451 = vmatpush1.bf16.msra.mxu0 %v322
  %452 = vmatprep.subr.bf16.mxu0 %v325
  %453 = vmatpush1.bf16.msra.mxu0 %v324
  %454 = vmatprep.subr.bf16.mxu0 %v327
  %455 = vmatpush1.bf16.msra.mxu0 %v326
  %456 = vmatprep.subr.bf16.mxu0 %v329
  %457 = vmatpush1.bf16.msra.mxu0 %v328
  %458 = vmatprep.subr.bf16.mxu0 %v331
  %459 = vmatpush1.bf16.msra.mxu0 %v330
  %460 = vmatprep.subr.bf16.mxu0 %v333
  %461 = vmatpush1.bf16.msra.mxu0 %v332
  %462 = vmatprep.subr.bf16.mxu0 %v335
  %463 = vmatpush1.bf16.msra.mxu0 %v334
  %464 = vmatprep.subr.bf16.mxu0 %v337
  %465 = vmatpush1.bf16.msra.mxu0 %v336
  %466 = vmatprep.mubr.bf16.mxu0 %v107
  %467 = vmatmul.mubr.bf16.gmra.mrb[0].mxu0 %v106
  %v468 = vpop.f32.mrb[0].mxu0
  %v469 = vadd.f32 %v87, %v468
  %v470 = vpop.f32.mrb[0].mxu0
  %v471 = vadd.f32 %v91, %v470
  %v472 = vpop.f32.mrb[0].mxu0
  %v473 = vadd.f32 %v87, %v472
  %v474 = vpop.f32.mrb[0].mxu0
  %v475 = vadd.f32 %v91, %v474
  %476 = vdwg.mxu0
  %477 = vmatprep.subr.bf16.mxu0 %v339
  %478 = vmatpush1.bf16.msra.mxu0 %v338
  %479 = vmatprep.subr.bf16.mxu0 %v341
  %480 = vmatpush1.bf16.msra.mxu0 %v340
  %481 = vmatprep.subr.bf16.mxu0 %v343
  %482 = vmatpush1.bf16.msra.mxu0 %v342
  %483 = vmatprep.subr.bf16.mxu0 %v345
  %484 = vmatpush1.bf16.msra.mxu0 %v344
  %485 = vmatprep.subr.bf16.mxu0 %v347
  %486 = vmatpush1.bf16.msra.mxu0 %v346
  %487 = vmatprep.subr.bf16.mxu0 %v349
  %488 = vmatpush1.bf16.msra.mxu0 %v348
  %489 = vmatprep.subr.bf16.mxu0 %v351
  %490 = vmatpush1.bf16.msra.mxu0 %v350
  %491 = vmatprep.subr.bf16.mxu0 %v353
  %492 = vmatpush1.bf16.msra.mxu0 %v352
  %493 = vmatprep.subr.bf16.mxu0 %v355
  %494 = vmatpush1.bf16.msra.mxu0 %v354
  %495 = vmatprep.subr.bf16.mxu0 %v357
  %496 = vmatpush1.bf16.msra.mxu0 %v356
  %497 = vmatprep.subr.bf16.mxu0 %v359
  %498 = vmatpush1.bf16.msra.mxu0 %v358
  %499 = vmatprep.subr.bf16.mxu0 %v361
  %500 = vmatpush1.bf16.msra.mxu0 %v360
  %501 = vmatprep.subr.bf16.mxu0 %v363
  %502 = vmatpush1.bf16.msra.mxu0 %v362
  %503 = vmatprep.subr.bf16.mxu0 %v365
  %504 = vmatpush1.bf16.msra.mxu0 %v364
  %505 = vmatprep.subr.bf16.mxu0 %v367
  %506 = vmatpush1.bf16.msra.mxu0 %v366
  %507 = vmatprep.subr.bf16.mxu0 %v369
  %508 = vmatpush1.bf16.msra.mxu0 %v368
  %509 = vmatprep.mubr.bf16.mxu0 %v109
  %510 = vmatmul.mubr.bf16.gmra.mrb[0].mxu0 %v108
  %v511 = vpop.f32.mrb[0].mxu0
  %v512 = vadd.f32 %v469, %v511
  %v513 = vpop.f32.mrb[0].mxu0
  %v514 = vadd.f32 %v471, %v513
  %v515 = vpop.f32.mrb[0].mxu0
  %v516 = vadd.f32 %v473, %v515
  %v517 = vpop.f32.mrb[0].mxu0
  %v518 = vadd.f32 %v475, %v517
  %519 = vdwg.mxu0
  %v520 = vxor.u32 %v512, 2147483648
  %v521 = vxor.u32 %v514, 2147483648
  %v522 = vxor.u32 %v516, 2147483648
  %v523 = vxor.u32 %v518, 2147483648
  %v524 = vmul.f32 %v520, 1.442695
  %v525 = vpow.pop %v524
  %v526 = vmul.f32 %v521, 1.442695
  %v527 = vpow.pop %v526
  %v528 = vmul.f32 %v522, 1.442695
  %v529 = vpow.pop %v528
  %v530 = vmul.f32 %v523, 1.442695
  %v531 = vpow.pop %v530
  %v532 = vadd.f32 %v525, 1.0
  %v533 = vadd.f32 %v527, 1.0
  %v534 = vadd.f32 %v529, 1.0
  %v535 = vadd.f32 %v531, 1.0
  %v536 = vrcp.pop %v532
  %v537 = vmul.f32 1.0, %v536
  %v538 = vrcp.pop %v533
  %v539 = vmul.f32 1.0, %v538
  %v540 = vrcp.pop %v534
  %v541 = vmul.f32 1.0, %v540
  %v542 = vrcp.pop %v535
  %v543 = vmul.f32 1.0, %v542
  %544 = vst [vmem:[%s3] sm:$0xff] %v537
  %545 = vst [vmem:[%s3 + $0x8] sm:$0xff] %v539
  %546 = vst [vmem:[%s3 + $0x10] sm:$0xff] %v541
  %547 = vst [vmem:[%s3 + $0x18] sm:$0xff] %v543
  // Predicated region
  $region14: #{_lambda_.9} parent=0 // pred_check
    _
  $region15: #{_lambda_.9} parent=0 // pred_check_branch
    %549 = sbr.rel (0) target = $region17
  $region16: #{_lambda_.9} parent=0 // pred_region
    _
  $region17: #{_lambda_.9} parent=0 // pred_fallthru
    _
  // Predicated region
  $region18: #{_lambda_.9} parent=0 // pred_check
    _
  $region19: #{_lambda_.9} parent=0 // pred_check_branch
    %551 = sbr.rel (0) target = $region21
  $region20: #{_lambda_.9} parent=0 // pred_region
    _
  $region21: #{_lambda_.9} parent=0 // pred_fallthru
    _

</llo_original>
